<compile_context>
chip_gen: v6e
topology: v6e:2x2x1
jax: 0.10.0
libtpu: 0.0.40
codegen_flags: <defaults>
</compile_context>

<pallas_src>
import functools
import math

import jax
import jax.numpy as jnp
import numpy as np
from jax.experimental import pallas as pl
from jax.experimental.pallas import tpu as pltpu

EPS = 1e-5                      # PyTorch LayerNorm default eps

# Single-buffer constant operands via pipeline_mode=pl.Buffered(1).  If the
# installed jax build rejects pipeline_mode, we flip this flag and retry once.
_SINGLE_BUFFER = [True]
_VMEM_LIMIT_CACHE = [None]


def _vmem_limit_bytes():
    """Generation-aware scoped-VMEM request (~3/4 of physical VMEM)."""
    if _VMEM_LIMIT_CACHE[0] is None:
        try:
            cap = int(pltpu.get_tpu_info().vmem_capacity_bytes)
            if cap <= 0:
                raise ValueError("bad vmem capacity")
            lim = cap * 3 // 4                       # v5e/v6e ~96MiB, v7x ~48MiB
            lim = max(min(lim, 112 * 1024 * 1024), 32 * 1024 * 1024)
        except Exception:
            lim = 48 * 1024 * 1024                   # safe on every generation
        _VMEM_LIMIT_CACHE[0] = lim
    return _VMEM_LIMIT_CACHE[0]


def _ln(x, g, b):
    mu = jnp.mean(x, axis=-1, keepdims=True)
    var = jnp.mean((x - mu) ** 2, axis=-1, keepdims=True)
    return (x - mu) * jax.lax.rsqrt(var + EPS) * g + b


def _spec(shape, index_map, *, single=False):
    """BlockSpec; constant-index operands get a single VMEM buffer."""
    if single and _SINGLE_BUFFER[0]:
        return pl.BlockSpec(shape, index_map, pipeline_mode=pl.Buffered(1))
    return pl.BlockSpec(shape, index_map)


def _retry_without_single_buffer(fn):
    """Run fn(); if pipeline_mode=Buffered(1) is rejected, retry without it."""
    try:
        return fn()
    except Exception:
        if not _SINGLE_BUFFER[0]:
            raise
        _SINGLE_BUFFER[0] = False
        return fn()


# ---------------------------------------------------------------------------
# Kernel A: fused temporal-conv + pos-embed + flash cross-attention layer.
# ---------------------------------------------------------------------------
def _cross_attn_layer_kernel(x_ref, feat_ref, cw_ref, cb_ref, pos_ref,
                             g1_ref, b1_ref, g3_ref, b3_ref,
                             wq_ref, bq_ref, wk_ref, bk_ref, wv_ref, bv_ref,
                             wo_ref, bo_ref, hsel_ref, hexp_ref, kvw_ref,
                             xo_ref,
                             q_scr, m_scr, l_scr, acc_scr, *, T, tl):
    j = pl.program_id(1)
    nj = pl.num_programs(1)
    wdt = wq_ref.dtype
    Lblk = T * tl

    @pl.when(j == 0)
    def _init():
        xq = x_ref[...][0]                                   # (1, C)
        xn = _ln(xq, g1_ref[...], b1_ref[...])
        q = jnp.dot(xn.astype(wdt), wq_ref[...],
                    preferred_element_type=jnp.float32) + bq_ref[...]
        q_scr[...] = q
        m_scr[...] = jnp.full(m_scr.shape, -jnp.inf, jnp.float32)
        l_scr[...] = jnp.zeros(l_scr.shape, jnp.float32)
        acc_scr[...] = jnp.zeros(acc_scr.shape, jnp.float32)

    # ---- temporal depthwise conv + residual + pos embed (this KV tile only)
    f3 = feat_ref[...][0].astype(jnp.float32)                # (T, tl, C)
    C = f3.shape[-1]
    x2 = f3.reshape(Lblk, C)                                 # row = t*tl + l_local
    w = cw_ref[...]                                          # (3, C)
    row = jax.lax.broadcasted_iota(jnp.int32, (Lblk, 1), 0)
    prev = jnp.where(row >= tl, pltpu.roll(x2, shift=tl, axis=0), 0.0)
    nxt = jnp.where(row < Lblk - tl,
                    pltpu.roll(x2, shift=Lblk - tl, axis=0), 0.0)
    conv = prev * w[0:1] + x2 * w[1:2] + nxt * w[2:3] + cb_ref[...]
    y = (f3 + pos_ref[...][:, None, :]).reshape(Lblk, C) + conv

    # ---- KV projections -----------------------------------------------------
    yn = _ln(y, g3_ref[...], b3_ref[...]).astype(wdt)
    k = jnp.dot(yn, wk_ref[...], preferred_element_type=jnp.float32) + bk_ref[...]
    v = jnp.dot(yn, wv_ref[...], preferred_element_type=jnp.float32) + bv_ref[...]

    # ---- compact per-head scores (Lblk, H): one matmul, scale folded into
    # the f32 head-selector so there is no extra bf16 rounding point.
    prod = k * q_scr[...]                                    # (Lblk, P) f32
    s = jnp.dot(prod, hsel_ref[...], preferred_element_type=jnp.float32)

    # ---- online softmax update; row reductions on the MXU with the key-
    # validity weight row (1.0 real keys, 0.0 spatial padding).
    w_row = kvw_ref[...][0]                                  # (1, Lblk)
    m_prev = m_scr[...]
    m_new = jnp.maximum(m_prev, jnp.max(s, axis=0, keepdims=True))   # (1, H)
    alpha = jnp.exp(m_prev - m_new)                                   # (1, H)
    p = jnp.exp(s - m_new)                                            # (Lblk, H)
    l_scr[...] = alpha * l_scr[...] + jnp.dot(
        w_row, p, preferred_element_type=jnp.float32)
    p_exp = jnp.dot(p, hexp_ref[...], preferred_element_type=jnp.float32)
    alpha_exp = jnp.dot(alpha, hexp_ref[...], preferred_element_type=jnp.float32)
    acc_scr[...] = alpha_exp * acc_scr[...] + jnp.dot(
        w_row, p_exp * v, preferred_element_type=jnp.float32)
    m_scr[...] = m_new

    @pl.when(j == nj - 1)
    def _finalize():
        l_exp = jnp.dot(l_scr[...], hexp_ref[...],
                        preferred_element_type=jnp.float32)           # (1, P)
        mix = acc_scr[...] / l_exp
        out = jnp.dot(mix.astype(wdt), wo_ref[...],
                      preferred_element_type=jnp.float32) + bo_ref[...]
        xo_ref[...] = (x_ref[...][0] + out)[None]


def _choose_l_tile(L, T, C, P, H, feat_itemsize, weight_itemsize, vmem_limit):
    """Pick tl from the real working set, not a fixed tile-only budget."""
    # Resident constants in Kernel A (single-buffered when supported).
    resident = 4 * C * P * weight_itemsize                    # wq, wk, wv, wo
    resident += (P * H + H * P + T * C + 40 * max(C, P)) * 4  # hsel/hexp/pos/LN
    if not _SINGLE_BUFFER[0]:
        resident *= 2
    budget = vmem_limit - resident - (4 << 20)                # compiler headroom
    # Per row of the (T*tl, *) tile: feat tile (x2 pipeline buffers, native
    # dtype) + ~10 live f32 intermediates of width max(C, P)
    # (x2/prev/nxt/conv/y/yn/k/v/prod/p_exp/p*v, not all simultaneously live).
    per_row = 2 * C * feat_itemsize + 10 * max(C, P) * 4
    max_rows = max(budget // per_row, 8 * T)
    tl = max(int(max_rows // T), 8)
    # Prefer Lblk = T*tl as a multiple of 256 (v6e/v7x MXU edge), else of 8.
    step = max(256 // math.gcd(T, 256), 8)
    step = ((step + 7) // 8) * 8
    if tl >= step:
        tl = (tl // step) * step
    else:
        tl = max((tl // 8) * 8, 8)
    # Never bigger than L rounded up to a sublane multiple.
    tl = min(tl, ((L + 7) // 8) * 8)
    return tl


def cross_attn_layer(x, feat, lp, hsel, hexp, l_tile=None):
    N, T, L, C = feat.shape
    P = lp['wq'].shape[1]
    H = hsel.shape[1]
    vmem_limit = _vmem_limit_bytes()
    tl = (l_tile if l_tile is not None
          else _choose_l_tile(L, T, C, P, H, feat.dtype.itemsize,
                              lp['wq'].dtype.itemsize, vmem_limit))
    assert tl == L or tl % 8 == 0, "l_tile must be a multiple of 8 (or == L)"
    nj = -(-L // tl)
    Lp = nj * tl
    Lblk = T * tl
    if Lp != L:
        # Edge-pad the spatial axis: padded keys replicate the last real token
        # (so the running max is never polluted) and are excluded from the
        # softmax sums by the key-validity weight row below.
        feat = jnp.pad(feat, ((0, 0), (0, 0), (0, Lp - L), (0, 0)), mode='edge')

    # Key-validity weight rows: kvw[j, 0, t*tl + l_local] = 1.0 iff the global
    # spatial index j*tl + l_local < L.  Doubles as the "ones" row for the MXU
    # reductions when there is no padding.
    lmask = (np.arange(Lp) < L).astype(np.float32)
    kvw_np = np.zeros((nj, 1, Lblk), np.float32)
    for jj in range(nj):
        kvw_np[jj, 0] = np.tile(lmask[jj * tl:(jj + 1) * tl], T)
    kvw = jnp.asarray(kvw_np)

    const2 = lambda n, j: (0, 0)

    def build():
        in_specs = [
            pl.BlockSpec((1, 1, C), lambda n, j: (n, 0, 0)),             # x
            pl.BlockSpec((1, T, tl, C), lambda n, j: (n, 0, j, 0)),      # feat
            _spec((3, C), const2, single=True),                          # conv w
            _spec((1, C), const2, single=True),                          # conv b
            _spec((T, C), const2, single=True),                          # pos
            _spec((1, C), const2, single=True), _spec((1, C), const2, single=True),
            _spec((1, C), const2, single=True), _spec((1, C), const2, single=True),
            _spec((C, P), const2, single=True), _spec((1, P), const2, single=True),
            _spec((C, P), const2, single=True), _spec((1, P), const2, single=True),
            _spec((C, P), const2, single=True), _spec((1, P), const2, single=True),
            _spec((P, C), const2, single=True), _spec((1, C), const2, single=True),
            _spec((P, H), const2, single=True),                          # head sel
            _spec((H, P), const2, single=True),                          # head exp
            pl.BlockSpec((1, 1, Lblk), lambda n, j: (j, 0, 0)),          # key w
        ]
        return pl.pallas_call(
            functools.partial(_cross_attn_layer_kernel, T=T, tl=tl),
            out_shape=jax.ShapeDtypeStruct((N, 1, C), jnp.float32),
            grid=(N, nj),
            in_specs=in_specs,
            out_specs=pl.BlockSpec((1, 1, C), lambda n, j: (n, 0, 0)),
            scratch_shapes=[pltpu.VMEM((1, P), jnp.float32),
                            pltpu.VMEM((1, H), jnp.float32),
                            pltpu.VMEM((1, H), jnp.float32),
                            pltpu.VMEM((1, P), jnp.float32)],
            compiler_params=pltpu.CompilerParams(
                # TODO(synk): on v7x, when N is small/odd split part of the L
                # axis into the parallel dimension (partial flash states +
                # combine) so both TensorCores stay busy.
                dimension_semantics=("parallel", "arbitrary"),
                vmem_limit_bytes=vmem_limit),
        )(x, feat, lp['conv_w'], lp['conv_b'], lp['pos'],
          lp['ln1_g'], lp['ln1_b'], lp['ln3_g'], lp['ln3_b'],
          lp['wq'], lp['bq'], lp['wk'], lp['bk'], lp['wv'], lp['bv'],
          lp['wo'], lp['bo'], hsel, hexp, kvw)

    return _retry_without_single_buffer(build)


# ---------------------------------------------------------------------------
# Kernel B: MLP1 -> batch self-attention (seq=N) -> MLP2 (+ optional final LN)
# ---------------------------------------------------------------------------
# TODO(synk): for very large C on v7x (64 MiB VMEM), stream w1/w2/m2w1/m2w2
# over an 'arbitrary' mlp_dim grid axis with an f32 accumulator and give the
# kernel a 'parallel' axis so the second TensorCore does useful work.
def _token_chain_kernel(x_ref, ln2g_ref, ln2b_ref, ln4g_ref, ln4b_ref,
                        ln5g_ref, ln5b_ref,
                        w1_ref, b1_ref, w2_ref, b2_ref,
                        swqk_ref, sbqk_ref, swv_ref, sbv_ref, swo_ref, sbo_ref,
                        m2w1_ref, m2b1_ref, m2w2_ref, m2b2_ref,
                        fg_ref, fb_ref,
                        out_ref, *, num_heads, apply_final_ln):
    x = x_ref[...]                                           # (N, C) f32
    C = x.shape[-1]
    wdt = w1_ref.dtype

    # ---- MLP1: x += fc2(QuickGELU(fc1(LN2(x)))) ------------------------------
    h = _ln(x, ln2g_ref[...], ln2b_ref[...]).astype(wdt)
    h = jnp.dot(h, w1_ref[...], preferred_element_type=jnp.float32) + b1_ref[...]
    h = h * jax.nn.sigmoid(1.702 * h)
    h = jnp.dot(h.astype(wdt), w2_ref[...],
                preferred_element_type=jnp.float32) + b2_ref[...]
    x = x + h

    # ---- batch self-attention across N: q/k = LN4(x), value = x (matches
    # the module: batch_attn(norm4(x), norm4(x), x)).
    xn = _ln(x, ln4g_ref[...], ln4b_ref[...])
    qk = jnp.dot(xn.astype(wdt), swqk_ref[...],
                 preferred_element_type=jnp.float32) + sbqk_ref[...]
    v = jnp.dot(x.astype(wdt), swv_ref[...],
                preferred_element_type=jnp.float32) + sbv_ref[...]
    H = num_heads
    Ch = C // H
    q = qk[:, :C] * (1.0 / Ch ** 0.5)                        # scale folded once
    k = qk[:, C:]
    attn = sbo_ref[...]                                      # (1, C) bias
    for hh in range(H):
        sl = slice(hh * Ch, (hh + 1) * Ch)
        s = jax.lax.dot_general(q[:, sl], k[:, sl], (((1,), (1,)), ((), ())),
                                preferred_element_type=jnp.float32)   # (N, N)
        s = s - jnp.max(s, axis=-1, keepdims=True)
        e = jnp.exp(s)
        a = e / jnp.sum(e, axis=-1, keepdims=True)
        o_h = jnp.dot(a, v[:, sl], preferred_element_type=jnp.float32)
        # lane-dense accumulation against the head's row-slice of W_o
        attn = attn + jnp.dot(o_h.astype(wdt), swo_ref[sl, :],
                              preferred_element_type=jnp.float32)
    x = x + attn

    # ---- MLP2 ----------------------------------------------------------------
    h = _ln(x, ln5g_ref[...], ln5b_ref[...]).astype(wdt)
    h = jnp.dot(h, m2w1_ref[...], preferred_element_type=jnp.float32) + m2b1_ref[...]
    h = h * jax.nn.sigmoid(1.702 * h)
    h = jnp.dot(h.astype(wdt), m2w2_ref[...],
                preferred_element_type=jnp.float32) + m2b2_ref[...]
    x = x + h

    if apply_final_ln:                       # fused final LayerNorm (last layer)
        x = _ln(x, fg_ref[...], fb_ref[...])
    out_ref[...] = x


def _pallas_full(kernel, out_shape, *args):
    """Call a kernel with whole arrays as single (single-buffered) blocks."""
    def build():
        in_specs = [_spec(a.shape, (lambda nd: (lambda i: (0,) * nd))(a.ndim),
                          single=True) for a in args]
        out_spec = pl.BlockSpec(
            out_shape.shape,
            (lambda nd: (lambda i: (0,) * nd))(len(out_shape.shape)))
        return pl.pallas_call(
            kernel,
            out_shape=out_shape,
            grid=(1,),
            in_specs=in_specs,
            out_specs=out_spec,
            compiler_params=pltpu.CompilerParams(
                vmem_limit_bytes=_vmem_limit_bytes()),
        )(*args)
    return _retry_without_single_buffer(build)


# ---------------------------------------------------------------------------
# Parameter preparation (done ONCE, outside the per-forward loop)
# ---------------------------------------------------------------------------
def _head_matrices(P, H):
    """Compact head-selector (P,H) with the 1/sqrt(Cqk) scale folded in, and
    the 0/1 head-expansion matrix (H,P).  Kept in f32."""
    Cqk = P // H
    sel = np.zeros((P, H), np.float32)
    exp = np.zeros((H, P), np.float32)
    scale = 1.0 / np.sqrt(Cqk)
    for h in range(H):
        sel[h * Cqk:(h + 1) * Cqk, h] = scale
        exp[h, h * Cqk:(h + 1) * Cqk] = 1.0
    return jnp.asarray(sel), jnp.asarray(exp)


_BIG_WEIGHTS = ('wq', 'wk', 'wv', 'wo', 'w1', 'w2', 'swv', 'swo', 'm2w1', 'm2w2')


def prepare_params(params, compute_dtype=jnp.float32):
    """One-time weight prep (bf16 casts of big matmul weights, q/k in_proj
    fusion).  Call once and reuse across forward calls."""
    prepared = {k: v for k, v in params.items() if k != 'layers'}
    prepared['layers'] = []
    for lp in params['layers']:
        out = dict(lp)
        for name in _BIG_WEIGHTS:
            out[name] = lp[name].astype(compute_dtype)
        out['swqk'] = jnp.concatenate([lp['swq'], lp['swk']],
                                      axis=1).astype(compute_dtype)
        out['sbqk'] = jnp.concatenate([lp['sbq'], lp['sbk']], axis=1)
        prepared['layers'].append(out)
    return prepared


# ---------------------------------------------------------------------------
# EVLDecoder forward
# ---------------------------------------------------------------------------
def evl_decoder_forward(in_features, params, num_heads, num_self_heads,
                        compute_dtype=jnp.float32, l_tile=None):
    if 'swqk' not in params['layers'][0]:
        params = prepare_params(params, compute_dtype)   # prefer hoisting this
    N, T, L, C = in_features[0].shape
    P = params['layers'][0]['wq'].shape[1]
    hsel, hexp = _head_matrices(P, num_heads)
    num_layers = len(params['layers'])

    x = jnp.broadcast_to(params['cls_token'], (N, 1, C)).astype(jnp.float32)
    for i, lp in enumerate(params['layers']):
        feat = in_features[i]                # streamed in native dtype
        # fused: temporal conv + pos embed + flash cross attention + residual
        x = cross_attn_layer(x, feat, lp, hsel, hexp, l_tile)
        # fused: MLP1 + batch self-attention + MLP2 (+ final LN on last layer)
        is_last = (i == num_layers - 1)
        x2 = _pallas_full(
            functools.partial(_token_chain_kernel, num_heads=num_self_heads,
                              apply_final_ln=is_last),
            jax.ShapeDtypeStruct((N, C), jnp.float32),
            x.reshape(N, C),
            lp['ln2_g'], lp['ln2_b'], lp['ln4_g'], lp['ln4_b'],
            lp['ln5_g'], lp['ln5_b'],
            lp['w1'], lp['b1'], lp['w2'], lp['b2'],
            lp['swqk'], lp['sbqk'], lp['swv'], lp['sbv'], lp['swo'], lp['sbo'],
            lp['m2w1'], lp['m2b1'], lp['m2w2'], lp['m2b2'],
            params['final_ln_g'], params['final_ln_b'])
        x = x2.reshape(N, 1, C)
    return {'feats': x}


# ---------------------------------------------------------------------------
# Deterministic parameter construction (synthetic; shapes from module __init__)
# ---------------------------------------------------------------------------
def make_params(key, num_layers, num_frames, C, P, mlp_dim):
    keys = iter(jax.random.split(key, 256))

    def nrm(shape, s=0.02):
        return jax.random.normal(next(keys), shape, jnp.float32) * s

    params = {
        'cls_token': nrm((1, 1, C)),
        'final_ln_g': jnp.ones((1, C), jnp.float32),
        'final_ln_b': jnp.zeros((1, C), jnp.float32),
        'layers': [],
    }
    for _ in range(num_layers):
        lp = {
            'conv_w': nrm((3, C), 0.2),       # Conv1d(C,C,3,groups=C): (C,1,3)->(3,C)
            'conv_b': nrm((C,), 0.02).reshape(1, C),
            'pos': nrm((num_frames, C)),
            'ln1_g': jnp.ones((1, C)), 'ln1_b': jnp.zeros((1, C)),
            'ln2_g': jnp.ones((1, C)), 'ln2_b': jnp.zeros((1, C)),
            'ln3_g': jnp.ones((1, C)), 'ln3_b': jnp.zeros((1, C)),
            'ln4_g': jnp.ones((1, C)), 'ln4_b': jnp.zeros((1, C)),
            'ln5_g': jnp.ones((1, C)), 'ln5_b': jnp.zeros((1, C)),
            # cross-attention (Attention module), weights stored (in, out)
            'wq': nrm((C, P)), 'bq': nrm((1, P), 0.001),
            'wk': nrm((C, P)), 'bk': nrm((1, P), 0.001),
            'wv': nrm((C, P)), 'bv': nrm((1, P), 0.001),
            'wo': nrm((P, C)), 'bo': nrm((1, C), 0.001),
            # mlp
            'w1': nrm((C, mlp_dim)), 'b1': nrm((1, mlp_dim), 0.001),
            'w2': nrm((mlp_dim, C)), 'b2': nrm((1, C), 0.001),
            # batch self-attention (nn.MultiheadAttention), in_proj split
            'swq': nrm((C, C)), 'sbq': nrm((1, C), 0.001),
            'swk': nrm((C, C)), 'sbk': nrm((1, C), 0.001),
            'swv': nrm((C, C)), 'sbv': nrm((1, C), 0.001),
            'swo': nrm((C, C)), 'sbo': nrm((1, C), 0.001),
            # mlp2
            'm2w1': nrm((C, mlp_dim)), 'm2b1': nrm((1, mlp_dim), 0.001),
            'm2w2': nrm((mlp_dim, C)), 'm2b2': nrm((1, C), 0.001),
        }
        params['layers'].append(lp)
    return params


# ---------------------------------------------------------------------------
# Pure-JAX reference (mirrors the PyTorch math) for correctness checking
# ---------------------------------------------------------------------------
def _ref_ln(x, g, b):
    mu = jnp.mean(x, axis=-1, keepdims=True)
    var = jnp.mean((x - mu) ** 2, axis=-1, keepdims=True)
    return (x - mu) / jnp.sqrt(var + EPS) * g + b


def _ref_cross_attn(qin, kvin, lp, H):
    q = qin @ lp['wq'] + lp['bq']
    k = kvin @ lp['wk'] + lp['bk']
    v = kvin @ lp['wv'] + lp['bv']
    N, Lq, P = q.shape
    Lkv = k.shape[1]
    Cqk = P // H
    qh = q.reshape(N, Lq, H, Cqk)
    kh = k.reshape(N, Lkv, H, Cqk)
    vh = v.reshape(N, Lkv, H, Cqk)
    aff = jnp.einsum('nqhc,nkhc->nqkh', qh / Cqk ** 0.5, kh)
    aff = jax.nn.softmax(aff, axis=-2)
    mix = jnp.einsum('nqlh,nlhc->nqhc', aff, vh).reshape(N, Lq, P)
    return mix @ lp['wo'] + lp['bo']


def ref_forward(in_features, params, H, Hs):
    N, T, L, C = in_features[0].shape
    x = jnp.broadcast_to(params['cls_token'], (N, 1, C))
    for i, lp in enumerate(params['layers']):
        feat = in_features[i]
        pad = jnp.pad(feat, ((0, 0), (1, 1), (0, 0), (0, 0)))
        conv = (pad[:, :-2] * lp['conv_w'][0] + pad[:, 1:-1] * lp['conv_w'][1]
                + pad[:, 2:] * lp['conv_w'][2] + lp['conv_b'][0])
        ff = feat + conv + lp['pos'][None, :, None, :]
        y = ff.reshape(N, T * L, C)
        xn = _ref_ln(x, lp['ln1_g'][0], lp['ln1_b'][0])
        yn = _ref_ln(y, lp['ln3_g'][0], lp['ln3_b'][0])
        x = x + _ref_cross_attn(xn, yn, lp, H)
        h = _ref_ln(x, lp['ln2_g'][0], lp['ln2_b'][0])
        h = h @ lp['w1'] + lp['b1']
        h = h * jax.nn.sigmoid(1.702 * h)
        x = x + (h @ lp['w2'] + lp['b2'])
        # batch self-attention (seq = N, batch = 1)
        x2 = x.reshape(N, C)
        xn2 = _ref_ln(x2, lp['ln4_g'][0], lp['ln4_b'][0])
        q = xn2 @ lp['swq'] + lp['sbq']
        k = xn2 @ lp['swk'] + lp['sbk']
        v = x2 @ lp['swv'] + lp['sbv']
        Ch = C // Hs
        qh = q.reshape(N, Hs, Ch)
        kh = k.reshape(N, Hs, Ch)
        vh = v.reshape(N, Hs, Ch)
        s = jnp.einsum('qhc,khc->hqk', qh / Ch ** 0.5, kh)
        a = jax.nn.softmax(s, axis=-1)
        o = jnp.einsum('hqk,khc->qhc', a, vh).reshape(N, C)
        x2 = x2 + (o @ lp['swo'] + lp['sbo'])
        h = _ref_ln(x2, lp['ln5_g'][0], lp['ln5_b'][0])
        h = h @ lp['m2w1'] + lp['m2b1']
        h = h * jax.nn.sigmoid(1.702 * h)
        x2 = x2 + (h @ lp['m2w2'] + lp['m2b2'])
        x = x2.reshape(N, 1, C)
    return _ref_ln(x, params['final_ln_g'][0], params['final_ln_b'][0])


if __name__ == "__main__":
    # Small shapes consistent with the module: N batch, T frames, L spatial
    # tokens, C feature dim; 2 decoder layers, all with batch self-attention.
    N, T, L, C = 2, 4, 16, 32
    P = 32            # qkv_dim
    H = 4             # num_heads
    Hs = 4            # num_self_attn_heads
    mlp_dim = 128     # round(4.0 * C)
    num_layers = 2

    key = jax.random.PRNGKey(0)
    kp, kx = jax.random.split(key)
    params = make_params(kp, num_layers, T, C, P, mlp_dim)
    xkeys = jax.random.split(kx, num_layers)
    in_features = [jax.random.normal(xkeys[i], (N, T, L, C), jnp.float32) * 0.5
                   for i in range(num_layers)]

    # --- f32 path, l_tile=8 -> grid (N, 2): multi-tile online-softmax --------
    prep_f32 = prepare_params(params, jnp.float32)
    out = evl_decoder_forward(in_features, prep_f32, H, Hs, l_tile=8)
    feats = jax.block_until_ready(out['feats'])
    assert feats.shape == (N, 1, C)
    ref = ref_forward(in_features, params, H, Hs)
    np.testing.assert_allclose(np.asarray(feats), np.asarray(ref),
                               rtol=2e-3, atol=2e-4)

    # --- f32 path with L=12 (not a multiple of the tile): exercises the
    # spatial padding + key-weight masking path ------------------------------
    in_features_12 = [f[:, :, :12, :] for f in in_features]
    out12 = evl_decoder_forward(in_features_12, prep_f32, H, Hs, l_tile=8)
    feats12 = jax.block_until_ready(out12['feats'])
    ref12 = ref_forward(in_features_12, params, H, Hs)
    np.testing.assert_allclose(np.asarray(feats12), np.asarray(ref12),
                               rtol=2e-3, atol=2e-4)

    # --- bf16 weights + bf16 streamed features (production config), automatic
    # working-set-aware l_tile; checked loosely against the f32 reference -----
    prep_bf16 = prepare_params(params, jnp.bfloat16)
    feats_in_bf16 = [f.astype(jnp.bfloat16) for f in in_features]
    out_bf16 = evl_decoder_forward(feats_in_bf16, prep_bf16, H, Hs)
    fb = jax.block_until_ready(out_bf16['feats'])
    assert fb.shape == (N, 1, C)
    assert bool(jnp.all(jnp.isfinite(fb)))
    assert float(jnp.max(jnp.abs(fb - ref))) < 0.25

    print("KERNEL_OK")
</pallas_src>

<mosaic_0001>
module attributes {stable_mosaic.version = 11 : i64} {
  func.func @_cross_attn_layer_kernel(%arg0: i32, %arg1: i32, %arg2: memref<1x1x32xf32, #tpu.memory_space<vmem>>, %arg3: memref<1x4x8x32xf32, #tpu.memory_space<vmem>>, %arg4: memref<3x32xf32, #tpu.memory_space<vmem>>, %arg5: memref<1x32xf32, #tpu.memory_space<vmem>>, %arg6: memref<4x32xf32, #tpu.memory_space<vmem>>, %arg7: memref<1x32xf32, #tpu.memory_space<vmem>>, %arg8: memref<1x32xf32, #tpu.memory_space<vmem>>, %arg9: memref<1x32xf32, #tpu.memory_space<vmem>>, %arg10: memref<1x32xf32, #tpu.memory_space<vmem>>, %arg11: memref<32x32xf32, #tpu.memory_space<vmem>>, %arg12: memref<1x32xf32, #tpu.memory_space<vmem>>, %arg13: memref<32x32xf32, #tpu.memory_space<vmem>>, %arg14: memref<1x32xf32, #tpu.memory_space<vmem>>, %arg15: memref<32x32xf32, #tpu.memory_space<vmem>>, %arg16: memref<1x32xf32, #tpu.memory_space<vmem>>, %arg17: memref<32x32xf32, #tpu.memory_space<vmem>>, %arg18: memref<1x32xf32, #tpu.memory_space<vmem>>, %arg19: memref<32x4xf32, #tpu.memory_space<vmem>>, %arg20: memref<4x32xf32, #tpu.memory_space<vmem>>, %arg21: memref<1x1x32xf32, #tpu.memory_space<vmem>>, %arg22: memref<1x1x32xf32, #tpu.memory_space<vmem>>, %arg23: memref<1x32xf32, #tpu.memory_space<vmem>>, %arg24: memref<1x4xf32, #tpu.memory_space<vmem>>, %arg25: memref<1x4xf32, #tpu.memory_space<vmem>>, %arg26: memref<1x32xf32, #tpu.memory_space<vmem>>) attributes {dimension_semantics = [#tpu.dimension_semantics<parallel>, #tpu.dimension_semantics<arbitrary>], iteration_bounds = array<i64: 2, 2>, scalar_prefetch = 0 : i64, scratch_operands = 4 : i64, tpu.core_type = #tpu.core_type<tc>, window_params = [{transform_indices = @transform_0, window_bounds = array<i64: 1, 1, 32>}, {transform_indices = @transform_1, window_bounds = array<i64: 1, 4, 8, 32>}, {pipeline_mode = #tpu.pipeline_mode<synchronous>, transform_indices = @transform_2, window_bounds = array<i64: 3, 32>}, {pipeline_mode = #tpu.pipeline_mode<synchronous>, transform_indices = @transform_3, window_bounds = array<i64: 1, 32>}, {pipeline_mode = #tpu.pipeline_mode<synchronous>, transform_indices = @transform_4, window_bounds = array<i64: 4, 32>}, {pipeline_mode = #tpu.pipeline_mode<synchronous>, transform_indices = @transform_5, window_bounds = array<i64: 1, 32>}, {pipeline_mode = #tpu.pipeline_mode<synchronous>, transform_indices = @transform_6, window_bounds = array<i64: 1, 32>}, {pipeline_mode = #tpu.pipeline_mode<synchronous>, transform_indices = @transform_7, window_bounds = array<i64: 1, 32>}, {pipeline_mode = #tpu.pipeline_mode<synchronous>, transform_indices = @transform_8, window_bounds = array<i64: 1, 32>}, {pipeline_mode = #tpu.pipeline_mode<synchronous>, transform_indices = @transform_9, window_bounds = array<i64: 32, 32>}, {pipeline_mode = #tpu.pipeline_mode<synchronous>, transform_indices = @transform_10, window_bounds = array<i64: 1, 32>}, {pipeline_mode = #tpu.pipeline_mode<synchronous>, transform_indices = @transform_11, window_bounds = array<i64: 32, 32>}, {pipeline_mode = #tpu.pipeline_mode<synchronous>, transform_indices = @transform_12, window_bounds = array<i64: 1, 32>}, {pipeline_mode = #tpu.pipeline_mode<synchronous>, transform_indices = @transform_13, window_bounds = array<i64: 32, 32>}, {pipeline_mode = #tpu.pipeline_mode<synchronous>, transform_indices = @transform_14, window_bounds = array<i64: 1, 32>}, {pipeline_mode = #tpu.pipeline_mode<synchronous>, transform_indices = @transform_15, window_bounds = array<i64: 32, 32>}, {pipeline_mode = #tpu.pipeline_mode<synchronous>, transform_indices = @transform_16, window_bounds = array<i64: 1, 32>}, {pipeline_mode = #tpu.pipeline_mode<synchronous>, transform_indices = @transform_17, window_bounds = array<i64: 32, 4>}, {pipeline_mode = #tpu.pipeline_mode<synchronous>, transform_indices = @transform_18, window_bounds = array<i64: 4, 32>}, {transform_indices = @transform_19, window_bounds = array<i64: 1, 1, 32>}, {transform_indices = @transform_20, window_bounds = array<i64: 1, 1, 32>}]} {
    %c0_i32 = arith.constant 0 : i32
    %0 = arith.cmpi eq, %arg1, %c0_i32 : i32
    %1 = arith.extui %0 : i1 to i32
    %c0_i32_0 = arith.constant 0 : i32
    %2 = arith.cmpi ne, %1, %c0_i32_0 : i32
    scf.if %2 {
      %c0_62 = arith.constant 0 : index
      %c0_63 = arith.constant 0 : index
      %c0_64 = arith.constant 0 : index
      %111 = vector.load %arg2[%c0_62, %c0_63, %c0_64] : memref<1x1x32xf32, #tpu.memory_space<vmem>>, vector<1x1x32xf32>
      %112 = vector.shape_cast %111 : vector<1x1x32xf32> to vector<1x32xf32>
      %c0_65 = arith.constant 0 : index
      %c0_66 = arith.constant 0 : index
      %113 = vector.load %arg7[%c0_65, %c0_66] : memref<1x32xf32, #tpu.memory_space<vmem>>, vector<1x32xf32>
      %c0_67 = arith.constant 0 : index
      %c0_68 = arith.constant 0 : index
      %114 = vector.load %arg8[%c0_67, %c0_68] : memref<1x32xf32, #tpu.memory_space<vmem>>, vector<1x32xf32>
      %cst_69 = arith.constant dense<0.000000e+00> : vector<1xf32>
      %115 = vector.multi_reduction <add>, %112, %cst_69 [1] : vector<1x32xf32> to vector<1xf32>
      %116 = vector.shape_cast %115 : vector<1xf32> to vector<1x1xf32>
      %cst_70 = arith.constant 3.200000e+01 : f32
      %117 = vector.broadcast %cst_70 : f32 to vector<1x1xf32>
      %118 = arith.divf %116, %117 : vector<1x1xf32>
      %119 = vector.broadcast %118 : vector<1x1xf32> to vector<1x32xf32>
      %120 = arith.subf %112, %119 : vector<1x32xf32>
      %121 = arith.mulf %120, %120 : vector<1x32xf32>
      %cst_71 = arith.constant dense<0.000000e+00> : vector<1xf32>
      %122 = vector.multi_reduction <add>, %121, %cst_71 [1] : vector<1x32xf32> to vector<1xf32>
      %123 = vector.shape_cast %122 : vector<1xf32> to vector<1x1xf32>
      %cst_72 = arith.constant 3.200000e+01 : f32
      %124 = vector.broadcast %cst_72 : f32 to vector<1x1xf32>
      %125 = arith.divf %123, %124 : vector<1x1xf32>
      %126 = vector.broadcast %118 : vector<1x1xf32> to vector<1x32xf32>
      %127 = arith.subf %112, %126 : vector<1x32xf32>
      %cst_73 = arith.constant 9.99999974E-6 : f32
      %128 = vector.broadcast %cst_73 : f32 to vector<1x1xf32>
      %129 = arith.addf %125, %128 : vector<1x1xf32>
      %130 = math.rsqrt %129 : vector<1x1xf32>
      %131 = vector.broadcast %130 : vector<1x1xf32> to vector<1x32xf32>
      %132 = arith.mulf %127, %131 : vector<1x32xf32>
      %133 = arith.mulf %132, %113 : vector<1x32xf32>
      %134 = arith.addf %133, %114 : vector<1x32xf32>
      %c0_74 = arith.constant 0 : index
      %c0_75 = arith.constant 0 : index
      %135 = vector.load %arg11[%c0_74, %c0_75] : memref<32x32xf32, #tpu.memory_space<vmem>>, vector<32x32xf32>
      %cst_76 = arith.constant dense<0.000000e+00> : vector<1x32xf32>
      %136 = tpu.matmul %134, %135, %cst_76 {dimension_numbers = #tpu.dot_dimension_numbers<[1], [0], [0], [1], [0, 0, 1, 1], [], []>} : vector<1x32xf32>, vector<32x32xf32>, vector<1x32xf32> -> vector<1x32xf32>
      %c0_77 = arith.constant 0 : index
      %c0_78 = arith.constant 0 : index
      %137 = vector.load %arg12[%c0_77, %c0_78] : memref<1x32xf32, #tpu.memory_space<vmem>>, vector<1x32xf32>
      %138 = arith.addf %136, %137 : vector<1x32xf32>
      %c0_79 = arith.constant 0 : index
      %c0_80 = arith.constant 0 : index
      %139 = vector.load %arg23[%c0_79, %c0_80] : memref<1x32xf32, #tpu.memory_space<vmem>>, vector<1x32xf32>
      tpu.vector_store %arg23[%c0_79, %c0_80], %138 {strides = array<i32>} : memref<1x32xf32, #tpu.memory_space<vmem>>, vector<1x32xf32>,
      %cst_81 = arith.constant 0xFF800000 : f32
      %140 = vector.broadcast %cst_81 : f32 to vector<1x4xf32>
      %c0_82 = arith.constant 0 : index
      %c0_83 = arith.constant 0 : index
      %141 = vector.load %arg24[%c0_82, %c0_83] : memref<1x4xf32, #tpu.memory_space<vmem>>, vector<1x4xf32>
      tpu.vector_store %arg24[%c0_82, %c0_83], %140 {strides = array<i32>} : memref<1x4xf32, #tpu.memory_space<vmem>>, vector<1x4xf32>,
      %cst_84 = arith.constant 0.000000e+00 : f32
      %142 = vector.broadcast %cst_84 : f32 to vector<1x4xf32>
      %c0_85 = arith.constant 0 : index
      %c0_86 = arith.constant 0 : index
      %143 = vector.load %arg25[%c0_85, %c0_86] : memref<1x4xf32, #tpu.memory_space<vmem>>, vector<1x4xf32>
      tpu.vector_store %arg25[%c0_85, %c0_86], %142 {strides = array<i32>} : memref<1x4xf32, #tpu.memory_space<vmem>>, vector<1x4xf32>,
      %cst_87 = arith.constant 0.000000e+00 : f32
      %144 = vector.broadcast %cst_87 : f32 to vector<1x32xf32>
      %c0_88 = arith.constant 0 : index
      %c0_89 = arith.constant 0 : index
      %145 = vector.load %arg26[%c0_88, %c0_89] : memref<1x32xf32, #tpu.memory_space<vmem>>, vector<1x32xf32>
      tpu.vector_store %arg26[%c0_88, %c0_89], %144 {strides = array<i32>} : memref<1x32xf32, #tpu.memory_space<vmem>>, vector<1x32xf32>,
    } else {
    }
    %c0 = arith.constant 0 : index
    %c0_1 = arith.constant 0 : index
    %c0_2 = arith.constant 0 : index
    %c0_3 = arith.constant 0 : index
    %3 = vector.load %arg3[%c0, %c0_1, %c0_2, %c0_3] : memref<1x4x8x32xf32, #tpu.memory_space<vmem>>, vector<1x4x8x32xf32>
    %4 = vector.shape_cast %3 : vector<1x4x8x32xf32> to vector<4x8x32xf32>
    %5 = vector.shape_cast %4 : vector<4x8x32xf32> to vector<32x32xf32>
    %c0_4 = arith.constant 0 : index
    %c0_5 = arith.constant 0 : index
    %6 = vector.load %arg4[%c0_4, %c0_5] : memref<3x32xf32, #tpu.memory_space<vmem>>, vector<3x32xf32>
    %7 = tpu.iota {dimensions = array<i32: 0>} : vector<32x1xi32>
    %c8_i32 = arith.constant 8 : i32
    %8 = vector.broadcast %c8_i32 : i32 to vector<32x1xi32>
    %9 = arith.cmpi sge, %7, %8 : vector<32x1xi32>
    %c8_i32_6 = arith.constant 8 : i32
    %10 = tpu.dynamic_rotate %5 by %c8_i32_6 dim 0 : vector<32x32xf32>, i32 -> vector<32x32xf32>
    %cst = arith.constant 0.000000e+00 : f32
    %11 = vector.shape_cast %9 : vector<32x1xi1> to vector<32x1xi1>
    %12 = vector.broadcast %11 : vector<32x1xi1> to vector<32x32xi1>
    %13 = vector.broadcast %cst : f32 to vector<32x32xf32>
    %14 = arith.select %12, %10, %13 : vector<32x32xi1>, vector<32x32xf32>
    %c24_i32 = arith.constant 24 : i32
    %15 = vector.broadcast %c24_i32 : i32 to vector<32x1xi32>
    %16 = arith.cmpi slt, %7, %15 : vector<32x1xi32>
    %c24_i32_7 = arith.constant 24 : i32
    %17 = tpu.dynamic_rotate %5 by %c24_i32_7 dim 0 : vector<32x32xf32>, i32 -> vector<32x32xf32>
    %cst_8 = arith.constant 0.000000e+00 : f32
    %18 = vector.shape_cast %16 : vector<32x1xi1> to vector<32x1xi1>
    %19 = vector.broadcast %18 : vector<32x1xi1> to vector<32x32xi1>
    %20 = vector.broadcast %cst_8 : f32 to vector<32x32xf32>
    %21 = arith.select %19, %17, %20 : vector<32x32xi1>, vector<32x32xf32>
    %22 = vector.extract_strided_slice %6 {offsets = [0, 0], sizes = [1, 32], strides = [1, 1]} : vector<3x32xf32> to vector<1x32xf32>
    %23 = vector.broadcast %22 : vector<1x32xf32> to vector<32x32xf32>
    %24 = arith.mulf %14, %23 : vector<32x32xf32>
    %25 = vector.extract_strided_slice %6 {offsets = [1, 0], sizes = [1, 32], strides = [1, 1]} : vector<3x32xf32> to vector<1x32xf32>
    %26 = vector.broadcast %25 : vector<1x32xf32> to vector<32x32xf32>
    %27 = arith.mulf %5, %26 : vector<32x32xf32>
    %28 = arith.addf %24, %27 : vector<32x32xf32>
    %29 = vector.extract_strided_slice %6 {offsets = [2, 0], sizes = [1, 32], strides = [1, 1]} : vector<3x32xf32> to vector<1x32xf32>
    %30 = vector.broadcast %29 : vector<1x32xf32> to vector<32x32xf32>
    %31 = arith.mulf %21, %30 : vector<32x32xf32>
    %32 = arith.addf %28, %31 : vector<32x32xf32>
    %c0_9 = arith.constant 0 : index
    %c0_10 = arith.constant 0 : index
    %33 = vector.load %arg5[%c0_9, %c0_10] : memref<1x32xf32, #tpu.memory_space<vmem>>, vector<1x32xf32>
    %34 = vector.broadcast %33 : vector<1x32xf32> to vector<32x32xf32>
    %35 = arith.addf %32, %34 : vector<32x32xf32>
    %c0_11 = arith.constant 0 : index
    %c0_12 = arith.constant 0 : index
    %36 = vector.load %arg6[%c0_11, %c0_12] : memref<4x32xf32, #tpu.memory_space<vmem>>, vector<4x32xf32>
    %37 = vector.shape_cast %36 : vector<4x32xf32> to vector<4x1x32xf32>
    %38 = vector.broadcast %37 : vector<4x1x32xf32> to vector<4x8x32xf32>
    %39 = arith.addf %4, %38 : vector<4x8x32xf32>
    %40 = vector.shape_cast %39 : vector<4x8x32xf32> to vector<32x32xf32>
    %41 = arith.addf %40, %35 : vector<32x32xf32>
    %c0_13 = arith.constant 0 : index
    %c0_14 = arith.constant 0 : index
    %42 = vector.load %arg9[%c0_13, %c0_14] : memref<1x32xf32, #tpu.memory_space<vmem>>, vector<1x32xf32>
    %c0_15 = arith.constant 0 : index
    %c0_16 = arith.constant 0 : index
    %43 = vector.load %arg10[%c0_15, %c0_16] : memref<1x32xf32, #tpu.memory_space<vmem>>, vector<1x32xf32>
    %cst_17 = arith.constant dense<0.000000e+00> : vector<32xf32>
    %44 = vector.multi_reduction <add>, %41, %cst_17 [1] : vector<32x32xf32> to vector<32xf32>
    %45 = vector.shape_cast %44 : vector<32xf32> to vector<32x1xf32>
    %cst_18 = arith.constant 3.200000e+01 : f32
    %46 = vector.broadcast %cst_18 : f32 to vector<32x1xf32>
    %47 = arith.divf %45, %46 : vector<32x1xf32>
    %48 = vector.broadcast %47 : vector<32x1xf32> to vector<32x32xf32>
    %49 = arith.subf %41, %48 : vector<32x32xf32>
    %50 = arith.mulf %49, %49 : vector<32x32xf32>
    %cst_19 = arith.constant dense<0.000000e+00> : vector<32xf32>
    %51 = vector.multi_reduction <add>, %50, %cst_19 [1] : vector<32x32xf32> to vector<32xf32>
    %52 = vector.shape_cast %51 : vector<32xf32> to vector<32x1xf32>
    %cst_20 = arith.constant 3.200000e+01 : f32
    %53 = vector.broadcast %cst_20 : f32 to vector<32x1xf32>
    %54 = arith.divf %52, %53 : vector<32x1xf32>
    %55 = vector.broadcast %47 : vector<32x1xf32> to vector<32x32xf32>
    %56 = arith.subf %41, %55 : vector<32x32xf32>
    %cst_21 = arith.constant 9.99999974E-6 : f32
    %57 = vector.broadcast %cst_21 : f32 to vector<32x1xf32>
    %58 = arith.addf %54, %57 : vector<32x1xf32>
    %59 = math.rsqrt %58 : vector<32x1xf32>
    %60 = vector.broadcast %59 : vector<32x1xf32> to vector<32x32xf32>
    %61 = arith.mulf %56, %60 : vector<32x32xf32>
    %62 = vector.broadcast %42 : vector<1x32xf32> to vector<32x32xf32>
    %63 = arith.mulf %61, %62 : vector<32x32xf32>
    %64 = vector.broadcast %43 : vector<1x32xf32> to vector<32x32xf32>
    %65 = arith.addf %63, %64 : vector<32x32xf32>
    %c0_22 = arith.constant 0 : index
    %c0_23 = arith.constant 0 : index
    %66 = vector.load %arg13[%c0_22, %c0_23] : memref<32x32xf32, #tpu.memory_space<vmem>>, vector<32x32xf32>
    %cst_24 = arith.constant dense<0.000000e+00> : vector<32x32xf32>
    %67 = tpu.matmul %65, %66, %cst_24 {dimension_numbers = #tpu.dot_dimension_numbers<[1], [0], [0], [1], [0, 0, 1, 1], [], []>} : vector<32x32xf32>, vector<32x32xf32>, vector<32x32xf32> -> vector<32x32xf32>
    %c0_25 = arith.constant 0 : index
    %c0_26 = arith.constant 0 : index
    %68 = vector.load %arg14[%c0_25, %c0_26] : memref<1x32xf32, #tpu.memory_space<vmem>>, vector<1x32xf32>
    %69 = vector.broadcast %68 : vector<1x32xf32> to vector<32x32xf32>
    %70 = arith.addf %67, %69 : vector<32x32xf32>
    %c0_27 = arith.constant 0 : index
    %c0_28 = arith.constant 0 : index
    %71 = vector.load %arg15[%c0_27, %c0_28] : memref<32x32xf32, #tpu.memory_space<vmem>>, vector<32x32xf32>
    %cst_29 = arith.constant dense<0.000000e+00> : vector<32x32xf32>
    %72 = tpu.matmul %65, %71, %cst_29 {dimension_numbers = #tpu.dot_dimension_numbers<[1], [0], [0], [1], [0, 0, 1, 1], [], []>} : vector<32x32xf32>, vector<32x32xf32>, vector<32x32xf32> -> vector<32x32xf32>
    %c0_30 = arith.constant 0 : index
    %c0_31 = arith.constant 0 : index
    %73 = vector.load %arg16[%c0_30, %c0_31] : memref<1x32xf32, #tpu.memory_space<vmem>>, vector<1x32xf32>
    %74 = vector.broadcast %73 : vector<1x32xf32> to vector<32x32xf32>
    %75 = arith.addf %72, %74 : vector<32x32xf32>
    %c0_32 = arith.constant 0 : index
    %c0_33 = arith.constant 0 : index
    %76 = vector.load %arg23[%c0_32, %c0_33] : memref<1x32xf32, #tpu.memory_space<vmem>>, vector<1x32xf32>
    %77 = vector.broadcast %76 : vector<1x32xf32> to vector<32x32xf32>
    %78 = arith.mulf %70, %77 : vector<32x32xf32>
    %c0_34 = arith.constant 0 : index
    %c0_35 = arith.constant 0 : index
    %79 = vector.load %arg19[%c0_34, %c0_35] : memref<32x4xf32, #tpu.memory_space<vmem>>, vector<32x4xf32>
    %cst_36 = arith.constant dense<0.000000e+00> : vector<32x4xf32>
    %80 = tpu.matmul %78, %79, %cst_36 {dimension_numbers = #tpu.dot_dimension_numbers<[1], [0], [0], [1], [0, 0, 1, 1], [], []>} : vector<32x32xf32>, vector<32x4xf32>, vector<32x4xf32> -> vector<32x4xf32>
    %c0_37 = arith.constant 0 : index
    %c0_38 = arith.constant 0 : index
    %c0_39 = arith.constant 0 : index
    %81 = vector.load %arg21[%c0_37, %c0_38, %c0_39] : memref<1x1x32xf32, #tpu.memory_space<vmem>>, vector<1x1x32xf32>
    %82 = vector.shape_cast %81 : vector<1x1x32xf32> to vector<1x32xf32>
    %c0_40 = arith.constant 0 : index
    %c0_41 = arith.constant 0 : index
    %83 = vector.load %arg24[%c0_40, %c0_41] : memref<1x4xf32, #tpu.memory_space<vmem>>, vector<1x4xf32>
    %cst_42 = arith.constant dense<0xFF800000> : vector<4xf32>
    %84 = vector.multi_reduction <maximumf>, %80, %cst_42 [0] : vector<32x4xf32> to vector<4xf32>
    %85 = vector.shape_cast %84 : vector<4xf32> to vector<1x4xf32>
    %86 = arith.maximumf %83, %85 : vector<1x4xf32>
    %87 = arith.subf %83, %86 : vector<1x4xf32>
    %88 = math.exp %87 : vector<1x4xf32>
    %89 = vector.broadcast %86 : vector<1x4xf32> to vector<32x4xf32>
    %90 = arith.subf %80, %89 : vector<32x4xf32>
    %91 = math.exp %90 : vector<32x4xf32>
    %c0_43 = arith.constant 0 : index
    %c0_44 = arith.constant 0 : index
    %92 = vector.load %arg25[%c0_43, %c0_44] : memref<1x4xf32, #tpu.memory_space<vmem>>, vector<1x4xf32>
    %93 = arith.mulf %88, %92 : vector<1x4xf32>
    %cst_45 = arith.constant dense<0.000000e+00> : vector<1x4xf32>
    %94 = tpu.matmul %82, %91, %cst_45 {dimension_numbers = #tpu.dot_dimension_numbers<[1], [0], [0], [1], [0, 0, 1, 1], [], []>} : vector<1x32xf32>, vector<32x4xf32>, vector<1x4xf32> -> vector<1x4xf32>
    %95 = arith.addf %93, %94 : vector<1x4xf32>
    %c0_46 = arith.constant 0 : index
    %c0_47 = arith.constant 0 : index
    %96 = vector.load %arg25[%c0_46, %c0_47] : memref<1x4xf32, #tpu.memory_space<vmem>>, vector<1x4xf32>
    tpu.vector_store %arg25[%c0_46, %c0_47], %95 {strides = array<i32>} : memref<1x4xf32, #tpu.memory_space<vmem>>, vector<1x4xf32>,
    %c0_48 = arith.constant 0 : index
    %c0_49 = arith.constant 0 : index
    %97 = vector.load %arg20[%c0_48, %c0_49] : memref<4x32xf32, #tpu.memory_space<vmem>>, vector<4x32xf32>
    %cst_50 = arith.constant dense<0.000000e+00> : vector<32x32xf32>
    %98 = tpu.matmul %91, %97, %cst_50 {dimension_numbers = #tpu.dot_dimension_numbers<[1], [0], [0], [1], [0, 0, 1, 1], [], []>} : vector<32x4xf32>, vector<4x32xf32>, vector<32x32xf32> -> vector<32x32xf32>
    %c0_51 = arith.constant 0 : index
    %c0_52 = arith.constant 0 : index
    %99 = vector.load %arg20[%c0_51, %c0_52] : memref<4x32xf32, #tpu.memory_space<vmem>>, vector<4x32xf32>
    %cst_53 = arith.constant dense<0.000000e+00> : vector<1x32xf32>
    %100 = tpu.matmul %88, %99, %cst_53 {dimension_numbers = #tpu.dot_dimension_numbers<[1], [0], [0], [1], [0, 0, 1, 1], [], []>} : vector<1x4xf32>, vector<4x32xf32>, vector<1x32xf32> -> vector<1x32xf32>
    %c0_54 = arith.constant 0 : index
    %c0_55 = arith.constant 0 : index
    %101 = vector.load %arg26[%c0_54, %c0_55] : memref<1x32xf32, #tpu.memory_space<vmem>>, vector<1x32xf32>
    %102 = arith.mulf %100, %101 : vector<1x32xf32>
    %103 = arith.mulf %98, %75 : vector<32x32xf32>
    %cst_56 = arith.constant dense<0.000000e+00> : vector<1x32xf32>
    %104 = tpu.matmul %82, %103, %cst_56 {dimension_numbers = #tpu.dot_dimension_numbers<[1], [0], [0], [1], [0, 0, 1, 1], [], []>} : vector<1x32xf32>, vector<32x32xf32>, vector<1x32xf32> -> vector<1x32xf32>
    %105 = arith.addf %102, %104 : vector<1x32xf32>
    %c0_57 = arith.constant 0 : index
    %c0_58 = arith.constant 0 : index
    %106 = vector.load %arg26[%c0_57, %c0_58] : memref<1x32xf32, #tpu.memory_space<vmem>>, vector<1x32xf32>
    tpu.vector_store %arg26[%c0_57, %c0_58], %105 {strides = array<i32>} : memref<1x32xf32, #tpu.memory_space<vmem>>, vector<1x32xf32>,
    %c0_59 = arith.constant 0 : index
    %c0_60 = arith.constant 0 : index
    %107 = vector.load %arg24[%c0_59, %c0_60] : memref<1x4xf32, #tpu.memory_space<vmem>>, vector<1x4xf32>
    tpu.vector_store %arg24[%c0_59, %c0_60], %86 {strides = array<i32>} : memref<1x4xf32, #tpu.memory_space<vmem>>, vector<1x4xf32>,
    %c1_i32 = arith.constant 1 : i32
    %108 = arith.cmpi eq, %arg1, %c1_i32 : i32
    %109 = arith.extui %108 : i1 to i32
    %c0_i32_61 = arith.constant 0 : i32
    %110 = arith.cmpi ne, %109, %c0_i32_61 : i32
    scf.if %110 {
      %c0_62 = arith.constant 0 : index
      %c0_63 = arith.constant 0 : index
      %111 = vector.load %arg25[%c0_62, %c0_63] : memref<1x4xf32, #tpu.memory_space<vmem>>, vector<1x4xf32>
      %c0_64 = arith.constant 0 : index
      %c0_65 = arith.constant 0 : index
      %112 = vector.load %arg20[%c0_64, %c0_65] : memref<4x32xf32, #tpu.memory_space<vmem>>, vector<4x32xf32>
      %cst_66 = arith.constant dense<0.000000e+00> : vector<1x32xf32>
      %113 = tpu.matmul %111, %112, %cst_66 {dimension_numbers = #tpu.dot_dimension_numbers<[1], [0], [0], [1], [0, 0, 1, 1], [], []>} : vector<1x4xf32>, vector<4x32xf32>, vector<1x32xf32> -> vector<1x32xf32>
      %c0_67 = arith.constant 0 : index
      %c0_68 = arith.constant 0 : index
      %114 = vector.load %arg26[%c0_67, %c0_68] : memref<1x32xf32, #tpu.memory_space<vmem>>, vector<1x32xf32>
      %115 = arith.divf %114, %113 : vector<1x32xf32>
      %c0_69 = arith.constant 0 : index
      %c0_70 = arith.constant 0 : index
      %116 = vector.load %arg17[%c0_69, %c0_70] : memref<32x32xf32, #tpu.memory_space<vmem>>, vector<32x32xf32>
      %cst_71 = arith.constant dense<0.000000e+00> : vector<1x32xf32>
      %117 = tpu.matmul %115, %116, %cst_71 {dimension_numbers = #tpu.dot_dimension_numbers<[1], [0], [0], [1], [0, 0, 1, 1], [], []>} : vector<1x32xf32>, vector<32x32xf32>, vector<1x32xf32> -> vector<1x32xf32>
      %c0_72 = arith.constant 0 : index
      %c0_73 = arith.constant 0 : index
      %118 = vector.load %arg18[%c0_72, %c0_73] : memref<1x32xf32, #tpu.memory_space<vmem>>, vector<1x32xf32>
      %119 = arith.addf %117, %118 : vector<1x32xf32>
      %c0_74 = arith.constant 0 : index
      %c0_75 = arith.constant 0 : index
      %c0_76 = arith.constant 0 : index
      %120 = vector.load %arg2[%c0_74, %c0_75, %c0_76] : memref<1x1x32xf32, #tpu.memory_space<vmem>>, vector<1x1x32xf32>
      %121 = vector.shape_cast %120 : vector<1x1x32xf32> to vector<1x32xf32>
      %122 = arith.addf %121, %119 : vector<1x32xf32>
      %123 = vector.shape_cast %122 : vector<1x32xf32> to vector<1x1x32xf32>
      %c0_77 = arith.constant 0 : index
      %c0_78 = arith.constant 0 : index
      %c0_79 = arith.constant 0 : index
      %124 = vector.load %arg22[%c0_77, %c0_78, %c0_79] : memref<1x1x32xf32, #tpu.memory_space<vmem>>, vector<1x1x32xf32>
      tpu.vector_store %arg22[%c0_77, %c0_78, %c0_79], %123 {strides = array<i32>} : memref<1x1x32xf32, #tpu.memory_space<vmem>>, vector<1x1x32xf32>,
    } else {
    }
    return
  }
  func.func @transform_0(%arg0: i32, %arg1: i32) -> (i32, i32, i32) {
    %c0_i32 = arith.constant 0 : i32
    %c0_i32_0 = arith.constant 0 : i32
    %c0_i32_1 = arith.constant 0 : i32
    return %arg0, %c0_i32, %c0_i32_0 : i32, i32, i32
  }
  func.func @transform_1(%arg0: i32, %arg1: i32) -> (i32, i32, i32, i32) {
    %c0_i32 = arith.constant 0 : i32
    %c0_i32_0 = arith.constant 0 : i32
    %c0_i32_1 = arith.constant 0 : i32
    return %arg0, %c0_i32, %arg1, %c0_i32_0 : i32, i32, i32, i32
  }
  func.func @transform_2(%arg0: i32, %arg1: i32) -> (i32, i32) {
    %c0_i32 = arith.constant 0 : i32
    %c0_i32_0 = arith.constant 0 : i32
    %c0_i32_1 = arith.constant 0 : i32
    return %c0_i32, %c0_i32_0 : i32, i32
  }
  func.func @transform_3(%arg0: i32, %arg1: i32) -> (i32, i32) {
    %c0_i32 = arith.constant 0 : i32
    %c0_i32_0 = arith.constant 0 : i32
    %c0_i32_1 = arith.constant 0 : i32
    return %c0_i32, %c0_i32_0 : i32, i32
  }
  func.func @transform_4(%arg0: i32, %arg1: i32) -> (i32, i32) {
    %c0_i32 = arith.constant 0 : i32
    %c0_i32_0 = arith.constant 0 : i32
    %c0_i32_1 = arith.constant 0 : i32
    return %c0_i32, %c0_i32_0 : i32, i32
  }
  func.func @transform_5(%arg0: i32, %arg1: i32) -> (i32, i32) {
    %c0_i32 = arith.constant 0 : i32
    %c0_i32_0 = arith.constant 0 : i32
    %c0_i32_1 = arith.constant 0 : i32
    return %c0_i32, %c0_i32_0 : i32, i32
  }
  func.func @transform_6(%arg0: i32, %arg1: i32) -> (i32, i32) {
    %c0_i32 = arith.constant 0 : i32
    %c0_i32_0 = arith.constant 0 : i32
    %c0_i32_1 = arith.constant 0 : i32
    return %c0_i32, %c0_i32_0 : i32, i32
  }
  func.func @transform_7(%arg0: i32, %arg1: i32) -> (i32, i32) {
    %c0_i32 = arith.constant 0 : i32
    %c0_i32_0 = arith.constant 0 : i32
    %c0_i32_1 = arith.constant 0 : i32
    return %c0_i32, %c0_i32_0 : i32, i32
  }
  func.func @transform_8(%arg0: i32, %arg1: i32) -> (i32, i32) {
    %c0_i32 = arith.constant 0 : i32
    %c0_i32_0 = arith.constant 0 : i32
    %c0_i32_1 = arith.constant 0 : i32
    return %c0_i32, %c0_i32_0 : i32, i32
  }
  func.func @transform_9(%arg0: i32, %arg1: i32) -> (i32, i32) {
    %c0_i32 = arith.constant 0 : i32
    %c0_i32_0 = arith.constant 0 : i32
    %c0_i32_1 = arith.constant 0 : i32
    return %c0_i32, %c0_i32_0 : i32, i32
  }
  func.func @transform_10(%arg0: i32, %arg1: i32) -> (i32, i32) {
    %c0_i32 = arith.constant 0 : i32
    %c0_i32_0 = arith.constant 0 : i32
    %c0_i32_1 = arith.constant 0 : i32
    return %c0_i32, %c0_i32_0 : i32, i32
  }
  func.func @transform_11(%arg0: i32, %arg1: i32) -> (i32, i32) {
    %c0_i32 = arith.constant 0 : i32
    %c0_i32_0 = arith.constant 0 : i32
    %c0_i32_1 = arith.constant 0 : i32
    return %c0_i32, %c0_i32_0 : i32, i32
  }
  func.func @transform_12(%arg0: i32, %arg1: i32) -> (i32, i32) {
    %c0_i32 = arith.constant 0 : i32
    %c0_i32_0 = arith.constant 0 : i32
    %c0_i32_1 = arith.constant 0 : i32
    return %c0_i32, %c0_i32_0 : i32, i32
  }
  func.func @transform_13(%arg0: i32, %arg1: i32) -> (i32, i32) {
    %c0_i32 = arith.constant 0 : i32
    %c0_i32_0 = arith.constant 0 : i32
    %c0_i32_1 = arith.constant 0 : i32
    return %c0_i32, %c0_i32_0 : i32, i32
  }
  func.func @transform_14(%arg0: i32, %arg1: i32) -> (i32, i32) {
    %c0_i32 = arith.constant 0 : i32
    %c0_i32_0 = arith.constant 0 : i32
    %c0_i32_1 = arith.constant 0 : i32
    return %c0_i32, %c0_i32_0 : i32, i32
  }
  func.func @transform_15(%arg0: i32, %arg1: i32) -> (i32, i32) {
    %c0_i32 = arith.constant 0 : i32
    %c0_i32_0 = arith.constant 0 : i32
    %c0_i32_1 = arith.constant 0 : i32
    return %c0_i32, %c0_i32_0 : i32, i32
  }
  func.func @transform_16(%arg0: i32, %arg1: i32) -> (i32, i32) {
    %c0_i32 = arith.constant 0 : i32
    %c0_i32_0 = arith.constant 0 : i32
    %c0_i32_1 = arith.constant 0 : i32
    return %c0_i32, %c0_i32_0 : i32, i32
  }
  func.func @transform_17(%arg0: i32, %arg1: i32) -> (i32, i32) {
    %c0_i32 = arith.constant 0 : i32
    %c0_i32_0 = arith.constant 0 : i32
    %c0_i32_1 = arith.constant 0 : i32
    return %c0_i32, %c0_i32_0 : i32, i32
  }
  func.func @transform_18(%arg0: i32, %arg1: i32) -> (i32, i32) {
    %c0_i32 = arith.constant 0 : i32
    %c0_i32_0 = arith.constant 0 : i32
    %c0_i32_1 = arith.constant 0 : i32
    return %c0_i32, %c0_i32_0 : i32, i32
  }
  func.func @transform_19(%arg0: i32, %arg1: i32) -> (i32, i32, i32) {
    %c0_i32 = arith.constant 0 : i32
    %c0_i32_0 = arith.constant 0 : i32
    %c0_i32_1 = arith.constant 0 : i32
    return %arg1, %c0_i32, %c0_i32_0 : i32, i32, i32
  }
  func.func @transform_20(%arg0: i32, %arg1: i32) -> (i32, i32, i32) {
    %c0_i32 = arith.constant 0 : i32
    %c0_i32_0 = arith.constant 0 : i32
    %c0_i32_1 = arith.constant 0 : i32
    return %arg0, %c0_i32, %c0_i32_0 : i32, i32, i32
  }
}

module attributes {stable_mosaic.version = 11 : i64} {
  func.func @_cross_attn_layer_kernel(%arg0: i32, %arg1: i32, %arg2: memref<1x1x32xf32, #tpu.memory_space<vmem>>, %arg3: memref<1x4x8x32xf32, #tpu.memory_space<vmem>>, %arg4: memref<3x32xf32, #tpu.memory_space<vmem>>, %arg5: memref<1x32xf32, #tpu.memory_space<vmem>>, %arg6: memref<4x32xf32, #tpu.memory_space<vmem>>, %arg7: memref<1x32xf32, #tpu.memory_space<vmem>>, %arg8: memref<1x32xf32, #tpu.memory_space<vmem>>, %arg9: memref<1x32xf32, #tpu.memory_space<vmem>>, %arg10: memref<1x32xf32, #tpu.memory_space<vmem>>, %arg11: memref<32x32xf32, #tpu.memory_space<vmem>>, %arg12: memref<1x32xf32, #tpu.memory_space<vmem>>, %arg13: memref<32x32xf32, #tpu.memory_space<vmem>>, %arg14: memref<1x32xf32, #tpu.memory_space<vmem>>, %arg15: memref<32x32xf32, #tpu.memory_space<vmem>>, %arg16: memref<1x32xf32, #tpu.memory_space<vmem>>, %arg17: memref<32x32xf32, #tpu.memory_space<vmem>>, %arg18: memref<1x32xf32, #tpu.memory_space<vmem>>, %arg19: memref<32x4xf32, #tpu.memory_space<vmem>>, %arg20: memref<4x32xf32, #tpu.memory_space<vmem>>, %arg21: memref<1x1x32xf32, #tpu.memory_space<vmem>>, %arg22: memref<1x1x32xf32, #tpu.memory_space<vmem>>, %arg23: memref<1x32xf32, #tpu.memory_space<vmem>>, %arg24: memref<1x4xf32, #tpu.memory_space<vmem>>, %arg25: memref<1x4xf32, #tpu.memory_space<vmem>>, %arg26: memref<1x32xf32, #tpu.memory_space<vmem>>) attributes {dimension_semantics = [#tpu.dimension_semantics<parallel>, #tpu.dimension_semantics<arbitrary>], iteration_bounds = array<i64: 2, 2>, scalar_prefetch = 0 : i64, scratch_operands = 4 : i64, tpu.core_type = #tpu.core_type<tc>, window_params = [{transform_indices = @transform_0, window_bounds = array<i64: 1, 1, 32>}, {transform_indices = @transform_1, window_bounds = array<i64: 1, 4, 8, 32>}, {pipeline_mode = #tpu.pipeline_mode<synchronous>, transform_indices = @transform_2, window_bounds = array<i64: 3, 32>}, {pipeline_mode = #tpu.pipeline_mode<synchronous>, transform_indices = @transform_3, window_bounds = array<i64: 1, 32>}, {pipeline_mode = #tpu.pipeline_mode<synchronous>, transform_indices = @transform_4, window_bounds = array<i64: 4, 32>}, {pipeline_mode = #tpu.pipeline_mode<synchronous>, transform_indices = @transform_5, window_bounds = array<i64: 1, 32>}, {pipeline_mode = #tpu.pipeline_mode<synchronous>, transform_indices = @transform_6, window_bounds = array<i64: 1, 32>}, {pipeline_mode = #tpu.pipeline_mode<synchronous>, transform_indices = @transform_7, window_bounds = array<i64: 1, 32>}, {pipeline_mode = #tpu.pipeline_mode<synchronous>, transform_indices = @transform_8, window_bounds = array<i64: 1, 32>}, {pipeline_mode = #tpu.pipeline_mode<synchronous>, transform_indices = @transform_9, window_bounds = array<i64: 32, 32>}, {pipeline_mode = #tpu.pipeline_mode<synchronous>, transform_indices = @transform_10, window_bounds = array<i64: 1, 32>}, {pipeline_mode = #tpu.pipeline_mode<synchronous>, transform_indices = @transform_11, window_bounds = array<i64: 32, 32>}, {pipeline_mode = #tpu.pipeline_mode<synchronous>, transform_indices = @transform_12, window_bounds = array<i64: 1, 32>}, {pipeline_mode = #tpu.pipeline_mode<synchronous>, transform_indices = @transform_13, window_bounds = array<i64: 32, 32>}, {pipeline_mode = #tpu.pipeline_mode<synchronous>, transform_indices = @transform_14, window_bounds = array<i64: 1, 32>}, {pipeline_mode = #tpu.pipeline_mode<synchronous>, transform_indices = @transform_15, window_bounds = array<i64: 32, 32>}, {pipeline_mode = #tpu.pipeline_mode<synchronous>, transform_indices = @transform_16, window_bounds = array<i64: 1, 32>}, {pipeline_mode = #tpu.pipeline_mode<synchronous>, transform_indices = @transform_17, window_bounds = array<i64: 32, 4>}, {pipeline_mode = #tpu.pipeline_mode<synchronous>, transform_indices = @transform_18, window_bounds = array<i64: 4, 32>}, {transform_indices = @transform_19, window_bounds = array<i64: 1, 1, 32>}, {transform_indices = @transform_20, window_bounds = array<i64: 1, 1, 32>}]} {
    %c0_i32 = arith.constant 0 : i32
    %0 = arith.cmpi eq, %arg1, %c0_i32 : i32
    %1 = arith.extui %0 : i1 to i32
    %c0_i32_0 = arith.constant 0 : i32
    %2 = arith.cmpi ne, %1, %c0_i32_0 : i32
    scf.if %2 {
      %c0_62 = arith.constant 0 : index
      %c0_63 = arith.constant 0 : index
      %c0_64 = arith.constant 0 : index
      %111 = vector.load %arg2[%c0_62, %c0_63, %c0_64] : memref<1x1x32xf32, #tpu.memory_space<vmem>>, vector<1x1x32xf32>
      %112 = vector.shape_cast %111 : vector<1x1x32xf32> to vector<1x32xf32>
      %c0_65 = arith.constant 0 : index
      %c0_66 = arith.constant 0 : index
      %113 = vector.load %arg7[%c0_65, %c0_66] : memref<1x32xf32, #tpu.memory_space<vmem>>, vector<1x32xf32>
      %c0_67 = arith.constant 0 : index
      %c0_68 = arith.constant 0 : index
      %114 = vector.load %arg8[%c0_67, %c0_68] : memref<1x32xf32, #tpu.memory_space<vmem>>, vector<1x32xf32>
      %cst_69 = arith.constant dense<0.000000e+00> : vector<1xf32>
      %115 = vector.multi_reduction <add>, %112, %cst_69 [1] : vector<1x32xf32> to vector<1xf32>
      %116 = vector.shape_cast %115 : vector<1xf32> to vector<1x1xf32>
      %cst_70 = arith.constant 3.200000e+01 : f32
      %117 = vector.broadcast %cst_70 : f32 to vector<1x1xf32>
      %118 = arith.divf %116, %117 : vector<1x1xf32>
      %119 = vector.broadcast %118 : vector<1x1xf32> to vector<1x32xf32>
      %120 = arith.subf %112, %119 : vector<1x32xf32>
      %121 = arith.mulf %120, %120 : vector<1x32xf32>
      %cst_71 = arith.constant dense<0.000000e+00> : vector<1xf32>
      %122 = vector.multi_reduction <add>, %121, %cst_71 [1] : vector<1x32xf32> to vector<1xf32>
      %123 = vector.shape_cast %122 : vector<1xf32> to vector<1x1xf32>
      %cst_72 = arith.constant 3.200000e+01 : f32
      %124 = vector.broadcast %cst_72 : f32 to vector<1x1xf32>
      %125 = arith.divf %123, %124 : vector<1x1xf32>
      %126 = vector.broadcast %118 : vector<1x1xf32> to vector<1x32xf32>
      %127 = arith.subf %112, %126 : vector<1x32xf32>
      %cst_73 = arith.constant 9.99999974E-6 : f32
      %128 = vector.broadcast %cst_73 : f32 to vector<1x1xf32>
      %129 = arith.addf %125, %128 : vector<1x1xf32>
      %130 = math.rsqrt %129 : vector<1x1xf32>
      %131 = vector.broadcast %130 : vector<1x1xf32> to vector<1x32xf32>
      %132 = arith.mulf %127, %131 : vector<1x32xf32>
      %133 = arith.mulf %132, %113 : vector<1x32xf32>
      %134 = arith.addf %133, %114 : vector<1x32xf32>
      %c0_74 = arith.constant 0 : index
      %c0_75 = arith.constant 0 : index
      %135 = vector.load %arg11[%c0_74, %c0_75] : memref<32x32xf32, #tpu.memory_space<vmem>>, vector<32x32xf32>
      %cst_76 = arith.constant dense<0.000000e+00> : vector<1x32xf32>
      %136 = tpu.matmul %134, %135, %cst_76 {dimension_numbers = #tpu.dot_dimension_numbers<[1], [0], [0], [1], [0, 0, 1, 1], [], []>} : vector<1x32xf32>, vector<32x32xf32>, vector<1x32xf32> -> vector<1x32xf32>
      %c0_77 = arith.constant 0 : index
      %c0_78 = arith.constant 0 : index
      %137 = vector.load %arg12[%c0_77, %c0_78] : memref<1x32xf32, #tpu.memory_space<vmem>>, vector<1x32xf32>
      %138 = arith.addf %136, %137 : vector<1x32xf32>
      %c0_79 = arith.constant 0 : index
      %c0_80 = arith.constant 0 : index
      %139 = vector.load %arg23[%c0_79, %c0_80] : memref<1x32xf32, #tpu.memory_space<vmem>>, vector<1x32xf32>
      tpu.vector_store %arg23[%c0_79, %c0_80], %138 {strides = array<i32>} : memref<1x32xf32, #tpu.memory_space<vmem>>, vector<1x32xf32>,
      %cst_81 = arith.constant 0xFF800000 : f32
      %140 = vector.broadcast %cst_81 : f32 to vector<1x4xf32>
      %c0_82 = arith.constant 0 : index
      %c0_83 = arith.constant 0 : index
      %141 = vector.load %arg24[%c0_82, %c0_83] : memref<1x4xf32, #tpu.memory_space<vmem>>, vector<1x4xf32>
      tpu.vector_store %arg24[%c0_82, %c0_83], %140 {strides = array<i32>} : memref<1x4xf32, #tpu.memory_space<vmem>>, vector<1x4xf32>,
      %cst_84 = arith.constant 0.000000e+00 : f32
      %142 = vector.broadcast %cst_84 : f32 to vector<1x4xf32>
      %c0_85 = arith.constant 0 : index
      %c0_86 = arith.constant 0 : index
      %143 = vector.load %arg25[%c0_85, %c0_86] : memref<1x4xf32, #tpu.memory_space<vmem>>, vector<1x4xf32>
      tpu.vector_store %arg25[%c0_85, %c0_86], %142 {strides = array<i32>} : memref<1x4xf32, #tpu.memory_space<vmem>>, vector<1x4xf32>,
      %cst_87 = arith.constant 0.000000e+00 : f32
      %144 = vector.broadcast %cst_87 : f32 to vector<1x32xf32>
      %c0_88 = arith.constant 0 : index
      %c0_89 = arith.constant 0 : index
      %145 = vector.load %arg26[%c0_88, %c0_89] : memref<1x32xf32, #tpu.memory_space<vmem>>, vector<1x32xf32>
      tpu.vector_store %arg26[%c0_88, %c0_89], %144 {strides = array<i32>} : memref<1x32xf32, #tpu.memory_space<vmem>>, vector<1x32xf32>,
    } else {
    }
    %c0 = arith.constant 0 : index
    %c0_1 = arith.constant 0 : index
    %c0_2 = arith.constant 0 : index
    %c0_3 = arith.constant 0 : index
    %3 = vector.load %arg3[%c0, %c0_1, %c0_2, %c0_3] : memref<1x4x8x32xf32, #tpu.memory_space<vmem>>, vector<1x4x8x32xf32>
    %4 = vector.shape_cast %3 : vector<1x4x8x32xf32> to vector<4x8x32xf32>
    %5 = vector.shape_cast %4 : vector<4x8x32xf32> to vector<32x32xf32>
    %c0_4 = arith.constant 0 : index
    %c0_5 = arith.constant 0 : index
    %6 = vector.load %arg4[%c0_4, %c0_5] : memref<3x32xf32, #tpu.memory_space<vmem>>, vector<3x32xf32>
    %7 = tpu.iota {dimensions = array<i32: 0>} : vector<32x1xi32>
    %c8_i32 = arith.constant 8 : i32
    %8 = vector.broadcast %c8_i32 : i32 to vector<32x1xi32>
    %9 = arith.cmpi sge, %7, %8 : vector<32x1xi32>
    %c8_i32_6 = arith.constant 8 : i32
    %10 = tpu.dynamic_rotate %5 by %c8_i32_6 dim 0 : vector<32x32xf32>, i32 -> vector<32x32xf32>
    %cst = arith.constant 0.000000e+00 : f32
    %11 = vector.shape_cast %9 : vector<32x1xi1> to vector<32x1xi1>
    %12 = vector.broadcast %11 : vector<32x1xi1> to vector<32x32xi1>
    %13 = vector.broadcast %cst : f32 to vector<32x32xf32>
    %14 = arith.select %12, %10, %13 : vector<32x32xi1>, vector<32x32xf32>
    %c24_i32 = arith.constant 24 : i32
    %15 = vector.broadcast %c24_i32 : i32 to vector<32x1xi32>
    %16 = arith.cmpi slt, %7, %15 : vector<32x1xi32>
    %c24_i32_7 = arith.constant 24 : i32
    %17 = tpu.dynamic_rotate %5 by %c24_i32_7 dim 0 : vector<32x32xf32>, i32 -> vector<32x32xf32>
    %cst_8 = arith.constant 0.000000e+00 : f32
    %18 = vector.shape_cast %16 : vector<32x1xi1> to vector<32x1xi1>
    %19 = vector.broadcast %18 : vector<32x1xi1> to vector<32x32xi1>
    %20 = vector.broadcast %cst_8 : f32 to vector<32x32xf32>
    %21 = arith.select %19, %17, %20 : vector<32x32xi1>, vector<32x32xf32>
    %22 = vector.extract_strided_slice %6 {offsets = [0, 0], sizes = [1, 32], strides = [1, 1]} : vector<3x32xf32> to vector<1x32xf32>
    %23 = vector.broadcast %22 : vector<1x32xf32> to vector<32x32xf32>
    %24 = arith.mulf %14, %23 : vector<32x32xf32>
    %25 = vector.extract_strided_slice %6 {offsets = [1, 0], sizes = [1, 32], strides = [1, 1]} : vector<3x32xf32> to vector<1x32xf32>
    %26 = vector.broadcast %25 : vector<1x32xf32> to vector<32x32xf32>
    %27 = arith.mulf %5, %26 : vector<32x32xf32>
    %28 = arith.addf %24, %27 : vector<32x32xf32>
    %29 = vector.extract_strided_slice %6 {offsets = [2, 0], sizes = [1, 32], strides = [1, 1]} : vector<3x32xf32> to vector<1x32xf32>
    %30 = vector.broadcast %29 : vector<1x32xf32> to vector<32x32xf32>
    %31 = arith.mulf %21, %30 : vector<32x32xf32>
    %32 = arith.addf %28, %31 : vector<32x32xf32>
    %c0_9 = arith.constant 0 : index
    %c0_10 = arith.constant 0 : index
    %33 = vector.load %arg5[%c0_9, %c0_10] : memref<1x32xf32, #tpu.memory_space<vmem>>, vector<1x32xf32>
    %34 = vector.broadcast %33 : vector<1x32xf32> to vector<32x32xf32>
    %35 = arith.addf %32, %34 : vector<32x32xf32>
    %c0_11 = arith.constant 0 : index
    %c0_12 = arith.constant 0 : index
    %36 = vector.load %arg6[%c0_11, %c0_12] : memref<4x32xf32, #tpu.memory_space<vmem>>, vector<4x32xf32>
    %37 = vector.shape_cast %36 : vector<4x32xf32> to vector<4x1x32xf32>
    %38 = vector.broadcast %37 : vector<4x1x32xf32> to vector<4x8x32xf32>
    %39 = arith.addf %4, %38 : vector<4x8x32xf32>
    %40 = vector.shape_cast %39 : vector<4x8x32xf32> to vector<32x32xf32>
    %41 = arith.addf %40, %35 : vector<32x32xf32>
    %c0_13 = arith.constant 0 : index
    %c0_14 = arith.constant 0 : index
    %42 = vector.load %arg9[%c0_13, %c0_14] : memref<1x32xf32, #tpu.memory_space<vmem>>, vector<1x32xf32>
    %c0_15 = arith.constant 0 : index
    %c0_16 = arith.constant 0 : index
    %43 = vector.load %arg10[%c0_15, %c0_16] : memref<1x32xf32, #tpu.memory_space<vmem>>, vector<1x32xf32>
    %cst_17 = arith.constant dense<0.000000e+00> : vector<32xf32>
    %44 = vector.multi_reduction <add>, %41, %cst_17 [1] : vector<32x32xf32> to vector<32xf32>
    %45 = vector.shape_cast %44 : vector<32xf32> to vector<32x1xf32>
    %cst_18 = arith.constant 3.200000e+01 : f32
    %46 = vector.broadcast %cst_18 : f32 to vector<32x1xf32>
    %47 = arith.divf %45, %46 : vector<32x1xf32>
    %48 = vector.broadcast %47 : vector<32x1xf32> to vector<32x32xf32>
    %49 = arith.subf %41, %48 : vector<32x32xf32>
    %50 = arith.mulf %49, %49 : vector<32x32xf32>
    %cst_19 = arith.constant dense<0.000000e+00> : vector<32xf32>
    %51 = vector.multi_reduction <add>, %50, %cst_19 [1] : vector<32x32xf32> to vector<32xf32>
    %52 = vector.shape_cast %51 : vector<32xf32> to vector<32x1xf32>
    %cst_20 = arith.constant 3.200000e+01 : f32
    %53 = vector.broadcast %cst_20 : f32 to vector<32x1xf32>
    %54 = arith.divf %52, %53 : vector<32x1xf32>
    %55 = vector.broadcast %47 : vector<32x1xf32> to vector<32x32xf32>
    %56 = arith.subf %41, %55 : vector<32x32xf32>
    %cst_21 = arith.constant 9.99999974E-6 : f32
    %57 = vector.broadcast %cst_21 : f32 to vector<32x1xf32>
    %58 = arith.addf %54, %57 : vector<32x1xf32>
    %59 = math.rsqrt %58 : vector<32x1xf32>
    %60 = vector.broadcast %59 : vector<32x1xf32> to vector<32x32xf32>
    %61 = arith.mulf %56, %60 : vector<32x32xf32>
    %62 = vector.broadcast %42 : vector<1x32xf32> to vector<32x32xf32>
    %63 = arith.mulf %61, %62 : vector<32x32xf32>
    %64 = vector.broadcast %43 : vector<1x32xf32> to vector<32x32xf32>
    %65 = arith.addf %63, %64 : vector<32x32xf32>
    %c0_22 = arith.constant 0 : index
    %c0_23 = arith.constant 0 : index
    %66 = vector.load %arg13[%c0_22, %c0_23] : memref<32x32xf32, #tpu.memory_space<vmem>>, vector<32x32xf32>
    %cst_24 = arith.constant dense<0.000000e+00> : vector<32x32xf32>
    %67 = tpu.matmul %65, %66, %cst_24 {dimension_numbers = #tpu.dot_dimension_numbers<[1], [0], [0], [1], [0, 0, 1, 1], [], []>} : vector<32x32xf32>, vector<32x32xf32>, vector<32x32xf32> -> vector<32x32xf32>
    %c0_25 = arith.constant 0 : index
    %c0_26 = arith.constant 0 : index
    %68 = vector.load %arg14[%c0_25, %c0_26] : memref<1x32xf32, #tpu.memory_space<vmem>>, vector<1x32xf32>
    %69 = vector.broadcast %68 : vector<1x32xf32> to vector<32x32xf32>
    %70 = arith.addf %67, %69 : vector<32x32xf32>
    %c0_27 = arith.constant 0 : index
    %c0_28 = arith.constant 0 : index
    %71 = vector.load %arg15[%c0_27, %c0_28] : memref<32x32xf32, #tpu.memory_space<vmem>>, vector<32x32xf32>
    %cst_29 = arith.constant dense<0.000000e+00> : vector<32x32xf32>
    %72 = tpu.matmul %65, %71, %cst_29 {dimension_numbers = #tpu.dot_dimension_numbers<[1], [0], [0], [1], [0, 0, 1, 1], [], []>} : vector<32x32xf32>, vector<32x32xf32>, vector<32x32xf32> -> vector<32x32xf32>
    %c0_30 = arith.constant 0 : index
    %c0_31 = arith.constant 0 : index
    %73 = vector.load %arg16[%c0_30, %c0_31] : memref<1x32xf32, #tpu.memory_space<vmem>>, vector<1x32xf32>
    %74 = vector.broadcast %73 : vector<1x32xf32> to vector<32x32xf32>
    %75 = arith.addf %72, %74 : vector<32x32xf32>
    %c0_32 = arith.constant 0 : index
    %c0_33 = arith.constant 0 : index
    %76 = vector.load %arg23[%c0_32, %c0_33] : memref<1x32xf32, #tpu.memory_space<vmem>>, vector<1x32xf32>
    %77 = vector.broadcast %76 : vector<1x32xf32> to vector<32x32xf32>
    %78 = arith.mulf %70, %77 : vector<32x32xf32>
    %c0_34 = arith.constant 0 : index
    %c0_35 = arith.constant 0 : index
    %79 = vector.load %arg19[%c0_34, %c0_35] : memref<32x4xf32, #tpu.memory_space<vmem>>, vector<32x4xf32>
    %cst_36 = arith.constant dense<0.000000e+00> : vector<32x4xf32>
    %80 = tpu.matmul %78, %79, %cst_36 {dimension_numbers = #tpu.dot_dimension_numbers<[1], [0], [0], [1], [0, 0, 1, 1], [], []>} : vector<32x32xf32>, vector<32x4xf32>, vector<32x4xf32> -> vector<32x4xf32>
    %c0_37 = arith.constant 0 : index
    %c0_38 = arith.constant 0 : index
    %c0_39 = arith.constant 0 : index
    %81 = vector.load %arg21[%c0_37, %c0_38, %c0_39] : memref<1x1x32xf32, #tpu.memory_space<vmem>>, vector<1x1x32xf32>
    %82 = vector.shape_cast %81 : vector<1x1x32xf32> to vector<1x32xf32>
    %c0_40 = arith.constant 0 : index
    %c0_41 = arith.constant 0 : index
    %83 = vector.load %arg24[%c0_40, %c0_41] : memref<1x4xf32, #tpu.memory_space<vmem>>, vector<1x4xf32>
    %cst_42 = arith.constant dense<0xFF800000> : vector<4xf32>
    %84 = vector.multi_reduction <maximumf>, %80, %cst_42 [0] : vector<32x4xf32> to vector<4xf32>
    %85 = vector.shape_cast %84 : vector<4xf32> to vector<1x4xf32>
    %86 = arith.maximumf %83, %85 : vector<1x4xf32>
    %87 = arith.subf %83, %86 : vector<1x4xf32>
    %88 = math.exp %87 : vector<1x4xf32>
    %89 = vector.broadcast %86 : vector<1x4xf32> to vector<32x4xf32>
    %90 = arith.subf %80, %89 : vector<32x4xf32>
    %91 = math.exp %90 : vector<32x4xf32>
    %c0_43 = arith.constant 0 : index
    %c0_44 = arith.constant 0 : index
    %92 = vector.load %arg25[%c0_43, %c0_44] : memref<1x4xf32, #tpu.memory_space<vmem>>, vector<1x4xf32>
    %93 = arith.mulf %88, %92 : vector<1x4xf32>
    %cst_45 = arith.constant dense<0.000000e+00> : vector<1x4xf32>
    %94 = tpu.matmul %82, %91, %cst_45 {dimension_numbers = #tpu.dot_dimension_numbers<[1], [0], [0], [1], [0, 0, 1, 1], [], []>} : vector<1x32xf32>, vector<32x4xf32>, vector<1x4xf32> -> vector<1x4xf32>
    %95 = arith.addf %93, %94 : vector<1x4xf32>
    %c0_46 = arith.constant 0 : index
    %c0_47 = arith.constant 0 : index
    %96 = vector.load %arg25[%c0_46, %c0_47] : memref<1x4xf32, #tpu.memory_space<vmem>>, vector<1x4xf32>
    tpu.vector_store %arg25[%c0_46, %c0_47], %95 {strides = array<i32>} : memref<1x4xf32, #tpu.memory_space<vmem>>, vector<1x4xf32>,
    %c0_48 = arith.constant 0 : index
    %c0_49 = arith.constant 0 : index
    %97 = vector.load %arg20[%c0_48, %c0_49] : memref<4x32xf32, #tpu.memory_space<vmem>>, vector<4x32xf32>
    %cst_50 = arith.constant dense<0.000000e+00> : vector<32x32xf32>
    %98 = tpu.matmul %91, %97, %cst_50 {dimension_numbers = #tpu.dot_dimension_numbers<[1], [0], [0], [1], [0, 0, 1, 1], [], []>} : vector<32x4xf32>, vector<4x32xf32>, vector<32x32xf32> -> vector<32x32xf32>
    %c0_51 = arith.constant 0 : index
    %c0_52 = arith.constant 0 : index
    %99 = vector.load %arg20[%c0_51, %c0_52] : memref<4x32xf32, #tpu.memory_space<vmem>>, vector<4x32xf32>
    %cst_53 = arith.constant dense<0.000000e+00> : vector<1x32xf32>
    %100 = tpu.matmul %88, %99, %cst_53 {dimension_numbers = #tpu.dot_dimension_numbers<[1], [0], [0], [1], [0, 0, 1, 1], [], []>} : vector<1x4xf32>, vector<4x32xf32>, vector<1x32xf32> -> vector<1x32xf32>
    %c0_54 = arith.constant 0 : index
    %c0_55 = arith.constant 0 : index
    %101 = vector.load %arg26[%c0_54, %c0_55] : memref<1x32xf32, #tpu.memory_space<vmem>>, vector<1x32xf32>
    %102 = arith.mulf %100, %101 : vector<1x32xf32>
    %103 = arith.mulf %98, %75 : vector<32x32xf32>
    %cst_56 = arith.constant dense<0.000000e+00> : vector<1x32xf32>
    %104 = tpu.matmul %82, %103, %cst_56 {dimension_numbers = #tpu.dot_dimension_numbers<[1], [0], [0], [1], [0, 0, 1, 1], [], []>} : vector<1x32xf32>, vector<32x32xf32>, vector<1x32xf32> -> vector<1x32xf32>
    %105 = arith.addf %102, %104 : vector<1x32xf32>
    %c0_57 = arith.constant 0 : index
    %c0_58 = arith.constant 0 : index
    %106 = vector.load %arg26[%c0_57, %c0_58] : memref<1x32xf32, #tpu.memory_space<vmem>>, vector<1x32xf32>
    tpu.vector_store %arg26[%c0_57, %c0_58], %105 {strides = array<i32>} : memref<1x32xf32, #tpu.memory_space<vmem>>, vector<1x32xf32>,
    %c0_59 = arith.constant 0 : index
    %c0_60 = arith.constant 0 : index
    %107 = vector.load %arg24[%c0_59, %c0_60] : memref<1x4xf32, #tpu.memory_space<vmem>>, vector<1x4xf32>
    tpu.vector_store %arg24[%c0_59, %c0_60], %86 {strides = array<i32>} : memref<1x4xf32, #tpu.memory_space<vmem>>, vector<1x4xf32>,
    %c1_i32 = arith.constant 1 : i32
    %108 = arith.cmpi eq, %arg1, %c1_i32 : i32
    %109 = arith.extui %108 : i1 to i32
    %c0_i32_61 = arith.constant 0 : i32
    %110 = arith.cmpi ne, %109, %c0_i32_61 : i32
    scf.if %110 {
      %c0_62 = arith.constant 0 : index
      %c0_63 = arith.constant 0 : index
      %111 = vector.load %arg25[%c0_62, %c0_63] : memref<1x4xf32, #tpu.memory_space<vmem>>, vector<1x4xf32>
      %c0_64 = arith.constant 0 : index
      %c0_65 = arith.constant 0 : index
      %112 = vector.load %arg20[%c0_64, %c0_65] : memref<4x32xf32, #tpu.memory_space<vmem>>, vector<4x32xf32>
      %cst_66 = arith.constant dense<0.000000e+00> : vector<1x32xf32>
      %113 = tpu.matmul %111, %112, %cst_66 {dimension_numbers = #tpu.dot_dimension_numbers<[1], [0], [0], [1], [0, 0, 1, 1], [], []>} : vector<1x4xf32>, vector<4x32xf32>, vector<1x32xf32> -> vector<1x32xf32>
      %c0_67 = arith.constant 0 : index
      %c0_68 = arith.constant 0 : index
      %114 = vector.load %arg26[%c0_67, %c0_68] : memref<1x32xf32, #tpu.memory_space<vmem>>, vector<1x32xf32>
      %115 = arith.divf %114, %113 : vector<1x32xf32>
      %c0_69 = arith.constant 0 : index
      %c0_70 = arith.constant 0 : index
      %116 = vector.load %arg17[%c0_69, %c0_70] : memref<32x32xf32, #tpu.memory_space<vmem>>, vector<32x32xf32>
      %cst_71 = arith.constant dense<0.000000e+00> : vector<1x32xf32>
      %117 = tpu.matmul %115, %116, %cst_71 {dimension_numbers = #tpu.dot_dimension_numbers<[1], [0], [0], [1], [0, 0, 1, 1], [], []>} : vector<1x32xf32>, vector<32x32xf32>, vector<1x32xf32> -> vector<1x32xf32>
      %c0_72 = arith.constant 0 : index
      %c0_73 = arith.constant 0 : index
      %118 = vector.load %arg18[%c0_72, %c0_73] : memref<1x32xf32, #tpu.memory_space<vmem>>, vector<1x32xf32>
      %119 = arith.addf %117, %118 : vector<1x32xf32>
      %c0_74 = arith.constant 0 : index
      %c0_75 = arith.constant 0 : index
      %c0_76 = arith.constant 0 : index
      %120 = vector.load %arg2[%c0_74, %c0_75, %c0_76] : memref<1x1x32xf32, #tpu.memory_space<vmem>>, vector<1x1x32xf32>
      %121 = vector.shape_cast %120 : vector<1x1x32xf32> to vector<1x32xf32>
      %122 = arith.addf %121, %119 : vector<1x32xf32>
      %123 = vector.shape_cast %122 : vector<1x32xf32> to vector<1x1x32xf32>
      %c0_77 = arith.constant 0 : index
      %c0_78 = arith.constant 0 : index
      %c0_79 = arith.constant 0 : index
      %124 = vector.load %arg22[%c0_77, %c0_78, %c0_79] : memref<1x1x32xf32, #tpu.memory_space<vmem>>, vector<1x1x32xf32>
      tpu.vector_store %arg22[%c0_77, %c0_78, %c0_79], %123 {strides = array<i32>} : memref<1x1x32xf32, #tpu.memory_space<vmem>>, vector<1x1x32xf32>,
    } else {
    }
    return
  }
  func.func @transform_0(%arg0: i32, %arg1: i32) -> (i32, i32, i32) {
    %c0_i32 = arith.constant 0 : i32
    %c0_i32_0 = arith.constant 0 : i32
    %c0_i32_1 = arith.constant 0 : i32
    return %arg0, %c0_i32, %c0_i32_0 : i32, i32, i32
  }
  func.func @transform_1(%arg0: i32, %arg1: i32) -> (i32, i32, i32, i32) {
    %c0_i32 = arith.constant 0 : i32
    %c0_i32_0 = arith.constant 0 : i32
    %c0_i32_1 = arith.constant 0 : i32
    return %arg0, %c0_i32, %arg1, %c0_i32_0 : i32, i32, i32, i32
  }
  func.func @transform_2(%arg0: i32, %arg1: i32) -> (i32, i32) {
    %c0_i32 = arith.constant 0 : i32
    %c0_i32_0 = arith.constant 0 : i32
    %c0_i32_1 = arith.constant 0 : i32
    return %c0_i32, %c0_i32_0 : i32, i32
  }
  func.func @transform_3(%arg0: i32, %arg1: i32) -> (i32, i32) {
    %c0_i32 = arith.constant 0 : i32
    %c0_i32_0 = arith.constant 0 : i32
    %c0_i32_1 = arith.constant 0 : i32
    return %c0_i32, %c0_i32_0 : i32, i32
  }
  func.func @transform_4(%arg0: i32, %arg1: i32) -> (i32, i32) {
    %c0_i32 = arith.constant 0 : i32
    %c0_i32_0 = arith.constant 0 : i32
    %c0_i32_1 = arith.constant 0 : i32
    return %c0_i32, %c0_i32_0 : i32, i32
  }
  func.func @transform_5(%arg0: i32, %arg1: i32) -> (i32, i32) {
    %c0_i32 = arith.constant 0 : i32
    %c0_i32_0 = arith.constant 0 : i32
    %c0_i32_1 = arith.constant 0 : i32
    return %c0_i32, %c0_i32_0 : i32, i32
  }
  func.func @transform_6(%arg0: i32, %arg1: i32) -> (i32, i32) {
    %c0_i32 = arith.constant 0 : i32
    %c0_i32_0 = arith.constant 0 : i32
    %c0_i32_1 = arith.constant 0 : i32
    return %c0_i32, %c0_i32_0 : i32, i32
  }
  func.func @transform_7(%arg0: i32, %arg1: i32) -> (i32, i32) {
    %c0_i32 = arith.constant 0 : i32
    %c0_i32_0 = arith.constant 0 : i32
    %c0_i32_1 = arith.constant 0 : i32
    return %c0_i32, %c0_i32_0 : i32, i32
  }
  func.func @transform_8(%arg0: i32, %arg1: i32) -> (i32, i32) {
    %c0_i32 = arith.constant 0 : i32
    %c0_i32_0 = arith.constant 0 : i32
    %c0_i32_1 = arith.constant 0 : i32
    return %c0_i32, %c0_i32_0 : i32, i32
  }
  func.func @transform_9(%arg0: i32, %arg1: i32) -> (i32, i32) {
    %c0_i32 = arith.constant 0 : i32
    %c0_i32_0 = arith.constant 0 : i32
    %c0_i32_1 = arith.constant 0 : i32
    return %c0_i32, %c0_i32_0 : i32, i32
  }
  func.func @transform_10(%arg0: i32, %arg1: i32) -> (i32, i32) {
    %c0_i32 = arith.constant 0 : i32
    %c0_i32_0 = arith.constant 0 : i32
    %c0_i32_1 = arith.constant 0 : i32
    return %c0_i32, %c0_i32_0 : i32, i32
  }
  func.func @transform_11(%arg0: i32, %arg1: i32) -> (i32, i32) {
    %c0_i32 = arith.constant 0 : i32
    %c0_i32_0 = arith.constant 0 : i32
    %c0_i32_1 = arith.constant 0 : i32
    return %c0_i32, %c0_i32_0 : i32, i32
  }
  func.func @transform_12(%arg0: i32, %arg1: i32) -> (i32, i32) {
    %c0_i32 = arith.constant 0 : i32
    %c0_i32_0 = arith.constant 0 : i32
    %c0_i32_1 = arith.constant 0 : i32
    return %c0_i32, %c0_i32_0 : i32, i32
  }
  func.func @transform_13(%arg0: i32, %arg1: i32) -> (i32, i32) {
    %c0_i32 = arith.constant 0 : i32
    %c0_i32_0 = arith.constant 0 : i32
    %c0_i32_1 = arith.constant 0 : i32
    return %c0_i32, %c0_i32_0 : i32, i32
  }
  func.func @transform_14(%arg0: i32, %arg1: i32) -> (i32, i32) {
    %c0_i32 = arith.constant 0 : i32
    %c0_i32_0 = arith.constant 0 : i32
    %c0_i32_1 = arith.constant 0 : i32
    return %c0_i32, %c0_i32_0 : i32, i32
  }
  func.func @transform_15(%arg0: i32, %arg1: i32) -> (i32, i32) {
    %c0_i32 = arith.constant 0 : i32
    %c0_i32_0 = arith.constant 0 : i32
    %c0_i32_1 = arith.constant 0 : i32
    return %c0_i32, %c0_i32_0 : i32, i32
  }
  func.func @transform_16(%arg0: i32, %arg1: i32) -> (i32, i32) {
    %c0_i32 = arith.constant 0 : i32
    %c0_i32_0 = arith.constant 0 : i32
    %c0_i32_1 = arith.constant 0 : i32
    return %c0_i32, %c0_i32_0 : i32, i32
  }
  func.func @transform_17(%arg0: i32, %arg1: i32) -> (i32, i32) {
    %c0_i32 = arith.constant 0 : i32
    %c0_i32_0 = arith.constant 0 : i32
    %c0_i32_1 = arith.constant 0 : i32
    return %c0_i32, %c0_i32_0 : i32, i32
  }
  func.func @transform_18(%arg0: i32, %arg1: i32) -> (i32, i32) {
    %c0_i32 = arith.constant 0 : i32
    %c0_i32_0 = arith.constant 0 : i32
    %c0_i32_1 = arith.constant 0 : i32
    return %c0_i32, %c0_i32_0 : i32, i32
  }
  func.func @transform_19(%arg0: i32, %arg1: i32) -> (i32, i32, i32) {
    %c0_i32 = arith.constant 0 : i32
    %c0_i32_0 = arith.constant 0 : i32
    %c0_i32_1 = arith.constant 0 : i32
    return %arg1, %c0_i32, %c0_i32_0 : i32, i32, i32
  }
  func.func @transform_20(%arg0: i32, %arg1: i32) -> (i32, i32, i32) {
    %c0_i32 = arith.constant 0 : i32
    %c0_i32_0 = arith.constant 0 : i32
    %c0_i32_1 = arith.constant 0 : i32
    return %arg0, %c0_i32, %c0_i32_0 : i32, i32, i32
  }
}

</mosaic_0001>

<llo_original>
// kernel: tpu_custom_call.1
$region0: #{tpu_custom_call.1}
  #allocation0 [shape = 'u32[]', space=smem, size = 0x4, offset = 0x4, fixed_abs, tag = 'smem constant byte address 0x4 - core index']
  #allocation1 [shape = 'u32[144,128]{1,0:T(1,128)}', space=vmem, size = 0x12000, scoped, tag = 'internal scratch']
  #allocation2 [shape = 'f32[1,32]{1,0:T(1,128)}', space=vmem, size = 0x200, scoped, tag = 'scratch operand']
  #allocation3 [shape = 'f32[1,4]{1,0:T(1,128)}', space=vmem, size = 0x200, scoped, tag = 'scratch operand']
  #allocation4 [shape = 'f32[1,4]{1,0:T(1,128)}', space=vmem, size = 0x200, scoped, tag = 'scratch operand']
  #allocation5 [shape = 'f32[1,32]{1,0:T(1,128)}', space=vmem, size = 0x200, scoped, tag = 'scratch operand']
  %s0 = inlined_call_operand.vmem [shape: f32[2,1,32], index: 0, kind: input, shape index: {}]
  %s1 = inlined_call_operand.hbm [shape: f32[2,4,16,32], index: 1, kind: input, shape index: {}]
  %s2 = inlined_call_operand.vmem [shape: f32[3,32], index: 2, kind: input, shape index: {}]
  %s3 = inlined_call_operand.vmem [shape: f32[1,32], index: 3, kind: input, shape index: {}]
  %s4 = inlined_call_operand.vmem [shape: f32[4,32], index: 4, kind: input, shape index: {}]
  %s5 = inlined_call_operand.vmem [shape: f32[1,32], index: 5, kind: input, shape index: {}]
  %s6 = inlined_call_operand.hbm [shape: f32[1,32], index: 6, kind: input, shape index: {}]
  %s7 = inlined_call_operand.hbm [shape: f32[1,32], index: 7, kind: input, shape index: {}]
  %s8 = inlined_call_operand.hbm [shape: f32[1,32], index: 8, kind: input, shape index: {}]
  %s9 = inlined_call_operand.vmem [shape: f32[32,32], index: 9, kind: input, shape index: {}]
  %s10 = inlined_call_operand.hbm [shape: f32[1,32], index: 10, kind: input, shape index: {}]
  %s11 = inlined_call_operand.hbm [shape: f32[32,32], index: 11, kind: input, shape index: {}]
  %s12 = inlined_call_operand.vmem [shape: f32[1,32], index: 12, kind: input, shape index: {}]
  %s13 = inlined_call_operand.hbm [shape: f32[32,32], index: 13, kind: input, shape index: {}]
  %s14 = inlined_call_operand.vmem [shape: f32[1,32], index: 14, kind: input, shape index: {}]
  %s15 = inlined_call_operand.hbm [shape: f32[32,32], index: 15, kind: input, shape index: {}]
  %s16 = inlined_call_operand.vmem [shape: f32[1,32], index: 16, kind: input, shape index: {}]
  %s17 = inlined_call_operand.vmem [shape: f32[32,4], index: 17, kind: input, shape index: {}]
  %s18 = inlined_call_operand.vmem [shape: f32[4,32], index: 18, kind: input, shape index: {}]
  %s19 = inlined_call_operand.vmem [shape: f32[2,1,32], index: 19, kind: input, shape index: {}]
  %s20 = inlined_call_operand.hbm [shape: f32[2,1,32], index: 20, kind: output, shape index: {}]
  %s21 = sld [smem:[#allocation0]]
  $region153: #{tpu_custom_call.1} parent=0
    _
  %s23 = ssub.s32 1, %s21
  %s24 = scalar_select 0, %s23, %s21
  $region1: #{tpu_custom_call.1} parent=0
    #allocation6 [shape = 'u8[32768]{0}', space=vmem, size = 0x8000, scoped, tag = 'input window, operand 1']
    #allocation7 [shape = 's32[2]{0}', space=sflag, size = 0x8, scoped, tag = 'scoped memory for tpu_custom_call.1']
    #allocation8 [shape = 's32[2]{0}', space=sflag, size = 0x8, scoped, tag = 'scoped memory for tpu_custom_call.1']
    #allocation9 [shape = 'u8[512]{0}', space=vmem, size = 0x400, scoped, tag = 'input window, operand 6, single buffered']
    #allocation10 [shape = 's32[1]{0}', space=sflag, size = 0x4, scoped, tag = 'scoped memory for tpu_custom_call.1']
    #allocation11 [shape = 'u8[512]{0}', space=vmem, size = 0x400, scoped, tag = 'input window, operand 7, single buffered']
    #allocation12 [shape = 'u8[512]{0}', space=vmem, size = 0x400, scoped, tag = 'input window, operand 8, single buffered']
    #allocation13 [shape = 's32[1]{0}', space=sflag, size = 0x4, scoped, tag = 'scoped memory for tpu_custom_call.1']
    #allocation14 [shape = 'u8[512]{0}', space=vmem, size = 0x400, scoped, tag = 'input window, operand 10, single buffered']
    #allocation15 [shape = 'u8[16384]{0}', space=vmem, size = 0x4000, scoped, tag = 'input window, operand 11, single buffered']
    #allocation16 [shape = 's32[1]{0}', space=sflag, size = 0x4, scoped, tag = 'scoped memory for tpu_custom_call.1']
    #allocation17 [shape = 'u8[16384]{0}', space=vmem, size = 0x4000, scoped, tag = 'input window, operand 13, single buffered']
    #allocation18 [shape = 'u8[16384]{0}', space=vmem, size = 0x4000, scoped, tag = 'input window, operand 15, single buffered']
    #allocation19 [shape = 's32[1]{0}', space=sflag, size = 0x4, scoped, tag = 'scoped memory for tpu_custom_call.1']
    #allocation20 [shape = 'u8[1024]{0}', space=vmem, size = 0x400, scoped, tag = 'output window, operand 0']
    %25 = vsyncpa [#allocation7], 0
    %s26 = scalar_lea.sflag [#allocation7], 1
    %27 = vsyncpa %s26, 0
    %28 = vsyncpa [#allocation10], 0
    %29 = vsyncpa [#allocation13], 0
    %30 = vsyncpa [#allocation16], 0
    %31 = vsyncpa [#allocation19], 0
    %32 = vsyncpa [#allocation8], 0
    %s33 = scalar_lea.sflag [#allocation8], 1
    %34 = vsyncpa %s33, 0
    loop: start=0, step=1, limit=6
    $region2: #{tpu_custom_call.1} parent=1 // loop_pre_header
      _
    $region3: #{tpu_custom_call.1} parent=1 // loop_header
      %s36 = sphi 0, %s40
      %p37 = scmp.ge.s32.totalorder %s36, 6
      %s43 = sphi 0, %s55
      %s44 = sphi 0, %s51
      %s45 = sphi 0, %s43
      %s46 = sphi 0, %s44
      %s47 = sphi 0, %s45
      %s48 = sphi 0, %s46
      %s58 = sphi 0, %s60
      %s61 = sphi 0, %s58
      %s62 = sphi 0, %s61
      %s78 = sphi 0, %s62
      %s86 = sphi 0, %s88
      %s89 = sphi 0, %s86
      %s90 = sphi 0, %s89
      %s106 = sphi 0, %s90
      %s110 = sphi 0, %s110
      %s112 = sphi 0, %s110
      %s113 = sphi 0, %s112
      %s127 = sphi 0, %s113
      %s131 = sphi 0, %s131
      %s133 = sphi 0, %s131
      %s134 = sphi 0, %s133
      %s148 = sphi 0, %s134
      %s152 = sphi 0, %s152
      %s154 = sphi 0, %s152
      %s155 = sphi 0, %s154
      %s169 = sphi 0, %s155
      %s173 = sphi 0, %s173
      %s175 = sphi 0, %s173
      %s176 = sphi 0, %s175
      %s190 = sphi 0, %s176
      %s194 = sphi 0, %s194
      %s196 = sphi 0, %s194
      %s197 = sphi 0, %s196
      %s211 = sphi 0, %s197
      %s215 = sphi 0, %s215
      %s217 = sphi 0, %s215
      %s218 = sphi 0, %s217
      %s232 = sphi 0, %s218
      %s236 = sphi 0, %s236
      %s238 = sphi 0, %s236
      %s239 = sphi 0, %s238
      %s253 = sphi 0, %s239
      %s257 = sphi 0, %s257
      %s259 = sphi 0, %s257
      %s260 = sphi 0, %s259
      %s274 = sphi 0, %s260
      %s278 = sphi 0, %s278
      %s280 = sphi 0, %s278
      %s281 = sphi 0, %s280
      %s295 = sphi 0, %s281
      %s299 = sphi 0, %s299
      %s301 = sphi 0, %s299
      %s302 = sphi 0, %s301
      %s316 = sphi 0, %s302
      %s320 = sphi 0, %s320
      %s322 = sphi 0, %s320
      %s323 = sphi 0, %s322
      %s337 = sphi 0, %s323
      %s341 = sphi 0, %s341
      %s343 = sphi 0, %s341
      %s344 = sphi 0, %s343
      %s358 = sphi 0, %s344
      %s362 = sphi 0, %s362
      %s364 = sphi 0, %s362
      %s365 = sphi 0, %s364
      %s379 = sphi 0, %s365
      %s383 = sphi 0, %s383
      %s385 = sphi 0, %s383
      %s386 = sphi 0, %s385
      %s400 = sphi 0, %s386
      %s404 = sphi 0, %s404
      %s406 = sphi 0, %s404
      %s407 = sphi 0, %s406
      %s421 = sphi 0, %s407
      %s425 = sphi 0, %s425
      %s427 = sphi 0, %s425
      %s428 = sphi 0, %s427
      %s442 = sphi 0, %s428
      %s446 = sphi 0, %s446
      %s448 = sphi 0, %s446
      %s449 = sphi 0, %s448
      %s463 = sphi 0, %s449
      %s469 = sphi 0, %s471
      %s472 = sphi 0, %s469
      %s473 = sphi 0, %s472
      %s489 = sphi 0, %s473
      %s495 = sphi 0, %s497
      %s498 = sphi 0, %s495
      %s499 = sphi 0, %s498
      %s515 = sphi 0, %s499
    $region4: #{tpu_custom_call.1} parent=1 // loop_header_branch
      %39 = sbr.rel (%p37) target = $region8
    $region5: #{tpu_custom_call.1} parent=1 // loop_body
      %s41 = ssub.s32 %s36, 1
      %s42 = ssub.s32 %s36, 2
      %s49 = sadd.s32 1, %s44
      %p50 = scmp.ge.s32.totalorder %s49, 2
      %s51 = scalar_select %p50, 0, %s49
      %s52 = sadd.s32 1, %s43
      %s53 = scalar_select %p50, %s52, %s43
      %p54 = scmp.ge.s32.totalorder %s53, 2
      %s55 = scalar_select %p54, 0, %s53
      %s56 = ssub.s32 %s43, %s55
      %p57 = scmp.eq.s32.totalorder %s56, 0
      %s59 = sadd.s32 %s58, 1
      %s60 = scalar_select %p57, %s58, %s59
      %p63 = pneg %p57
      %p64 = scmp.eq.s32.totalorder %s36, 3
      %p65 = por %p63, %p64
      %p66 = scmp.ne.s32.totalorder %s58, %s61
      %p67 = scmp.eq.s32.totalorder %s36, 0
      %p68 = por %p66, %p67
      %p69 = scmp.ne.s32.totalorder %s58, %s61
      %p70 = scmp.eq.s32.totalorder %s41, 3
      %p71 = por %p69, %p70
      %p72 = scmp.ne.s32.totalorder %s61, %s62
      %p73 = scmp.eq.s32.totalorder %s41, 0
      %p74 = por %p72, %p73
      %p75 = scmp.ne.s32.totalorder %s61, %s62
      %p76 = scmp.eq.s32.totalorder %s42, 3
      %p77 = por %p75, %p76
      %p79 = scmp.ne.s32.totalorder %s62, %s78
      %p80 = scmp.eq.s32.totalorder %s42, 0
      %p81 = por %p79, %p80
      %s82 = ssub.s32 %s43, %s55
      %s83 = ssub.s32 %s44, %s51
      %s84 = sor.u32 %s82, %s83
      %p85 = scmp.eq.s32.totalorder %s84, 0
      %s87 = sadd.s32 %s86, 1
      %s88 = scalar_select %p85, %s86, %s87
      %p91 = pneg %p85
      %p92 = scmp.eq.s32.totalorder %s36, 3
      %p93 = por %p91, %p92
      %p94 = scmp.ne.s32.totalorder %s86, %s89
      %p95 = scmp.eq.s32.totalorder %s36, 0
      %p96 = por %p94, %p95
      %p97 = scmp.ne.s32.totalorder %s86, %s89
      %p98 = scmp.eq.s32.totalorder %s41, 3
      %p99 = por %p97, %p98
      %p100 = scmp.ne.s32.totalorder %s89, %s90
      %p101 = scmp.eq.s32.totalorder %s41, 0
      %p102 = por %p100, %p101
      %p103 = scmp.ne.s32.totalorder %s89, %s90
      %p104 = scmp.eq.s32.totalorder %s42, 3
      %p105 = por %p103, %p104
      %p107 = scmp.ne.s32.totalorder %s90, %s106
      %p108 = scmp.eq.s32.totalorder %s42, 0
      %p109 = por %p107, %p108
      %s111 = sadd.s32 %s110, 1
      %p114 = scmp.eq.s32.totalorder %s36, 3
      %p115 = scmp.ne.s32.totalorder %s110, %s112
      %p116 = scmp.eq.s32.totalorder %s36, 0
      %p117 = por %p115, %p116
      %p118 = scmp.ne.s32.totalorder %s110, %s112
      %p119 = scmp.eq.s32.totalorder %s41, 3
      %p120 = por %p118, %p119
      %p121 = scmp.ne.s32.totalorder %s112, %s113
      %p122 = scmp.eq.s32.totalorder %s41, 0
      %p123 = por %p121, %p122
      %p124 = scmp.ne.s32.totalorder %s112, %s113
      %p125 = scmp.eq.s32.totalorder %s42, 3
      %p126 = por %p124, %p125
      %p128 = scmp.ne.s32.totalorder %s113, %s127
      %p129 = scmp.eq.s32.totalorder %s42, 0
      %p130 = por %p128, %p129
      %s132 = sadd.s32 %s131, 1
      %p135 = scmp.eq.s32.totalorder %s36, 3
      %p136 = scmp.ne.s32.totalorder %s131, %s133
      %p137 = scmp.eq.s32.totalorder %s36, 0
      %p138 = por %p136, %p137
      %p139 = scmp.ne.s32.totalorder %s131, %s133
      %p140 = scmp.eq.s32.totalorder %s41, 3
      %p141 = por %p139, %p140
      %p142 = scmp.ne.s32.totalorder %s133, %s134
      %p143 = scmp.eq.s32.totalorder %s41, 0
      %p144 = por %p142, %p143
      %p145 = scmp.ne.s32.totalorder %s133, %s134
      %p146 = scmp.eq.s32.totalorder %s42, 3
      %p147 = por %p145, %p146
      %p149 = scmp.ne.s32.totalorder %s134, %s148
      %p150 = scmp.eq.s32.totalorder %s42, 0
      %p151 = por %p149, %p150
      %s153 = sadd.s32 %s152, 1
      %p156 = scmp.eq.s32.totalorder %s36, 3
      %p157 = scmp.ne.s32.totalorder %s152, %s154
      %p158 = scmp.eq.s32.totalorder %s36, 0
      %p159 = por %p157, %p158
      %p160 = scmp.ne.s32.totalorder %s152, %s154
      %p161 = scmp.eq.s32.totalorder %s41, 3
      %p162 = por %p160, %p161
      %p163 = scmp.ne.s32.totalorder %s154, %s155
      %p164 = scmp.eq.s32.totalorder %s41, 0
      %p165 = por %p163, %p164
      %p166 = scmp.ne.s32.totalorder %s154, %s155
      %p167 = scmp.eq.s32.totalorder %s42, 3
      %p168 = por %p166, %p167
      %p170 = scmp.ne.s32.totalorder %s155, %s169
      %p171 = scmp.eq.s32.totalorder %s42, 0
      %p172 = por %p170, %p171
      %s174 = sadd.s32 %s173, 1
      %p177 = scmp.eq.s32.totalorder %s36, 3
      %p178 = scmp.ne.s32.totalorder %s173, %s175
      %p179 = scmp.eq.s32.totalorder %s36, 0
      %p180 = por %p178, %p179
      %p181 = scmp.ne.s32.totalorder %s173, %s175
      %p182 = scmp.eq.s32.totalorder %s41, 3
      %p183 = por %p181, %p182
      %p184 = scmp.ne.s32.totalorder %s175, %s176
      %p185 = scmp.eq.s32.totalorder %s41, 0
      %p186 = por %p184, %p185
      %p187 = scmp.ne.s32.totalorder %s175, %s176
      %p188 = scmp.eq.s32.totalorder %s42, 3
      %p189 = por %p187, %p188
      %p191 = scmp.ne.s32.totalorder %s176, %s190
      %p192 = scmp.eq.s32.totalorder %s42, 0
      %p193 = por %p191, %p192
      %s195 = sadd.s32 %s194, 1
      %p198 = scmp.eq.s32.totalorder %s36, 3
      %p199 = scmp.ne.s32.totalorder %s194, %s196
      %p200 = scmp.eq.s32.totalorder %s36, 0
      %p201 = por %p199, %p200
      %p202 = scmp.ne.s32.totalorder %s194, %s196
      %p203 = scmp.eq.s32.totalorder %s41, 3
      %p204 = por %p202, %p203
      %p205 = scmp.ne.s32.totalorder %s196, %s197
      %p206 = scmp.eq.s32.totalorder %s41, 0
      %p207 = por %p205, %p206
      %p208 = scmp.ne.s32.totalorder %s196, %s197
      %p209 = scmp.eq.s32.totalorder %s42, 3
      %p210 = por %p208, %p209
      %p212 = scmp.ne.s32.totalorder %s197, %s211
      %p213 = scmp.eq.s32.totalorder %s42, 0
      %p214 = por %p212, %p213
      %s216 = sadd.s32 %s215, 1
      %p219 = scmp.eq.s32.totalorder %s36, 3
      %p220 = scmp.ne.s32.totalorder %s215, %s217
      %p221 = scmp.eq.s32.totalorder %s36, 0
      %p222 = por %p220, %p221
      %p223 = scmp.ne.s32.totalorder %s215, %s217
      %p224 = scmp.eq.s32.totalorder %s41, 3
      %p225 = por %p223, %p224
      %p226 = scmp.ne.s32.totalorder %s217, %s218
      %p227 = scmp.eq.s32.totalorder %s41, 0
      %p228 = por %p226, %p227
      %p229 = scmp.ne.s32.totalorder %s217, %s218
      %p230 = scmp.eq.s32.totalorder %s42, 3
      %p231 = por %p229, %p230
      %p233 = scmp.ne.s32.totalorder %s218, %s232
      %p234 = scmp.eq.s32.totalorder %s42, 0
      %p235 = por %p233, %p234
      %s237 = sadd.s32 %s236, 1
      %p240 = scmp.eq.s32.totalorder %s36, 3
      %p241 = scmp.ne.s32.totalorder %s236, %s238
      %p242 = scmp.eq.s32.totalorder %s36, 0
      %p243 = por %p241, %p242
      %p244 = scmp.ne.s32.totalorder %s236, %s238
      %p245 = scmp.eq.s32.totalorder %s41, 3
      %p246 = por %p244, %p245
      %p247 = scmp.ne.s32.totalorder %s238, %s239
      %p248 = scmp.eq.s32.totalorder %s41, 0
      %p249 = por %p247, %p248
      %p250 = scmp.ne.s32.totalorder %s238, %s239
      %p251 = scmp.eq.s32.totalorder %s42, 3
      %p252 = por %p250, %p251
      %p254 = scmp.ne.s32.totalorder %s239, %s253
      %p255 = scmp.eq.s32.totalorder %s42, 0
      %p256 = por %p254, %p255
      %s258 = sadd.s32 %s257, 1
      %p261 = scmp.eq.s32.totalorder %s36, 3
      %p262 = scmp.ne.s32.totalorder %s257, %s259
      %p263 = scmp.eq.s32.totalorder %s36, 0
      %p264 = por %p262, %p263
      %p265 = scmp.ne.s32.totalorder %s257, %s259
      %p266 = scmp.eq.s32.totalorder %s41, 3
      %p267 = por %p265, %p266
      %p268 = scmp.ne.s32.totalorder %s259, %s260
      %p269 = scmp.eq.s32.totalorder %s41, 0
      %p270 = por %p268, %p269
      %p271 = scmp.ne.s32.totalorder %s259, %s260
      %p272 = scmp.eq.s32.totalorder %s42, 3
      %p273 = por %p271, %p272
      %p275 = scmp.ne.s32.totalorder %s260, %s274
      %p276 = scmp.eq.s32.totalorder %s42, 0
      %p277 = por %p275, %p276
      %s279 = sadd.s32 %s278, 1
      %p282 = scmp.eq.s32.totalorder %s36, 3
      %p283 = scmp.ne.s32.totalorder %s278, %s280
      %p284 = scmp.eq.s32.totalorder %s36, 0
      %p285 = por %p283, %p284
      %p286 = scmp.ne.s32.totalorder %s278, %s280
      %p287 = scmp.eq.s32.totalorder %s41, 3
      %p288 = por %p286, %p287
      %p289 = scmp.ne.s32.totalorder %s280, %s281
      %p290 = scmp.eq.s32.totalorder %s41, 0
      %p291 = por %p289, %p290
      %p292 = scmp.ne.s32.totalorder %s280, %s281
      %p293 = scmp.eq.s32.totalorder %s42, 3
      %p294 = por %p292, %p293
      %p296 = scmp.ne.s32.totalorder %s281, %s295
      %p297 = scmp.eq.s32.totalorder %s42, 0
      %p298 = por %p296, %p297
      %s300 = sadd.s32 %s299, 1
      %p303 = scmp.eq.s32.totalorder %s36, 3
      %p304 = scmp.ne.s32.totalorder %s299, %s301
      %p305 = scmp.eq.s32.totalorder %s36, 0
      %p306 = por %p304, %p305
      %p307 = scmp.ne.s32.totalorder %s299, %s301
      %p308 = scmp.eq.s32.totalorder %s41, 3
      %p309 = por %p307, %p308
      %p310 = scmp.ne.s32.totalorder %s301, %s302
      %p311 = scmp.eq.s32.totalorder %s41, 0
      %p312 = por %p310, %p311
      %p313 = scmp.ne.s32.totalorder %s301, %s302
      %p314 = scmp.eq.s32.totalorder %s42, 3
      %p315 = por %p313, %p314
      %p317 = scmp.ne.s32.totalorder %s302, %s316
      %p318 = scmp.eq.s32.totalorder %s42, 0
      %p319 = por %p317, %p318
      %s321 = sadd.s32 %s320, 1
      %p324 = scmp.eq.s32.totalorder %s36, 3
      %p325 = scmp.ne.s32.totalorder %s320, %s322
      %p326 = scmp.eq.s32.totalorder %s36, 0
      %p327 = por %p325, %p326
      %p328 = scmp.ne.s32.totalorder %s320, %s322
      %p329 = scmp.eq.s32.totalorder %s41, 3
      %p330 = por %p328, %p329
      %p331 = scmp.ne.s32.totalorder %s322, %s323
      %p332 = scmp.eq.s32.totalorder %s41, 0
      %p333 = por %p331, %p332
      %p334 = scmp.ne.s32.totalorder %s322, %s323
      %p335 = scmp.eq.s32.totalorder %s42, 3
      %p336 = por %p334, %p335
      %p338 = scmp.ne.s32.totalorder %s323, %s337
      %p339 = scmp.eq.s32.totalorder %s42, 0
      %p340 = por %p338, %p339
      %s342 = sadd.s32 %s341, 1
      %p345 = scmp.eq.s32.totalorder %s36, 3
      %p346 = scmp.ne.s32.totalorder %s341, %s343
      %p347 = scmp.eq.s32.totalorder %s36, 0
      %p348 = por %p346, %p347
      %p349 = scmp.ne.s32.totalorder %s341, %s343
      %p350 = scmp.eq.s32.totalorder %s41, 3
      %p351 = por %p349, %p350
      %p352 = scmp.ne.s32.totalorder %s343, %s344
      %p353 = scmp.eq.s32.totalorder %s41, 0
      %p354 = por %p352, %p353
      %p355 = scmp.ne.s32.totalorder %s343, %s344
      %p356 = scmp.eq.s32.totalorder %s42, 3
      %p357 = por %p355, %p356
      %p359 = scmp.ne.s32.totalorder %s344, %s358
      %p360 = scmp.eq.s32.totalorder %s42, 0
      %p361 = por %p359, %p360
      %s363 = sadd.s32 %s362, 1
      %p366 = scmp.eq.s32.totalorder %s36, 3
      %p367 = scmp.ne.s32.totalorder %s362, %s364
      %p368 = scmp.eq.s32.totalorder %s36, 0
      %p369 = por %p367, %p368
      %p370 = scmp.ne.s32.totalorder %s362, %s364
      %p371 = scmp.eq.s32.totalorder %s41, 3
      %p372 = por %p370, %p371
      %p373 = scmp.ne.s32.totalorder %s364, %s365
      %p374 = scmp.eq.s32.totalorder %s41, 0
      %p375 = por %p373, %p374
      %p376 = scmp.ne.s32.totalorder %s364, %s365
      %p377 = scmp.eq.s32.totalorder %s42, 3
      %p378 = por %p376, %p377
      %p380 = scmp.ne.s32.totalorder %s365, %s379
      %p381 = scmp.eq.s32.totalorder %s42, 0
      %p382 = por %p380, %p381
      %s384 = sadd.s32 %s383, 1
      %p387 = scmp.eq.s32.totalorder %s36, 3
      %p388 = scmp.ne.s32.totalorder %s383, %s385
      %p389 = scmp.eq.s32.totalorder %s36, 0
      %p390 = por %p388, %p389
      %p391 = scmp.ne.s32.totalorder %s383, %s385
      %p392 = scmp.eq.s32.totalorder %s41, 3
      %p393 = por %p391, %p392
      %p394 = scmp.ne.s32.totalorder %s385, %s386
      %p395 = scmp.eq.s32.totalorder %s41, 0
      %p396 = por %p394, %p395
      %p397 = scmp.ne.s32.totalorder %s385, %s386
      %p398 = scmp.eq.s32.totalorder %s42, 3
      %p399 = por %p397, %p398
      %p401 = scmp.ne.s32.totalorder %s386, %s400
      %p402 = scmp.eq.s32.totalorder %s42, 0
      %p403 = por %p401, %p402
      %s405 = sadd.s32 %s404, 1
      %p408 = scmp.eq.s32.totalorder %s36, 3
      %p409 = scmp.ne.s32.totalorder %s404, %s406
      %p410 = scmp.eq.s32.totalorder %s36, 0
      %p411 = por %p409, %p410
      %p412 = scmp.ne.s32.totalorder %s404, %s406
      %p413 = scmp.eq.s32.totalorder %s41, 3
      %p414 = por %p412, %p413
      %p415 = scmp.ne.s32.totalorder %s406, %s407
      %p416 = scmp.eq.s32.totalorder %s41, 0
      %p417 = por %p415, %p416
      %p418 = scmp.ne.s32.totalorder %s406, %s407
      %p419 = scmp.eq.s32.totalorder %s42, 3
      %p420 = por %p418, %p419
      %p422 = scmp.ne.s32.totalorder %s407, %s421
      %p423 = scmp.eq.s32.totalorder %s42, 0
      %p424 = por %p422, %p423
      %s426 = sadd.s32 %s425, 1
      %p429 = scmp.eq.s32.totalorder %s36, 3
      %p430 = scmp.ne.s32.totalorder %s425, %s427
      %p431 = scmp.eq.s32.totalorder %s36, 0
      %p432 = por %p430, %p431
      %p433 = scmp.ne.s32.totalorder %s425, %s427
      %p434 = scmp.eq.s32.totalorder %s41, 3
      %p435 = por %p433, %p434
      %p436 = scmp.ne.s32.totalorder %s427, %s428
      %p437 = scmp.eq.s32.totalorder %s41, 0
      %p438 = por %p436, %p437
      %p439 = scmp.ne.s32.totalorder %s427, %s428
      %p440 = scmp.eq.s32.totalorder %s42, 3
      %p441 = por %p439, %p440
      %p443 = scmp.ne.s32.totalorder %s428, %s442
      %p444 = scmp.eq.s32.totalorder %s42, 0
      %p445 = por %p443, %p444
      %s447 = sadd.s32 %s446, 1
      %p450 = scmp.eq.s32.totalorder %s36, 3
      %p451 = scmp.ne.s32.totalorder %s446, %s448
      %p452 = scmp.eq.s32.totalorder %s36, 0
      %p453 = por %p451, %p452
      %p454 = scmp.ne.s32.totalorder %s446, %s448
      %p455 = scmp.eq.s32.totalorder %s41, 3
      %p456 = por %p454, %p455
      %p457 = scmp.ne.s32.totalorder %s448, %s449
      %p458 = scmp.eq.s32.totalorder %s41, 0
      %p459 = por %p457, %p458
      %p460 = scmp.ne.s32.totalorder %s448, %s449
      %p461 = scmp.eq.s32.totalorder %s42, 3
      %p462 = por %p460, %p461
      %p464 = scmp.ne.s32.totalorder %s449, %s463
      %p465 = scmp.eq.s32.totalorder %s42, 0
      %p466 = por %p464, %p465
      %s467 = ssub.s32 %s44, %s51
      %p468 = scmp.eq.s32.totalorder %s467, 0
      %s470 = sadd.s32 %s469, 1
      %s471 = scalar_select %p468, %s469, %s470
      %p474 = pneg %p468
      %p475 = scmp.eq.s32.totalorder %s36, 3
      %p476 = por %p474, %p475
      %p477 = scmp.ne.s32.totalorder %s469, %s472
      %p478 = scmp.eq.s32.totalorder %s36, 0
      %p479 = por %p477, %p478
      %p480 = scmp.ne.s32.totalorder %s469, %s472
      %p481 = scmp.eq.s32.totalorder %s41, 3
      %p482 = por %p480, %p481
      %p483 = scmp.ne.s32.totalorder %s472, %s473
      %p484 = scmp.eq.s32.totalorder %s41, 0
      %p485 = por %p483, %p484
      %p486 = scmp.ne.s32.totalorder %s472, %s473
      %p487 = scmp.eq.s32.totalorder %s42, 3
      %p488 = por %p486, %p487
      %p490 = scmp.ne.s32.totalorder %s473, %s489
      %p491 = scmp.eq.s32.totalorder %s42, 0
      %p492 = por %p490, %p491
      %s493 = ssub.s32 %s43, %s55
      %p494 = scmp.eq.s32.totalorder %s493, 0
      %s496 = sadd.s32 %s495, 1
      %s497 = scalar_select %p494, %s495, %s496
      %p500 = pneg %p494
      %p501 = scmp.eq.s32.totalorder %s36, 3
      %p502 = por %p500, %p501
      %p503 = scmp.ne.s32.totalorder %s495, %s498
      %p504 = scmp.eq.s32.totalorder %s36, 0
      %p505 = por %p503, %p504
      %p506 = scmp.ne.s32.totalorder %s495, %s498
      %p507 = scmp.eq.s32.totalorder %s41, 3
      %p508 = por %p506, %p507
      %p509 = scmp.ne.s32.totalorder %s498, %s499
      %p510 = scmp.eq.s32.totalorder %s41, 0
      %p511 = por %p509, %p510
      %p512 = scmp.ne.s32.totalorder %s498, %s499
      %p513 = scmp.eq.s32.totalorder %s42, 3
      %p514 = por %p512, %p513
      %p516 = scmp.ne.s32.totalorder %s499, %s515
      %p517 = scmp.eq.s32.totalorder %s42, 0
      %p518 = por %p516, %p517
      %p519 = scmp.le.s32.totalorder 1, %s36
      %p520 = scmp.lt.s32.totalorder %s36, 5
      %p521 = pnand %p519, %p520
      %p522 = pneg %p521
      // Predicated region
      $region9: #{tpu_custom_call.1} parent=5 // pred_check
        _
      $region10: #{tpu_custom_call.1} parent=5 // pred_check_branch
        %524 = sbr.rel (%p521) target = $region12
      $region11: #{tpu_custom_call.1} parent=5 // pred_region
        %s525 = ssub.s32 %s36, 1
        // Predicated region
        $region13: #{tpu_custom_call.1} parent=11 // pred_check
          %p526 = pneg %p123
        $region14: #{tpu_custom_call.1} parent=11 // pred_check_branch
          %528 = sbr.rel (%p526) target = $region16
        $region15: #{tpu_custom_call.1} parent=11 // pred_region
          _
        $region16: #{tpu_custom_call.1} parent=11 // pred_fallthru
          _
        // Predicated region
        $region17: #{tpu_custom_call.1} parent=11 // pred_check
          %p529 = pneg %p144
        $region18: #{tpu_custom_call.1} parent=11 // pred_check_branch
          %531 = sbr.rel (%p529) target = $region20
        $region19: #{tpu_custom_call.1} parent=11 // pred_region
          _
        $region20: #{tpu_custom_call.1} parent=11 // pred_fallthru
          _
        // Predicated region
        $region21: #{tpu_custom_call.1} parent=11 // pred_check
          %p532 = pneg %p165
        $region22: #{tpu_custom_call.1} parent=11 // pred_check_branch
          %534 = sbr.rel (%p532) target = $region24
        $region23: #{tpu_custom_call.1} parent=11 // pred_region
          _
        $region24: #{tpu_custom_call.1} parent=11 // pred_fallthru
          _
        // Predicated region
        $region25: #{tpu_custom_call.1} parent=11 // pred_check
          %p535 = pneg %p186
        $region26: #{tpu_custom_call.1} parent=11 // pred_check_branch
          %537 = sbr.rel (%p535) target = $region28
        $region27: #{tpu_custom_call.1} parent=11 // pred_region
          _
        $region28: #{tpu_custom_call.1} parent=11 // pred_fallthru
          _
        // Predicated region
        $region29: #{tpu_custom_call.1} parent=11 // pred_check
          %p538 = pneg %p207
        $region30: #{tpu_custom_call.1} parent=11 // pred_check_branch
          %540 = sbr.rel (%p538) target = $region32
        $region31: #{tpu_custom_call.1} parent=11 // pred_region
          %s542 = ssub.s32 16, 16
          %543 = vsyncadd [#allocation10], %s542
          %s545 = sshll.u32 [#allocation9], 4
          %s546 = int_to_ptr.vmem [resolvable:$true] %s545
          %548 = dma.hbm_to_vmem [thread:$0]  %s6, 16, %s546, [#allocation10]
        $region32: #{tpu_custom_call.1} parent=11 // pred_fallthru
          _
        // Predicated region
        $region33: #{tpu_custom_call.1} parent=11 // pred_check
          %p549 = pneg %p228
        $region34: #{tpu_custom_call.1} parent=11 // pred_check_branch
          %551 = sbr.rel (%p549) target = $region36
        $region35: #{tpu_custom_call.1} parent=11 // pred_region
          %s553 = ssub.s32 16, 16
          %554 = vsyncadd [#allocation10], %s553
          %s556 = sshll.u32 [#allocation11], 4
          %s557 = int_to_ptr.vmem [resolvable:$true] %s556
          %559 = dma.hbm_to_vmem [thread:$0]  %s7, 16, %s557, [#allocation10]
        $region36: #{tpu_custom_call.1} parent=11 // pred_fallthru
          _
        // Predicated region
        $region37: #{tpu_custom_call.1} parent=11 // pred_check
          %p560 = pneg %p249
        $region38: #{tpu_custom_call.1} parent=11 // pred_check_branch
          %562 = sbr.rel (%p560) target = $region40
        $region39: #{tpu_custom_call.1} parent=11 // pred_region
          %s564 = ssub.s32 16, 16
          %565 = vsyncadd [#allocation13], %s564
          %s567 = sshll.u32 [#allocation12], 4
          %s568 = int_to_ptr.vmem [resolvable:$true] %s567
          %570 = dma.hbm_to_vmem [thread:$0]  %s8, 16, %s568, [#allocation13]
        $region40: #{tpu_custom_call.1} parent=11 // pred_fallthru
          _
        // Predicated region
        $region41: #{tpu_custom_call.1} parent=11 // pred_check
          %p571 = pneg %p270
        $region42: #{tpu_custom_call.1} parent=11 // pred_check_branch
          %573 = sbr.rel (%p571) target = $region44
        $region43: #{tpu_custom_call.1} parent=11 // pred_region
          _
        $region44: #{tpu_custom_call.1} parent=11 // pred_fallthru
          _
        // Predicated region
        $region45: #{tpu_custom_call.1} parent=11 // pred_check
          %p574 = pneg %p291
        $region46: #{tpu_custom_call.1} parent=11 // pred_check_branch
          %576 = sbr.rel (%p574) target = $region48
        $region47: #{tpu_custom_call.1} parent=11 // pred_region
          %s578 = ssub.s32 16, 16
          %579 = vsyncadd [#allocation13], %s578
          %s581 = sshll.u32 [#allocation14], 4
          %s582 = int_to_ptr.vmem [resolvable:$true] %s581
          %584 = dma.hbm_to_vmem [thread:$0]  %s10, 16, %s582, [#allocation13]
        $region48: #{tpu_custom_call.1} parent=11 // pred_fallthru
          _
        // Predicated region
        $region49: #{tpu_custom_call.1} parent=11 // pred_check
          %p585 = pneg %p312
        $region50: #{tpu_custom_call.1} parent=11 // pred_check_branch
          %587 = sbr.rel (%p585) target = $region52
        $region51: #{tpu_custom_call.1} parent=11 // pred_region
          %s589 = ssub.s32 512, 512
          %590 = vsyncadd [#allocation16], %s589
          %s591 = sshll.u32 [#allocation15], 4
          %s592 = int_to_ptr.vmem [resolvable:$true] %s591
          %597 = dma.hbm_to_vmem [thread:$0]  %s11, 512, %s592, [#allocation16], 128, 128, 8
        $region52: #{tpu_custom_call.1} parent=11 // pred_fallthru
          _
        // Predicated region
        $region53: #{tpu_custom_call.1} parent=11 // pred_check
          %p598 = pneg %p333
        $region54: #{tpu_custom_call.1} parent=11 // pred_check_branch
          %600 = sbr.rel (%p598) target = $region56
        $region55: #{tpu_custom_call.1} parent=11 // pred_region
          _
        $region56: #{tpu_custom_call.1} parent=11 // pred_fallthru
          _
        // Predicated region
        $region57: #{tpu_custom_call.1} parent=11 // pred_check
          %p601 = pneg %p354
        $region58: #{tpu_custom_call.1} parent=11 // pred_check_branch
          %603 = sbr.rel (%p601) target = $region60
        $region59: #{tpu_custom_call.1} parent=11 // pred_region
          %s605 = ssub.s32 512, 512
          %606 = vsyncadd [#allocation16], %s605
          %s607 = sshll.u32 [#allocation17], 4
          %s608 = int_to_ptr.vmem [resolvable:$true] %s607
          %613 = dma.hbm_to_vmem [thread:$0]  %s13, 512, %s608, [#allocation16], 128, 128, 8
        $region60: #{tpu_custom_call.1} parent=11 // pred_fallthru
          _
        // Predicated region
        $region61: #{tpu_custom_call.1} parent=11 // pred_check
          %p614 = pneg %p375
        $region62: #{tpu_custom_call.1} parent=11 // pred_check_branch
          %616 = sbr.rel (%p614) target = $region64
        $region63: #{tpu_custom_call.1} parent=11 // pred_region
          _
        $region64: #{tpu_custom_call.1} parent=11 // pred_fallthru
          _
        // Predicated region
        $region65: #{tpu_custom_call.1} parent=11 // pred_check
          %p617 = pneg %p396
        $region66: #{tpu_custom_call.1} parent=11 // pred_check_branch
          %619 = sbr.rel (%p617) target = $region68
        $region67: #{tpu_custom_call.1} parent=11 // pred_region
          %s621 = ssub.s32 512, 512
          %622 = vsyncadd [#allocation19], %s621
          %s623 = sshll.u32 [#allocation18], 4
          %s624 = int_to_ptr.vmem [resolvable:$true] %s623
          %629 = dma.hbm_to_vmem [thread:$0]  %s15, 512, %s624, [#allocation19], 128, 128, 8
        $region68: #{tpu_custom_call.1} parent=11 // pred_fallthru
          _
        // Predicated region
        $region69: #{tpu_custom_call.1} parent=11 // pred_check
          %p630 = pneg %p417
        $region70: #{tpu_custom_call.1} parent=11 // pred_check_branch
          %632 = sbr.rel (%p630) target = $region72
        $region71: #{tpu_custom_call.1} parent=11 // pred_region
          _
        $region72: #{tpu_custom_call.1} parent=11 // pred_fallthru
          _
        // Predicated region
        $region73: #{tpu_custom_call.1} parent=11 // pred_check
          %p633 = pneg %p438
        $region74: #{tpu_custom_call.1} parent=11 // pred_check_branch
          %635 = sbr.rel (%p633) target = $region76
        $region75: #{tpu_custom_call.1} parent=11 // pred_region
          _
        $region76: #{tpu_custom_call.1} parent=11 // pred_fallthru
          _
        // Predicated region
        $region77: #{tpu_custom_call.1} parent=11 // pred_check
          %p636 = pneg %p459
        $region78: #{tpu_custom_call.1} parent=11 // pred_check_branch
          %638 = sbr.rel (%p636) target = $region80
        $region79: #{tpu_custom_call.1} parent=11 // pred_region
          _
        $region80: #{tpu_custom_call.1} parent=11 // pred_fallthru
          _
      $region12: #{tpu_custom_call.1} parent=5 // pred_fallthru
        _
      %p639 = scmp.lt.s32.totalorder %s36, 4
      // Predicated region
      $region81: #{tpu_custom_call.1} parent=5 // pred_check
        %p640 = pneg %p639
      $region82: #{tpu_custom_call.1} parent=5 // pred_check_branch
        %642 = sbr.rel (%p640) target = $region84
      $region83: #{tpu_custom_call.1} parent=5 // pred_region
        // Predicated region
        $region85: #{tpu_custom_call.1} parent=83 // pred_check
          %p643 = pneg %p68
        $region86: #{tpu_custom_call.1} parent=83 // pred_check_branch
          %645 = sbr.rel (%p643) target = $region88
        $region87: #{tpu_custom_call.1} parent=83 // pred_region
          %p646 = scmp.lt.s32.totalorder %s43, 1
          %s647 = scalar_select %p646, %s43, 1
          %s648 = scalar_lea.vmem %s0, %s647
        $region88: #{tpu_custom_call.1} parent=83 // pred_fallthru
          _
        // Predicated region
        $region89: #{tpu_custom_call.1} parent=83 // pred_check
          %p649 = pneg %p96
        $region90: #{tpu_custom_call.1} parent=83 // pred_check_branch
          %651 = sbr.rel (%p649) target = $region92
        $region91: #{tpu_custom_call.1} parent=83 // pred_region
          %s652 = sand.u32 %s86, 1
          %s653 = scalar_lea.sflag [#allocation7], %s652
          %s654 = sand.u32 %s86, 1
          %s655 = smul.addr %s654, 32
          %s656 = scalar_lea.vmem [#allocation6], %s655
          %s658 = ssub.s32 512, 512
          %659 = vsyncadd %s653, %s658
          %s660 = smul.addr %s43, 8
          %s661 = sadd.s32 %s44, %s660
          %s662 = smul.addr %s661, 128
          %s663 = scalar_lea.hbm %s1, %s662
          %s664 = sshll.u32 %s656, 4
          %s665 = int_to_ptr.vmem [resolvable:$true] %s664
          %670 = dma.hbm_to_vmem [thread:$0]  %s663, 512, %s665, %s653, 256, 128, 8
        $region92: #{tpu_custom_call.1} parent=83 // pred_fallthru
          _
        // Predicated region
        $region93: #{tpu_custom_call.1} parent=83 // pred_check
          %p671 = pneg %p479
        $region94: #{tpu_custom_call.1} parent=83 // pred_check_branch
          %673 = sbr.rel (%p671) target = $region96
        $region95: #{tpu_custom_call.1} parent=83 // pred_region
          %p674 = scmp.lt.s32.totalorder %s44, 1
          %s675 = scalar_select %p674, %s44, 1
          %s676 = scalar_lea.vmem %s19, %s675
        $region96: #{tpu_custom_call.1} parent=83 // pred_fallthru
          _
      $region84: #{tpu_custom_call.1} parent=5 // pred_fallthru
        _
      %p677 = scmp.le.s32.totalorder 1, %s36
      %p678 = scmp.lt.s32.totalorder %s36, 5
      %p679 = pnand %p677, %p678
      %p680 = pneg %p679
      // Predicated region
      $region97: #{tpu_custom_call.1} parent=5 // pred_check
        _
      $region98: #{tpu_custom_call.1} parent=5 // pred_check_branch
        %682 = sbr.rel (%p679) target = $region100
      $region99: #{tpu_custom_call.1} parent=5 // pred_region
        %s683 = ssub.s32 %s36, 1
        %s684 = sand.u32 %s89, 1
        %s685 = scalar_lea.sflag [#allocation7], %s684
        %s686 = sand.u32 %s89, 1
        %s687 = smul.addr %s686, 32
        %s688 = scalar_lea.vmem [#allocation6], %s687
        // Predicated region
        $region101: #{tpu_custom_call.1} parent=99 // pred_check
          %p689 = pneg %p102
        $region102: #{tpu_custom_call.1} parent=99 // pred_check_branch
          %691 = sbr.rel (%p689) target = $region104
        $region103: #{tpu_custom_call.1} parent=99 // pred_region
          %692 = dma.done %s685, 512
        $region104: #{tpu_custom_call.1} parent=99 // pred_fallthru
          _
        // Predicated region
        $region105: #{tpu_custom_call.1} parent=99 // pred_check
          %p693 = pneg %p207
        $region106: #{tpu_custom_call.1} parent=99 // pred_check_branch
          %695 = sbr.rel (%p693) target = $region108
        $region107: #{tpu_custom_call.1} parent=99 // pred_region
          %696 = dma.done [#allocation10], 16
        $region108: #{tpu_custom_call.1} parent=99 // pred_fallthru
          _
        // Predicated region
        $region109: #{tpu_custom_call.1} parent=99 // pred_check
          %p697 = pneg %p228
        $region110: #{tpu_custom_call.1} parent=99 // pred_check_branch
          %699 = sbr.rel (%p697) target = $region112
        $region111: #{tpu_custom_call.1} parent=99 // pred_region
          %700 = dma.done [#allocation10], 16
        $region112: #{tpu_custom_call.1} parent=99 // pred_fallthru
          _
        // Predicated region
        $region113: #{tpu_custom_call.1} parent=99 // pred_check
          %p701 = pneg %p249
        $region114: #{tpu_custom_call.1} parent=99 // pred_check_branch
          %703 = sbr.rel (%p701) target = $region116
        $region115: #{tpu_custom_call.1} parent=99 // pred_region
          %704 = dma.done [#allocation13], 16
        $region116: #{tpu_custom_call.1} parent=99 // pred_fallthru
          _
        // Predicated region
        $region117: #{tpu_custom_call.1} parent=99 // pred_check
          %p705 = pneg %p291
        $region118: #{tpu_custom_call.1} parent=99 // pred_check_branch
          %707 = sbr.rel (%p705) target = $region120
        $region119: #{tpu_custom_call.1} parent=99 // pred_region
          %708 = dma.done [#allocation13], 16
        $region120: #{tpu_custom_call.1} parent=99 // pred_fallthru
          _
        // Predicated region
        $region121: #{tpu_custom_call.1} parent=99 // pred_check
          %p709 = pneg %p312
        $region122: #{tpu_custom_call.1} parent=99 // pred_check_branch
          %711 = sbr.rel (%p709) target = $region124
        $region123: #{tpu_custom_call.1} parent=99 // pred_region
          %712 = dma.done [#allocation16], 512
        $region124: #{tpu_custom_call.1} parent=99 // pred_fallthru
          _
        // Predicated region
        $region125: #{tpu_custom_call.1} parent=99 // pred_check
          %p713 = pneg %p354
        $region126: #{tpu_custom_call.1} parent=99 // pred_check_branch
          %715 = sbr.rel (%p713) target = $region128
        $region127: #{tpu_custom_call.1} parent=99 // pred_region
          %716 = dma.done [#allocation16], 512
        $region128: #{tpu_custom_call.1} parent=99 // pred_fallthru
          _
        // Predicated region
        $region129: #{tpu_custom_call.1} parent=99 // pred_check
          %p717 = pneg %p396
        $region130: #{tpu_custom_call.1} parent=99 // pred_check_branch
          %719 = sbr.rel (%p717) target = $region132
        $region131: #{tpu_custom_call.1} parent=99 // pred_region
          %720 = dma.done [#allocation19], 512
        $region132: #{tpu_custom_call.1} parent=99 // pred_fallthru
          _
        %p721 = scmp.lt.s32.totalorder %s45, 1
        %s722 = scalar_select %p721, %s45, 1
        %s723 = scalar_lea.vmem %s0, %s722
        %p724 = pneg %p74
        %p725 = pneg %p71
        %s726 = sand.u32 %s89, 1
        %s727 = scalar_lea.sflag [#allocation7], %s726
        %s728 = sand.u32 %s89, 1
        %s729 = smul.addr %s728, 32
        %s730 = scalar_lea.vmem [#allocation6], %s729
        %p731 = pneg %p102
        %p732 = pneg %p99
        %p733 = pneg %p123
        %p734 = pneg %p120
        %p735 = pneg %p144
        %p736 = pneg %p141
        %p737 = pneg %p165
        %p738 = pneg %p162
        %p739 = pneg %p186
        %p740 = pneg %p183
        %p741 = pneg %p207
        %p742 = pneg %p204
        %p743 = pneg %p228
        %p744 = pneg %p225
        %p745 = pneg %p249
        %p746 = pneg %p246
        %p747 = pneg %p270
        %p748 = pneg %p267
        %p749 = pneg %p291
        %p750 = pneg %p288
        %p751 = pneg %p312
        %p752 = pneg %p309
        %p753 = pneg %p333
        %p754 = pneg %p330
        %p755 = pneg %p354
        %p756 = pneg %p351
        %p757 = pneg %p375
        %p758 = pneg %p372
        %p759 = pneg %p396
        %p760 = pneg %p393
        %p761 = pneg %p417
        %p762 = pneg %p414
        %p763 = pneg %p438
        %p764 = pneg %p435
        %p765 = pneg %p459
        %p766 = pneg %p456
        %p767 = scmp.lt.s32.totalorder %s46, 1
        %s768 = scalar_select %p767, %s46, 1
        %s769 = scalar_lea.vmem %s19, %s768
        %p770 = pneg %p485
        %p771 = pneg %p482
        %p772 = pneg %p511
        %p773 = pneg %p508
        %s774 = sand.u32 %s498, 1
        %s775 = scalar_lea.sflag [#allocation8], %s774
        %s776 = sand.u32 %s498, 1
        %s777 = scalar_lea.vmem [#allocation20], %s776
        %p778 = scmp.lt.s32.totalorder %s45, 1
        %s779 = scalar_select %p778, %s45, 1
        %s780 = scalar_lea.vmem %s0, %s779
        %p781 = scmp.lt.s32.totalorder %s46, 1
        %s782 = scalar_select %p781, %s46, 1
        %s783 = scalar_lea.vmem %s19, %s782
        %p784 = scmp.eq.s32.totalorder %s46, 0
        // Predicated region
        $region133: #{tpu_custom_call.1} parent=99 // pred_check
          %p785 = pneg %p784
        $region134: #{tpu_custom_call.1} parent=99 // pred_check_branch
          %787 = sbr.rel (%p785) target = $region136
        $region135: #{tpu_custom_call.1} parent=99 // pred_region
          %v788 = vld [vmem:[%s780] sm:$0x1]
          %v789 = vld [vmem:[%s5] sm:$0x1]
          %v790 = vld [vmem:[#allocation9] sm:$0x1]
          %vm791 = vcmask 253952
          %v792 = vsel %vm791, %v788, 0.0
          %793 = vadd.xlane.f32.xlu0 %v792
          %v794 = vpop.xlane.xlu0 %793
          %v795 = vrcp.pop 32.0
          %v796 = vmul.f32 %v794, %v795
          %v797 = vsub.f32 %v788, %v796
          %v798 = vmul.f32 %v797, %v797
          %v799 = vsel %vm791, %v798, 0.0
          %800 = vadd.xlane.f32.xlu0 %v799
          %v801 = vpop.xlane.xlu0 %800
          %v802 = vmul.f32 %v801, %v795
          %v803 = vadd.f32 %v802, 1e-05
          %v804 = vrsqrt.pop %v803
          %v805 = vmul.f32 %v797, %v804
          %v806 = vmul.f32 %v805, %v789
          %v807 = vadd.f32 %v806, %v790
          %v808 = vld [vmem:[%s9] sm:$0xff]
          %v809 = vld [vmem:[%s9 + $0x8] sm:$0xff]
          %v810 = vld [vmem:[%s9 + $0x10] sm:$0xff]
          %v811 = vld [vmem:[%s9 + $0x18] sm:$0xff]
          %v812 = vld [vmem:[#allocation14] sm:$0x1]
          %vm813 = vcmask 261120
          %v815 = vsel %vm813, %v807, 0
          %817 = vmatprep.subr.mxu0 0.0
          %818 = vmatpush1.msra.mxu0 0.0
          %819 = vmatprep.subr.mxu0 0.0
          %820 = vmatpush1.msra.mxu0 0.0
          %821 = vmatprep.subr.mxu0 0.0
          %822 = vmatpush1.msra.mxu0 0.0
          %823 = vmatprep.subr.mxu0 0.0
          %824 = vmatpush1.msra.mxu0 0.0
          %825 = vmatprep.subr.mxu0 0.0
          %826 = vmatpush1.msra.mxu0 0.0
          %827 = vmatprep.subr.mxu0 0.0
          %828 = vmatpush1.msra.mxu0 0.0
          %829 = vmatprep.subr.mxu0 0.0
          %830 = vmatpush1.msra.mxu0 0.0
          %831 = vmatprep.subr.mxu0 0.0
          %832 = vmatpush1.msra.mxu0 0.0
          %833 = vmatprep.subr.mxu0 0.0
          %834 = vmatpush1.msra.mxu0 0.0
          %835 = vmatprep.subr.mxu0 0.0
          %836 = vmatpush1.msra.mxu0 0.0
          %837 = vmatprep.subr.mxu0 0.0
          %838 = vmatpush1.msra.mxu0 0.0
          %839 = vmatprep.subr.mxu0 0.0
          %840 = vmatpush1.msra.mxu0 0.0
          %841 = vmatprep.subr.mxu0 0.0
          %842 = vmatpush1.msra.mxu0 %v811
          %843 = vmatprep.subr.mxu0 0.0
          %844 = vmatpush1.msra.mxu0 %v810
          %845 = vmatprep.subr.mxu0 0.0
          %846 = vmatpush1.msra.mxu0 %v809
          %847 = vmatprep.subr.mxu0 0.0
          %848 = vmatpush1.msra.mxu0 %v808
          %849 = vmatprep.subr.mxu0 0.0
          %850 = vmatpush2.msra.mxu0 0.0
          %851 = vmatprep.subr.mxu0 0.0
          %852 = vmatpush2.msra.mxu0 0.0
          %853 = vmatprep.subr.mxu0 0.0
          %854 = vmatpush2.msra.mxu0 0.0
          %855 = vmatprep.subr.mxu0 0.0
          %856 = vmatpush2.msra.mxu0 0.0
          %857 = vmatprep.subr.mxu0 0.0
          %858 = vmatpush2.msra.mxu0 0.0
          %859 = vmatprep.subr.mxu0 0.0
          %860 = vmatpush2.msra.mxu0 0.0
          %861 = vmatprep.subr.mxu0 0.0
          %862 = vmatpush2.msra.mxu0 0.0
          %863 = vmatprep.subr.mxu0 0.0
          %864 = vmatpush2.msra.mxu0 0.0
          %865 = vmatprep.subr.mxu0 0.0
          %866 = vmatpush2.msra.mxu0 0.0
          %867 = vmatprep.subr.mxu0 0.0
          %868 = vmatpush2.msra.mxu0 0.0
          %869 = vmatprep.subr.mxu0 0.0
          %870 = vmatpush2.msra.mxu0 0.0
          %871 = vmatprep.subr.mxu0 0.0
          %872 = vmatpush2.msra.mxu0 0.0
          %873 = vmatprep.subr.mxu0 0.0
          %874 = vmatpush2.msra.mxu0 0.0
          %875 = vmatprep.subr.mxu0 0.0
          %876 = vmatpush2.msra.mxu0 0.0
          %877 = vmatprep.subr.mxu0 0.0
          %878 = vmatpush2.msra.mxu0 0.0
          %879 = vmatprep.subr.mxu0 0.0
          %880 = vmatpush2.msra.mxu0 0.0
          %881 = vmatprep.mubr.f32.mxu0 0.0
          %882 = vmatmul.mubr.f32.gmra.mxu0 %v815
          %v883 = vpop.f32.mrf.mxu0
          %v884 = vadd.f32 %v812, %v883
          %v885 = vpop.f32.mrf.mxu0
          %886 = vdwg.mxu0
          %887 = vst.msk [vmem:[#allocation2] sm:$0x1] %vm791, %v884
          %vm888 = vcmask 24576
          %889 = vst.msk [vmem:[#allocation3] sm:$0x1] %vm888, -inf
          %890 = vst.msk [vmem:[#allocation4] sm:$0x1] %vm888, 0.0
          %891 = vst.msk [vmem:[#allocation5] sm:$0x1] %vm791, 0.0
        $region136: #{tpu_custom_call.1} parent=99 // pred_fallthru
          _
        %v892 = vld [vmem:[%s688] sm:$0xff]
        %v893 = vld [vmem:[%s688 + $0x8] sm:$0xff]
        %v894 = vld [vmem:[%s688 + $0x10] sm:$0xff]
        %v895 = vld [vmem:[%s688 + $0x18] sm:$0xff]
        %v896 = vld [vmem:[%s2] sm:$0x7]
        %v897 = vlaneseq
        %v898 = vshrl.u32 %v897, 7
        %v899 = vadd.s32 %v898, 8
        %v900 = vadd.s32 %v898, 16
        %v901 = vadd.s32 %v898, 24
        %vm902 = vcmp.ge.s32.totalorder %v898, 8
        %vm903 = vcmp.ge.s32.totalorder %v899, 8
        %vm904 = vcmp.ge.s32.totalorder %v900, 8
        %vm905 = vcmp.ge.s32.totalorder %v901, 8
        %v906 = vsel %vm902, 1, 0
        %v907 = vsel %vm903, 1, 0
        %v908 = vsel %vm904, 1, 0
        %v909 = vsel %vm905, 1, 0
        %vm910 = vcmp.eq.s32.totalorder %v906, 1
        %vm911 = vcmp.eq.s32.totalorder %v907, 1
        %vm912 = vcmp.eq.s32.totalorder %v908, 1
        %vm913 = vcmp.eq.s32.totalorder %v909, 1
        %v914 = vsel %vm910, %v895, 0.0
        %v915 = vsel %vm911, %v892, 0.0
        %v916 = vsel %vm912, %v893, 0.0
        %v917 = vsel %vm913, %v894, 0.0
        %vm918 = vcmp.lt.s32.totalorder %v898, 24
        %vm919 = vcmp.lt.s32.totalorder %v899, 24
        %vm920 = vcmp.lt.s32.totalorder %v900, 24
        %vm921 = vcmp.lt.s32.totalorder %v901, 24
        %v922 = vsel %vm918, 1, 0
        %v923 = vsel %vm919, 1, 0
        %v924 = vsel %vm920, 1, 0
        %v925 = vsel %vm921, 1, 0
        %vm926 = vcmp.eq.s32.totalorder %v922, 1
        %vm927 = vcmp.eq.s32.totalorder %v923, 1
        %vm928 = vcmp.eq.s32.totalorder %v924, 1
        %vm929 = vcmp.eq.s32.totalorder %v925, 1
        %v930 = vsel %vm926, %v893, 0.0
        %v931 = vsel %vm927, %v894, 0.0
        %v932 = vsel %vm928, %v895, 0.0
        %v933 = vsel %vm929, %v892, 0.0
        %v934 = vlaneseq
        %v935 = vshrl.u32 %v934, 7
        %v936 = vsub.s32 0, %v935
        %v937 = vrot.slane %v896, %v936
        %v938 = vmul.f32 %v914, %v937
        %v939 = vmul.f32 %v915, %v937
        %v940 = vmul.f32 %v916, %v937
        %v941 = vmul.f32 %v917, %v937
        %v942 = vlaneseq
        %v943 = vshrl.u32 %v942, 7
        %v944 = vsub.s32 1, %v943
        %v945 = vrot.slane %v896, %v944
        %v946 = vmul.f32 %v892, %v945
        %v947 = vmul.f32 %v893, %v945
        %v948 = vmul.f32 %v894, %v945
        %v949 = vmul.f32 %v895, %v945
        %v950 = vadd.f32 %v938, %v946
        %v951 = vadd.f32 %v939, %v947
        %v952 = vadd.f32 %v940, %v948
        %v953 = vadd.f32 %v941, %v949
        %v954 = vlaneseq
        %v955 = vshrl.u32 %v954, 7
        %v956 = vsub.s32 2, %v955
        %v957 = vrot.slane %v896, %v956
        %v958 = vmul.f32 %v930, %v957
        %v959 = vmul.f32 %v931, %v957
        %v960 = vmul.f32 %v932, %v957
        %v961 = vmul.f32 %v933, %v957
        %v962 = vadd.f32 %v950, %v958
        %v963 = vadd.f32 %v951, %v959
        %v964 = vadd.f32 %v952, %v960
        %v965 = vadd.f32 %v953, %v961
        %v966 = vld [vmem:[%s3] sm:$0x1]
        %v968 = vlaneseq
        %v969 = vshrl.u32 %v968, 7
        %v970 = vsub.s32 0, %v969
        %v971 = vrot.slane %v966, %v970
        %v973 = vadd.f32 %v962, %v971
        %v974 = vadd.f32 %v963, %v971
        %v975 = vadd.f32 %v964, %v971
        %v976 = vadd.f32 %v965, %v971
        %v977 = vld [vmem:[%s4] sm:$0xf]
        %v980 = vunpack.c.l.s4 1966171168
        %v981 = vunpack.c.0.s8 %v980
        %v982 = vlaneseq
        %v983 = vshrl.u32 %v982, 7
        %v984 = vsub.s32 %v981, %v983
        %v985 = vrot.slane %v977, %v984
        %v986 = vcombine.high %v985, %v985
        %v988 = vunpack.c.l.s4 1966171168
        %v989 = vunpack.c.0.s8 %v988
        %v990 = vlaneseq
        %v991 = vshrl.u32 %v990, 7
        %v992 = vsub.s32 %v989, %v991
        %v993 = vrot.slane %v985, %v992
        %v995 = vunpack.c.l.s4 1966171168
        %v996 = vunpack.c.0.s8 %v995
        %v997 = vlaneseq
        %v998 = vshrl.u32 %v997, 7
        %v999 = vsub.s32 %v996, %v998
        %v1000 = vrot.slane %v986, %v999
        %v1001 = vcombine.high %v993, %v993
        %v1002 = vcombine.high %v1000, %v1000
        %v1003 = vlaneseq
        %v1004 = vshrl.u32 %v1003, 7
        %v1005 = vsub.s32 0, %v1004
        %v1006 = vrot.slane %v993, %v1005
        %v1007 = vlaneseq
        %v1008 = vshrl.u32 %v1007, 7
        %v1009 = vsub.s32 0, %v1008
        %v1010 = vrot.slane %v1000, %v1009
        %v1011 = vlaneseq
        %v1012 = vshrl.u32 %v1011, 7
        %v1013 = vsub.s32 0, %v1012
        %v1014 = vrot.slane %v1001, %v1013
        %v1015 = vlaneseq
        %v1016 = vshrl.u32 %v1015, 7
        %v1017 = vsub.s32 0, %v1016
        %v1018 = vrot.slane %v1002, %v1017
        %v1023 = vadd.f32 %v892, %v1006
        %v1024 = vadd.f32 %v893, %v1010
        %v1025 = vadd.f32 %v894, %v1014
        %v1026 = vadd.f32 %v895, %v1018
        %v1027 = vadd.f32 %v1023, %v973
        %v1028 = vadd.f32 %v1024, %v974
        %v1029 = vadd.f32 %v1025, %v975
        %v1030 = vadd.f32 %v1026, %v976
        %v1031 = vld [vmem:[#allocation11] sm:$0x1]
        %v1032 = vld [vmem:[#allocation12] sm:$0x1]
        %vm1033 = vcmask 261120
        %v1034 = vsel %vm1033, %v1027, 0.0
        %1035 = vadd.xlane.f32.xlu0 %v1034
        %v1036 = vpop.xlane.xlu0 %1035
        %v1037 = vsel %vm1033, %v1028, 0.0
        %1038 = vadd.xlane.f32.xlu0 %v1037
        %v1039 = vpop.xlane.xlu0 %1038
        %v1040 = vsel %vm1033, %v1029, 0.0
        %1041 = vadd.xlane.f32.xlu0 %v1040
        %v1042 = vpop.xlane.xlu0 %1041
        %v1043 = vsel %vm1033, %v1030, 0.0
        %1044 = vadd.xlane.f32.xlu0 %v1043
        %v1045 = vpop.xlane.xlu0 %1044
        %v1046 = vrcp.pop 32.0
        %v1047 = vmul.f32 %v1036, %v1046
        %v1048 = vmul.f32 %v1039, %v1046
        %v1049 = vmul.f32 %v1042, %v1046
        %v1050 = vmul.f32 %v1045, %v1046
        %v1051 = vsub.f32 %v1027, %v1047
        %v1052 = vsub.f32 %v1028, %v1048
        %v1053 = vsub.f32 %v1029, %v1049
        %v1054 = vsub.f32 %v1030, %v1050
        %v1055 = vmul.f32 %v1051, %v1051
        %v1056 = vmul.f32 %v1052, %v1052
        %v1057 = vmul.f32 %v1053, %v1053
        %v1058 = vmul.f32 %v1054, %v1054
        %v1059 = vsel %vm1033, %v1055, 0.0
        %1060 = vadd.xlane.f32.xlu0 %v1059
        %v1061 = vpop.xlane.xlu0 %1060
        %v1062 = vsel %vm1033, %v1056, 0.0
        %1063 = vadd.xlane.f32.xlu0 %v1062
        %v1064 = vpop.xlane.xlu0 %1063
        %v1065 = vsel %vm1033, %v1057, 0.0
        %1066 = vadd.xlane.f32.xlu0 %v1065
        %v1067 = vpop.xlane.xlu0 %1066
        %v1068 = vsel %vm1033, %v1058, 0.0
        %1069 = vadd.xlane.f32.xlu0 %v1068
        %v1070 = vpop.xlane.xlu0 %1069
        %v1071 = vmul.f32 %v1061, %v1046
        %v1072 = vmul.f32 %v1064, %v1046
        %v1073 = vmul.f32 %v1067, %v1046
        %v1074 = vmul.f32 %v1070, %v1046
        %v1075 = vadd.f32 %v1071, 1e-05
        %v1076 = vadd.f32 %v1072, 1e-05
        %v1077 = vadd.f32 %v1073, 1e-05
        %v1078 = vadd.f32 %v1074, 1e-05
        %v1079 = vrsqrt.pop %v1075
        %v1080 = vrsqrt.pop %v1076
        %v1081 = vrsqrt.pop %v1077
        %v1082 = vrsqrt.pop %v1078
        %v1083 = vmul.f32 %v1051, %v1079
        %v1084 = vmul.f32 %v1052, %v1080
        %v1085 = vmul.f32 %v1053, %v1081
        %v1086 = vmul.f32 %v1054, %v1082
        %v1088 = vlaneseq
        %v1089 = vshrl.u32 %v1088, 7
        %v1090 = vsub.s32 0, %v1089
        %v1091 = vrot.slane %v1031, %v1090
        %v1093 = vmul.f32 %v1083, %v1091
        %v1094 = vmul.f32 %v1084, %v1091
        %v1095 = vmul.f32 %v1085, %v1091
        %v1096 = vmul.f32 %v1086, %v1091
        %v1098 = vlaneseq
        %v1099 = vshrl.u32 %v1098, 7
        %v1100 = vsub.s32 0, %v1099
        %v1101 = vrot.slane %v1032, %v1100
        %v1103 = vadd.f32 %v1093, %v1101
        %v1104 = vadd.f32 %v1094, %v1101
        %v1105 = vadd.f32 %v1095, %v1101
        %v1106 = vadd.f32 %v1096, %v1101
        %v1107 = vld [vmem:[#allocation15] sm:$0xff]
        %v1108 = vld [vmem:[#allocation15 + $0x8] sm:$0xff]
        %v1109 = vld [vmem:[#allocation15 + $0x10] sm:$0xff]
        %v1110 = vld [vmem:[#allocation15 + $0x18] sm:$0xff]
        %v1111 = vld [vmem:[%s12] sm:$0x1]
        %v1113 = vlaneseq
        %v1114 = vshrl.u32 %v1113, 7
        %v1115 = vsub.s32 0, %v1114
        %v1116 = vrot.slane %v1111, %v1115
        %v1119 = vsel %vm1033, %v1103, 0
        %v1122 = vsel %vm1033, %v1104, 0
        %v1125 = vsel %vm1033, %v1105, 0
        %v1128 = vsel %vm1033, %v1106, 0
        %1130 = vmatprep.subr.mxu0 0.0
        %1131 = vmatpush1.msra.mxu0 0.0
        %1132 = vmatprep.subr.mxu0 0.0
        %1133 = vmatpush1.msra.mxu0 0.0
        %1134 = vmatprep.subr.mxu0 0.0
        %1135 = vmatpush1.msra.mxu0 0.0
        %1136 = vmatprep.subr.mxu0 0.0
        %1137 = vmatpush1.msra.mxu0 0.0
        %1138 = vmatprep.subr.mxu0 0.0
        %1139 = vmatpush1.msra.mxu0 0.0
        %1140 = vmatprep.subr.mxu0 0.0
        %1141 = vmatpush1.msra.mxu0 0.0
        %1142 = vmatprep.subr.mxu0 0.0
        %1143 = vmatpush1.msra.mxu0 0.0
        %1144 = vmatprep.subr.mxu0 0.0
        %1145 = vmatpush1.msra.mxu0 0.0
        %1146 = vmatprep.subr.mxu0 0.0
        %1147 = vmatpush1.msra.mxu0 0.0
        %1148 = vmatprep.subr.mxu0 0.0
        %1149 = vmatpush1.msra.mxu0 0.0
        %1150 = vmatprep.subr.mxu0 0.0
        %1151 = vmatpush1.msra.mxu0 0.0
        %1152 = vmatprep.subr.mxu0 0.0
        %1153 = vmatpush1.msra.mxu0 0.0
        %1154 = vmatprep.subr.mxu0 0.0
        %1155 = vmatpush1.msra.mxu0 %v1110
        %1156 = vmatprep.subr.mxu0 0.0
        %1157 = vmatpush1.msra.mxu0 %v1109
        %1158 = vmatprep.subr.mxu0 0.0
        %1159 = vmatpush1.msra.mxu0 %v1108
        %1160 = vmatprep.subr.mxu0 0.0
        %1161 = vmatpush1.msra.mxu0 %v1107
        %1162 = vmatprep.subr.mxu0 0.0
        %1163 = vmatpush2.msra.mxu0 0.0
        %1164 = vmatprep.subr.mxu0 0.0
        %1165 = vmatpush2.msra.mxu0 0.0
        %1166 = vmatprep.subr.mxu0 0.0
        %1167 = vmatpush2.msra.mxu0 0.0
        %1168 = vmatprep.subr.mxu0 0.0
        %1169 = vmatpush2.msra.mxu0 0.0
        %1170 = vmatprep.subr.mxu0 0.0
        %1171 = vmatpush2.msra.mxu0 0.0
        %1172 = vmatprep.subr.mxu0 0.0
        %1173 = vmatpush2.msra.mxu0 0.0
        %1174 = vmatprep.subr.mxu0 0.0
        %1175 = vmatpush2.msra.mxu0 0.0
        %1176 = vmatprep.subr.mxu0 0.0
        %1177 = vmatpush2.msra.mxu0 0.0
        %1178 = vmatprep.subr.mxu0 0.0
        %1179 = vmatpush2.msra.mxu0 0.0
        %1180 = vmatprep.subr.mxu0 0.0
        %1181 = vmatpush2.msra.mxu0 0.0
        %1182 = vmatprep.subr.mxu0 0.0
        %1183 = vmatpush2.msra.mxu0 0.0
        %1184 = vmatprep.subr.mxu0 0.0
        %1185 = vmatpush2.msra.mxu0 0.0
        %1186 = vmatprep.subr.mxu0 0.0
        %1187 = vmatpush2.msra.mxu0 0.0
        %1188 = vmatprep.subr.mxu0 0.0
        %1189 = vmatpush2.msra.mxu0 0.0
        %1190 = vmatprep.subr.mxu0 0.0
        %1191 = vmatpush2.msra.mxu0 0.0
        %1192 = vmatprep.subr.mxu0 0.0
        %1193 = vmatpush2.msra.mxu0 0.0
        %1194 = vmatprep.mubr.f32.mxu0 0.0
        %1195 = vmatmul.mubr.f32.gmra.mxu0 %v1119
        %v1196 = vpop.f32.mrf.mxu0
        %v1197 = vadd.f32 %v1116, %v1196
        %v1198 = vpop.f32.mrf.mxu0
        %1199 = vmatprep.mubr.f32.mxu0 0.0
        %1200 = vmatmul.mubr.f32.gmra.mxu0 %v1122
        %v1201 = vpop.f32.mrf.mxu0
        %v1202 = vadd.f32 %v1116, %v1201
        %v1203 = vpop.f32.mrf.mxu0
        %1204 = vmatprep.mubr.f32.mxu0 0.0
        %1205 = vmatmul.mubr.f32.gmra.mxu0 %v1125
        %v1206 = vpop.f32.mrf.mxu0
        %v1207 = vadd.f32 %v1116, %v1206
        %v1208 = vpop.f32.mrf.mxu0
        %1209 = vmatprep.mubr.f32.mxu0 0.0
        %1210 = vmatmul.mubr.f32.gmra.mxu0 %v1128
        %v1211 = vpop.f32.mrf.mxu0
        %v1212 = vadd.f32 %v1116, %v1211
        %v1213 = vpop.f32.mrf.mxu0
        %1214 = vdwg.mxu0
        %v1215 = vld [vmem:[#allocation17] sm:$0xff]
        %v1216 = vld [vmem:[#allocation17 + $0x8] sm:$0xff]
        %v1217 = vld [vmem:[#allocation17 + $0x10] sm:$0xff]
        %v1218 = vld [vmem:[#allocation17 + $0x18] sm:$0xff]
        %v1219 = vld [vmem:[%s14] sm:$0x1]
        %v1221 = vlaneseq
        %v1222 = vshrl.u32 %v1221, 7
        %v1223 = vsub.s32 0, %v1222
        %v1224 = vrot.slane %v1219, %v1223
        %1226 = vmatprep.subr.mxu0 0.0
        %1227 = vmatpush1.msra.mxu0 0.0
        %1228 = vmatprep.subr.mxu0 0.0
        %1229 = vmatpush1.msra.mxu0 0.0
        %1230 = vmatprep.subr.mxu0 0.0
        %1231 = vmatpush1.msra.mxu0 0.0
        %1232 = vmatprep.subr.mxu0 0.0
        %1233 = vmatpush1.msra.mxu0 0.0
        %1234 = vmatprep.subr.mxu0 0.0
        %1235 = vmatpush1.msra.mxu0 0.0
        %1236 = vmatprep.subr.mxu0 0.0
        %1237 = vmatpush1.msra.mxu0 0.0
        %1238 = vmatprep.subr.mxu0 0.0
        %1239 = vmatpush1.msra.mxu0 0.0
        %1240 = vmatprep.subr.mxu0 0.0
        %1241 = vmatpush1.msra.mxu0 0.0
        %1242 = vmatprep.subr.mxu0 0.0
        %1243 = vmatpush1.msra.mxu0 0.0
        %1244 = vmatprep.subr.mxu0 0.0
        %1245 = vmatpush1.msra.mxu0 0.0
        %1246 = vmatprep.subr.mxu0 0.0
        %1247 = vmatpush1.msra.mxu0 0.0
        %1248 = vmatprep.subr.mxu0 0.0
        %1249 = vmatpush1.msra.mxu0 0.0
        %1250 = vmatprep.subr.mxu0 0.0
        %1251 = vmatpush1.msra.mxu0 %v1218
        %1252 = vmatprep.subr.mxu0 0.0
        %1253 = vmatpush1.msra.mxu0 %v1217
        %1254 = vmatprep.subr.mxu0 0.0
        %1255 = vmatpush1.msra.mxu0 %v1216
        %1256 = vmatprep.subr.mxu0 0.0
        %1257 = vmatpush1.msra.mxu0 %v1215
        %1258 = vmatprep.subr.mxu0 0.0
        %1259 = vmatpush2.msra.mxu0 0.0
        %1260 = vmatprep.subr.mxu0 0.0
        %1261 = vmatpush2.msra.mxu0 0.0
        %1262 = vmatprep.subr.mxu0 0.0
        %1263 = vmatpush2.msra.mxu0 0.0
        %1264 = vmatprep.subr.mxu0 0.0
        %1265 = vmatpush2.msra.mxu0 0.0
        %1266 = vmatprep.subr.mxu0 0.0
        %1267 = vmatpush2.msra.mxu0 0.0
        %1268 = vmatprep.subr.mxu0 0.0
        %1269 = vmatpush2.msra.mxu0 0.0
        %1270 = vmatprep.subr.mxu0 0.0
        %1271 = vmatpush2.msra.mxu0 0.0
        %1272 = vmatprep.subr.mxu0 0.0
        %1273 = vmatpush2.msra.mxu0 0.0
        %1274 = vmatprep.subr.mxu0 0.0
        %1275 = vmatpush2.msra.mxu0 0.0
        %1276 = vmatprep.subr.mxu0 0.0
        %1277 = vmatpush2.msra.mxu0 0.0
        %1278 = vmatprep.subr.mxu0 0.0
        %1279 = vmatpush2.msra.mxu0 0.0
        %1280 = vmatprep.subr.mxu0 0.0
        %1281 = vmatpush2.msra.mxu0 0.0
        %1282 = vmatprep.subr.mxu0 0.0
        %1283 = vmatpush2.msra.mxu0 0.0
        %1284 = vmatprep.subr.mxu0 0.0
        %1285 = vmatpush2.msra.mxu0 0.0
        %1286 = vmatprep.subr.mxu0 0.0
        %1287 = vmatpush2.msra.mxu0 0.0
        %1288 = vmatprep.subr.mxu0 0.0
        %1289 = vmatpush2.msra.mxu0 0.0
        %1290 = vmatprep.mubr.f32.mxu0 0.0
        %1291 = vmatmul.mubr.f32.gmra.mxu0 %v1119
        %v1292 = vpop.f32.mrf.mxu0
        %v1293 = vadd.f32 %v1224, %v1292
        %v1294 = vpop.f32.mrf.mxu0
        %1295 = vmatprep.mubr.f32.mxu0 0.0
        %1296 = vmatmul.mubr.f32.gmra.mxu0 %v1122
        %v1297 = vpop.f32.mrf.mxu0
        %v1298 = vadd.f32 %v1224, %v1297
        %v1299 = vpop.f32.mrf.mxu0
        %1300 = vmatprep.mubr.f32.mxu0 0.0
        %1301 = vmatmul.mubr.f32.gmra.mxu0 %v1125
        %v1302 = vpop.f32.mrf.mxu0
        %v1303 = vadd.f32 %v1224, %v1302
        %v1304 = vpop.f32.mrf.mxu0
        %1305 = vmatprep.mubr.f32.mxu0 0.0
        %1306 = vmatmul.mubr.f32.gmra.mxu0 %v1128
        %v1307 = vpop.f32.mrf.mxu0
        %v1308 = vadd.f32 %v1224, %v1307
        %v1309 = vpop.f32.mrf.mxu0
        %1310 = vdwg.mxu0
        %v1311 = vld [vmem:[#allocation2] sm:$0x1]
        %v1313 = vlaneseq
        %v1314 = vshrl.u32 %v1313, 7
        %v1315 = vsub.s32 0, %v1314
        %v1316 = vrot.slane %v1311, %v1315
        %v1318 = vmul.f32 %v1197, %v1316
        %v1319 = vmul.f32 %v1202, %v1316
        %v1320 = vmul.f32 %v1207, %v1316
        %v1321 = vmul.f32 %v1212, %v1316
        %v1322 = vld [vmem:[%s17] sm:$0xff]
        %v1323 = vld [vmem:[%s17 + $0x8] sm:$0xff]
        %v1324 = vld [vmem:[%s17 + $0x10] sm:$0xff]
        %v1325 = vld [vmem:[%s17 + $0x18] sm:$0xff]
        %v1327 = vsel %vm1033, %v1318, 0
        %v1330 = vsel %vm1033, %v1319, 0
        %v1333 = vsel %vm1033, %v1320, 0
        %v1336 = vsel %vm1033, %v1321, 0
        %1338 = vmatprep.subr.mxu0 0.0
        %1339 = vmatpush1.msra.mxu0 0.0
        %1340 = vmatprep.subr.mxu0 0.0
        %1341 = vmatpush1.msra.mxu0 0.0
        %1342 = vmatprep.subr.mxu0 0.0
        %1343 = vmatpush1.msra.mxu0 0.0
        %1344 = vmatprep.subr.mxu0 0.0
        %1345 = vmatpush1.msra.mxu0 0.0
        %1346 = vmatprep.subr.mxu0 0.0
        %1347 = vmatpush1.msra.mxu0 0.0
        %1348 = vmatprep.subr.mxu0 0.0
        %1349 = vmatpush1.msra.mxu0 0.0
        %1350 = vmatprep.subr.mxu0 0.0
        %1351 = vmatpush1.msra.mxu0 0.0
        %1352 = vmatprep.subr.mxu0 0.0
        %1353 = vmatpush1.msra.mxu0 0.0
        %1354 = vmatprep.subr.mxu0 0.0
        %1355 = vmatpush1.msra.mxu0 0.0
        %1356 = vmatprep.subr.mxu0 0.0
        %1357 = vmatpush1.msra.mxu0 0.0
        %1358 = vmatprep.subr.mxu0 0.0
        %1359 = vmatpush1.msra.mxu0 0.0
        %1360 = vmatprep.subr.mxu0 0.0
        %1361 = vmatpush1.msra.mxu0 0.0
        %1362 = vmatprep.subr.mxu0 0.0
        %1363 = vmatpush1.msra.mxu0 %v1325
        %1364 = vmatprep.subr.mxu0 0.0
        %1365 = vmatpush1.msra.mxu0 %v1324
        %1366 = vmatprep.subr.mxu0 0.0
        %1367 = vmatpush1.msra.mxu0 %v1323
        %1368 = vmatprep.subr.mxu0 0.0
        %1369 = vmatpush1.msra.mxu0 %v1322
        %1370 = vmatprep.subr.mxu0 0.0
        %1371 = vmatpush2.msra.mxu0 0.0
        %1372 = vmatprep.subr.mxu0 0.0
        %1373 = vmatpush2.msra.mxu0 0.0
        %1374 = vmatprep.subr.mxu0 0.0
        %1375 = vmatpush2.msra.mxu0 0.0
        %1376 = vmatprep.subr.mxu0 0.0
        %1377 = vmatpush2.msra.mxu0 0.0
        %1378 = vmatprep.subr.mxu0 0.0
        %1379 = vmatpush2.msra.mxu0 0.0
        %1380 = vmatprep.subr.mxu0 0.0
        %1381 = vmatpush2.msra.mxu0 0.0
        %1382 = vmatprep.subr.mxu0 0.0
        %1383 = vmatpush2.msra.mxu0 0.0
        %1384 = vmatprep.subr.mxu0 0.0
        %1385 = vmatpush2.msra.mxu0 0.0
        %1386 = vmatprep.subr.mxu0 0.0
        %1387 = vmatpush2.msra.mxu0 0.0
        %1388 = vmatprep.subr.mxu0 0.0
        %1389 = vmatpush2.msra.mxu0 0.0
        %1390 = vmatprep.subr.mxu0 0.0
        %1391 = vmatpush2.msra.mxu0 0.0
        %1392 = vmatprep.subr.mxu0 0.0
        %1393 = vmatpush2.msra.mxu0 0.0
        %1394 = vmatprep.subr.mxu0 0.0
        %1395 = vmatpush2.msra.mxu0 0.0
        %1396 = vmatprep.subr.mxu0 0.0
        %1397 = vmatpush2.msra.mxu0 0.0
        %1398 = vmatprep.subr.mxu0 0.0
        %1399 = vmatpush2.msra.mxu0 0.0
        %1400 = vmatprep.subr.mxu0 0.0
        %1401 = vmatpush2.msra.mxu0 0.0
        %1402 = vmatprep.mubr.f32.mxu0 0.0
        %1403 = vmatmul.mubr.f32.gmra.mxu0 %v1327
        %v1404 = vpop.f32.mrf.mxu0
        %v1405 = vadd.f32 0.0, %v1404
        %v1406 = vpop.f32.mrf.mxu0
        %1407 = vmatprep.mubr.f32.mxu0 0.0
        %1408 = vmatmul.mubr.f32.gmra.mxu0 %v1330
        %v1409 = vpop.f32.mrf.mxu0
        %v1410 = vadd.f32 0.0, %v1409
        %v1411 = vpop.f32.mrf.mxu0
        %1412 = vmatprep.mubr.f32.mxu0 0.0
        %1413 = vmatmul.mubr.f32.gmra.mxu0 %v1333
        %v1414 = vpop.f32.mrf.mxu0
        %v1415 = vadd.f32 0.0, %v1414
        %v1416 = vpop.f32.mrf.mxu0
        %1417 = vmatprep.mubr.f32.mxu0 0.0
        %1418 = vmatmul.mubr.f32.gmra.mxu0 %v1336
        %v1419 = vpop.f32.mrf.mxu0
        %v1420 = vadd.f32 0.0, %v1419
        %v1421 = vpop.f32.mrf.mxu0
        %1422 = vdwg.mxu0
        %v1423 = vld [vmem:[%s783] sm:$0x1]
        %v1424 = vld [vmem:[#allocation3] sm:$0x1]
        %vm1425 = vcmask 31744
        %v1426 = vsel %vm1425, %v1405, -inf
        %v1427 = vsel %vm1425, %v1410, -inf
        %v1428 = vsel %vm1425, %v1415, -inf
        %v1429 = vsel %vm1425, %v1420, -inf
        %v1430 = vmax.f32 %v1426, %v1427
        %v1431 = vmax.f32 %v1428, %v1429
        %v1432 = vmax.f32 %v1430, %v1431
        %v1433 = vrot.slane %v1432, 4
        %v1434 = vmax.f32 %v1432, %v1433
        %v1435 = vrot.slane %v1434, 2
        %v1436 = vmax.f32 %v1434, %v1435
        %v1437 = vrot.slane %v1436, 1
        %v1438 = vmax.f32 %v1436, %v1437
        %v1439 = vmax.f32 %v1424, %v1438
        %v1440 = vsub.f32 %v1424, %v1439
        %v1441 = vmul.f32 %v1440, 1.442695
        %v1442 = vpow.pop %v1441
        %v1444 = vlaneseq
        %v1445 = vshrl.u32 %v1444, 7
        %v1446 = vsub.s32 0, %v1445
        %v1447 = vrot.slane %v1439, %v1446
        %v1449 = vsub.f32 %v1405, %v1447
        %v1450 = vsub.f32 %v1410, %v1447
        %v1451 = vsub.f32 %v1415, %v1447
        %v1452 = vsub.f32 %v1420, %v1447
        %v1453 = vmul.f32 %v1449, 1.442695
        %v1454 = vpow.pop %v1453
        %v1455 = vmul.f32 %v1450, 1.442695
        %v1456 = vpow.pop %v1455
        %v1457 = vmul.f32 %v1451, 1.442695
        %v1458 = vpow.pop %v1457
        %v1459 = vmul.f32 %v1452, 1.442695
        %v1460 = vpow.pop %v1459
        %v1461 = vld [vmem:[#allocation4] sm:$0x1]
        %v1462 = vmul.f32 %v1442, %v1461
        %v1464 = vsel %vm1033, %v1423, 0
        %1466 = vmatprep.subr.mxu0 0.0
        %1467 = vmatpush1.msra.mxu0 0.0
        %1468 = vmatprep.subr.mxu0 0.0
        %1469 = vmatpush1.msra.mxu0 0.0
        %1470 = vmatprep.subr.mxu0 0.0
        %1471 = vmatpush1.msra.mxu0 0.0
        %1472 = vmatprep.subr.mxu0 0.0
        %1473 = vmatpush1.msra.mxu0 0.0
        %1474 = vmatprep.subr.mxu0 0.0
        %1475 = vmatpush1.msra.mxu0 0.0
        %1476 = vmatprep.subr.mxu0 0.0
        %1477 = vmatpush1.msra.mxu0 0.0
        %1478 = vmatprep.subr.mxu0 0.0
        %1479 = vmatpush1.msra.mxu0 0.0
        %1480 = vmatprep.subr.mxu0 0.0
        %1481 = vmatpush1.msra.mxu0 0.0
        %1482 = vmatprep.subr.mxu0 0.0
        %1483 = vmatpush1.msra.mxu0 0.0
        %1484 = vmatprep.subr.mxu0 0.0
        %1485 = vmatpush1.msra.mxu0 0.0
        %1486 = vmatprep.subr.mxu0 0.0
        %1487 = vmatpush1.msra.mxu0 0.0
        %1488 = vmatprep.subr.mxu0 0.0
        %1489 = vmatpush1.msra.mxu0 0.0
        %1490 = vmatprep.subr.mxu0 0.0
        %1491 = vmatpush1.msra.mxu0 %v1460
        %1492 = vmatprep.subr.mxu0 0.0
        %1493 = vmatpush1.msra.mxu0 %v1458
        %1494 = vmatprep.subr.mxu0 0.0
        %1495 = vmatpush1.msra.mxu0 %v1456
        %1496 = vmatprep.subr.mxu0 0.0
        %1497 = vmatpush1.msra.mxu0 %v1454
        %1498 = vmatprep.subr.mxu0 0.0
        %1499 = vmatpush2.msra.mxu0 0.0
        %1500 = vmatprep.subr.mxu0 0.0
        %1501 = vmatpush2.msra.mxu0 0.0
        %1502 = vmatprep.subr.mxu0 0.0
        %1503 = vmatpush2.msra.mxu0 0.0
        %1504 = vmatprep.subr.mxu0 0.0
        %1505 = vmatpush2.msra.mxu0 0.0
        %1506 = vmatprep.subr.mxu0 0.0
        %1507 = vmatpush2.msra.mxu0 0.0
        %1508 = vmatprep.subr.mxu0 0.0
        %1509 = vmatpush2.msra.mxu0 0.0
        %1510 = vmatprep.subr.mxu0 0.0
        %1511 = vmatpush2.msra.mxu0 0.0
        %1512 = vmatprep.subr.mxu0 0.0
        %1513 = vmatpush2.msra.mxu0 0.0
        %1514 = vmatprep.subr.mxu0 0.0
        %1515 = vmatpush2.msra.mxu0 0.0
        %1516 = vmatprep.subr.mxu0 0.0
        %1517 = vmatpush2.msra.mxu0 0.0
        %1518 = vmatprep.subr.mxu0 0.0
        %1519 = vmatpush2.msra.mxu0 0.0
        %1520 = vmatprep.subr.mxu0 0.0
        %1521 = vmatpush2.msra.mxu0 0.0
        %1522 = vmatprep.subr.mxu0 0.0
        %1523 = vmatpush2.msra.mxu0 0.0
        %1524 = vmatprep.subr.mxu0 0.0
        %1525 = vmatpush2.msra.mxu0 0.0
        %1526 = vmatprep.subr.mxu0 0.0
        %1527 = vmatpush2.msra.mxu0 0.0
        %1528 = vmatprep.subr.mxu0 0.0
        %1529 = vmatpush2.msra.mxu0 0.0
        %1530 = vmatprep.mubr.f32.mxu0 0.0
        %1531 = vmatmul.mubr.f32.gmra.mxu0 %v1464
        %v1532 = vpop.f32.mrf.mxu0
        %v1533 = vadd.f32 0.0, %v1532
        %v1534 = vpop.f32.mrf.mxu0
        %1535 = vdwg.mxu0
        %v1536 = vadd.f32 %v1462, %v1533
        %vm1537 = vcmask 24576
        %1538 = vst.msk [vmem:[#allocation4] sm:$0x1] %vm1537, %v1536
        %v1539 = vld [vmem:[%s18] sm:$0xf]
        %v1541 = vsel %vm1425, %v1454, 0
        %v1544 = vsel %vm1425, %v1456, 0
        %v1547 = vsel %vm1425, %v1458, 0
        %v1550 = vsel %vm1425, %v1460, 0
        %vm1552 = vcmask 1043456
        %v1554 = vsel %vm1552, %v1539, 0
        %1556 = vmatprep.subr.mxu0 0.0
        %1557 = vmatpush1.msra.mxu0 0.0
        %1558 = vmatprep.subr.mxu0 0.0
        %1559 = vmatpush1.msra.mxu0 0.0
        %1560 = vmatprep.subr.mxu0 0.0
        %1561 = vmatpush1.msra.mxu0 0.0
        %1562 = vmatprep.subr.mxu0 0.0
        %1563 = vmatpush1.msra.mxu0 0.0
        %1564 = vmatprep.subr.mxu0 0.0
        %1565 = vmatpush1.msra.mxu0 0.0
        %1566 = vmatprep.subr.mxu0 0.0
        %1567 = vmatpush1.msra.mxu0 0.0
        %1568 = vmatprep.subr.mxu0 0.0
        %1569 = vmatpush1.msra.mxu0 0.0
        %1570 = vmatprep.subr.mxu0 0.0
        %1571 = vmatpush1.msra.mxu0 0.0
        %1572 = vmatprep.subr.mxu0 0.0
        %1573 = vmatpush1.msra.mxu0 0.0
        %1574 = vmatprep.subr.mxu0 0.0
        %1575 = vmatpush1.msra.mxu0 0.0
        %1576 = vmatprep.subr.mxu0 0.0
        %1577 = vmatpush1.msra.mxu0 0.0
        %1578 = vmatprep.subr.mxu0 0.0
        %1579 = vmatpush1.msra.mxu0 0.0
        %1580 = vmatprep.subr.mxu0 0.0
        %1581 = vmatpush1.msra.mxu0 0.0
        %1582 = vmatprep.subr.mxu0 0.0
        %1583 = vmatpush1.msra.mxu0 0.0
        %1584 = vmatprep.subr.mxu0 0.0
        %1585 = vmatpush1.msra.mxu0 0.0
        %1586 = vmatprep.subr.mxu0 0.0
        %1587 = vmatpush1.msra.mxu0 %v1554
        %1588 = vmatprep.subr.mxu0 0.0
        %1589 = vmatpush2.msra.mxu0 0.0
        %1590 = vmatprep.subr.mxu0 0.0
        %1591 = vmatpush2.msra.mxu0 0.0
        %1592 = vmatprep.subr.mxu0 0.0
        %1593 = vmatpush2.msra.mxu0 0.0
        %1594 = vmatprep.subr.mxu0 0.0
        %1595 = vmatpush2.msra.mxu0 0.0
        %1596 = vmatprep.subr.mxu0 0.0
        %1597 = vmatpush2.msra.mxu0 0.0
        %1598 = vmatprep.subr.mxu0 0.0
        %1599 = vmatpush2.msra.mxu0 0.0
        %1600 = vmatprep.subr.mxu0 0.0
        %1601 = vmatpush2.msra.mxu0 0.0
        %1602 = vmatprep.subr.mxu0 0.0
        %1603 = vmatpush2.msra.mxu0 0.0
        %1604 = vmatprep.subr.mxu0 0.0
        %1605 = vmatpush2.msra.mxu0 0.0
        %1606 = vmatprep.subr.mxu0 0.0
        %1607 = vmatpush2.msra.mxu0 0.0
        %1608 = vmatprep.subr.mxu0 0.0
        %1609 = vmatpush2.msra.mxu0 0.0
        %1610 = vmatprep.subr.mxu0 0.0
        %1611 = vmatpush2.msra.mxu0 0.0
        %1612 = vmatprep.subr.mxu0 0.0
        %1613 = vmatpush2.msra.mxu0 0.0
        %1614 = vmatprep.subr.mxu0 0.0
        %1615 = vmatpush2.msra.mxu0 0.0
        %1616 = vmatprep.subr.mxu0 0.0
        %1617 = vmatpush2.msra.mxu0 0.0
        %1618 = vmatprep.subr.mxu0 0.0
        %1619 = vmatpush2.msra.mxu0 0.0
        %1620 = vmatprep.mubr.f32.mxu0 0.0
        %1621 = vmatmul.mubr.f32.gmra.mxu0 %v1541
        %v1622 = vpop.f32.mrf.mxu0
        %v1623 = vadd.f32 0.0, %v1622
        %v1624 = vpop.f32.mrf.mxu0
        %1625 = vmatprep.mubr.f32.mxu0 0.0
        %1626 = vmatmul.mubr.f32.gmra.mxu0 %v1544
        %v1627 = vpop.f32.mrf.mxu0
        %v1628 = vadd.f32 0.0, %v1627
        %v1629 = vpop.f32.mrf.mxu0
        %1630 = vmatprep.mubr.f32.mxu0 0.0
        %1631 = vmatmul.mubr.f32.gmra.mxu0 %v1547
        %v1632 = vpop.f32.mrf.mxu0
        %v1633 = vadd.f32 0.0, %v1632
        %v1634 = vpop.f32.mrf.mxu0
        %1635 = vmatprep.mubr.f32.mxu0 0.0
        %1636 = vmatmul.mubr.f32.gmra.mxu0 %v1550
        %v1637 = vpop.f32.mrf.mxu0
        %v1638 = vadd.f32 0.0, %v1637
        %v1639 = vpop.f32.mrf.mxu0
        %1640 = vdwg.mxu0
        %v1642 = vsel %vm1425, %v1442, 0
        %1644 = vmatprep.subr.mxu0 0.0
        %1645 = vmatpush1.msra.mxu0 0.0
        %1646 = vmatprep.subr.mxu0 0.0
        %1647 = vmatpush1.msra.mxu0 0.0
        %1648 = vmatprep.subr.mxu0 0.0
        %1649 = vmatpush1.msra.mxu0 0.0
        %1650 = vmatprep.subr.mxu0 0.0
        %1651 = vmatpush1.msra.mxu0 0.0
        %1652 = vmatprep.subr.mxu0 0.0
        %1653 = vmatpush1.msra.mxu0 0.0
        %1654 = vmatprep.subr.mxu0 0.0
        %1655 = vmatpush1.msra.mxu0 0.0
        %1656 = vmatprep.subr.mxu0 0.0
        %1657 = vmatpush1.msra.mxu0 0.0
        %1658 = vmatprep.subr.mxu0 0.0
        %1659 = vmatpush1.msra.mxu0 0.0
        %1660 = vmatprep.subr.mxu0 0.0
        %1661 = vmatpush1.msra.mxu0 0.0
        %1662 = vmatprep.subr.mxu0 0.0
        %1663 = vmatpush1.msra.mxu0 0.0
        %1664 = vmatprep.subr.mxu0 0.0
        %1665 = vmatpush1.msra.mxu0 0.0
        %1666 = vmatprep.subr.mxu0 0.0
        %1667 = vmatpush1.msra.mxu0 0.0
        %1668 = vmatprep.subr.mxu0 0.0
        %1669 = vmatpush1.msra.mxu0 0.0
        %1670 = vmatprep.subr.mxu0 0.0
        %1671 = vmatpush1.msra.mxu0 0.0
        %1672 = vmatprep.subr.mxu0 0.0
        %1673 = vmatpush1.msra.mxu0 0.0
        %1674 = vmatprep.subr.mxu0 0.0
        %1675 = vmatpush1.msra.mxu0 %v1554
        %1676 = vmatprep.subr.mxu0 0.0
        %1677 = vmatpush2.msra.mxu0 0.0
        %1678 = vmatprep.subr.mxu0 0.0
        %1679 = vmatpush2.msra.mxu0 0.0
        %1680 = vmatprep.subr.mxu0 0.0
        %1681 = vmatpush2.msra.mxu0 0.0
        %1682 = vmatprep.subr.mxu0 0.0
        %1683 = vmatpush2.msra.mxu0 0.0
        %1684 = vmatprep.subr.mxu0 0.0
        %1685 = vmatpush2.msra.mxu0 0.0
        %1686 = vmatprep.subr.mxu0 0.0
        %1687 = vmatpush2.msra.mxu0 0.0
        %1688 = vmatprep.subr.mxu0 0.0
        %1689 = vmatpush2.msra.mxu0 0.0
        %1690 = vmatprep.subr.mxu0 0.0
        %1691 = vmatpush2.msra.mxu0 0.0
        %1692 = vmatprep.subr.mxu0 0.0
        %1693 = vmatpush2.msra.mxu0 0.0
        %1694 = vmatprep.subr.mxu0 0.0
        %1695 = vmatpush2.msra.mxu0 0.0
        %1696 = vmatprep.subr.mxu0 0.0
        %1697 = vmatpush2.msra.mxu0 0.0
        %1698 = vmatprep.subr.mxu0 0.0
        %1699 = vmatpush2.msra.mxu0 0.0
        %1700 = vmatprep.subr.mxu0 0.0
        %1701 = vmatpush2.msra.mxu0 0.0
        %1702 = vmatprep.subr.mxu0 0.0
        %1703 = vmatpush2.msra.mxu0 0.0
        %1704 = vmatprep.subr.mxu0 0.0
        %1705 = vmatpush2.msra.mxu0 0.0
        %1706 = vmatprep.subr.mxu0 0.0
        %1707 = vmatpush2.msra.mxu0 0.0
        %1708 = vmatprep.mubr.f32.mxu0 0.0
        %1709 = vmatmul.mubr.f32.gmra.mxu0 %v1642
        %v1710 = vpop.f32.mrf.mxu0
        %v1711 = vadd.f32 0.0, %v1710
        %v1712 = vpop.f32.mrf.mxu0
        %1713 = vdwg.mxu0
        %v1714 = vld [vmem:[#allocation5] sm:$0x1]
        %v1715 = vmul.f32 %v1711, %v1714
        %v1716 = vmul.f32 %v1623, %v1293
        %v1717 = vmul.f32 %v1628, %v1298
        %v1718 = vmul.f32 %v1633, %v1303
        %v1719 = vmul.f32 %v1638, %v1308
        %1720 = vmatprep.subr.mxu0 0.0
        %1721 = vmatpush1.msra.mxu0 0.0
        %1722 = vmatprep.subr.mxu0 0.0
        %1723 = vmatpush1.msra.mxu0 0.0
        %1724 = vmatprep.subr.mxu0 0.0
        %1725 = vmatpush1.msra.mxu0 0.0
        %1726 = vmatprep.subr.mxu0 0.0
        %1727 = vmatpush1.msra.mxu0 0.0
        %1728 = vmatprep.subr.mxu0 0.0
        %1729 = vmatpush1.msra.mxu0 0.0
        %1730 = vmatprep.subr.mxu0 0.0
        %1731 = vmatpush1.msra.mxu0 0.0
        %1732 = vmatprep.subr.mxu0 0.0
        %1733 = vmatpush1.msra.mxu0 0.0
        %1734 = vmatprep.subr.mxu0 0.0
        %1735 = vmatpush1.msra.mxu0 0.0
        %1736 = vmatprep.subr.mxu0 0.0
        %1737 = vmatpush1.msra.mxu0 0.0
        %1738 = vmatprep.subr.mxu0 0.0
        %1739 = vmatpush1.msra.mxu0 0.0
        %1740 = vmatprep.subr.mxu0 0.0
        %1741 = vmatpush1.msra.mxu0 0.0
        %1742 = vmatprep.subr.mxu0 0.0
        %1743 = vmatpush1.msra.mxu0 0.0
        %1744 = vmatprep.subr.mxu0 0.0
        %1745 = vmatpush1.msra.mxu0 %v1719
        %1746 = vmatprep.subr.mxu0 0.0
        %1747 = vmatpush1.msra.mxu0 %v1718
        %1748 = vmatprep.subr.mxu0 0.0
        %1749 = vmatpush1.msra.mxu0 %v1717
        %1750 = vmatprep.subr.mxu0 0.0
        %1751 = vmatpush1.msra.mxu0 %v1716
        %1752 = vmatprep.subr.mxu0 0.0
        %1753 = vmatpush2.msra.mxu0 0.0
        %1754 = vmatprep.subr.mxu0 0.0
        %1755 = vmatpush2.msra.mxu0 0.0
        %1756 = vmatprep.subr.mxu0 0.0
        %1757 = vmatpush2.msra.mxu0 0.0
        %1758 = vmatprep.subr.mxu0 0.0
        %1759 = vmatpush2.msra.mxu0 0.0
        %1760 = vmatprep.subr.mxu0 0.0
        %1761 = vmatpush2.msra.mxu0 0.0
        %1762 = vmatprep.subr.mxu0 0.0
        %1763 = vmatpush2.msra.mxu0 0.0
        %1764 = vmatprep.subr.mxu0 0.0
        %1765 = vmatpush2.msra.mxu0 0.0
        %1766 = vmatprep.subr.mxu0 0.0
        %1767 = vmatpush2.msra.mxu0 0.0
        %1768 = vmatprep.subr.mxu0 0.0
        %1769 = vmatpush2.msra.mxu0 0.0
        %1770 = vmatprep.subr.mxu0 0.0
        %1771 = vmatpush2.msra.mxu0 0.0
        %1772 = vmatprep.subr.mxu0 0.0
        %1773 = vmatpush2.msra.mxu0 0.0
        %1774 = vmatprep.subr.mxu0 0.0
        %1775 = vmatpush2.msra.mxu0 0.0
        %1776 = vmatprep.subr.mxu0 0.0
        %1777 = vmatpush2.msra.mxu0 0.0
        %1778 = vmatprep.subr.mxu0 0.0
        %1779 = vmatpush2.msra.mxu0 0.0
        %1780 = vmatprep.subr.mxu0 0.0
        %1781 = vmatpush2.msra.mxu0 0.0
        %1782 = vmatprep.subr.mxu0 0.0
        %1783 = vmatpush2.msra.mxu0 0.0
        %1784 = vmatprep.mubr.f32.mxu0 0.0
        %1785 = vmatmul.mubr.f32.gmra.mxu0 %v1464
        %v1786 = vpop.f32.mrf.mxu0
        %v1787 = vadd.f32 0.0, %v1786
        %v1788 = vpop.f32.mrf.mxu0
        %1789 = vdwg.mxu0
        %v1790 = vadd.f32 %v1715, %v1787
        %vm1791 = vcmask 253952
        %1792 = vst.msk [vmem:[#allocation5] sm:$0x1] %vm1791, %v1790
        %1793 = vst.msk [vmem:[#allocation3] sm:$0x1] %vm1537, %v1439
        %p1794 = scmp.eq.s32.totalorder %s46, 1
        // Predicated region
        $region137: #{tpu_custom_call.1} parent=99 // pred_check
          %p1795 = pneg %p1794
        $region138: #{tpu_custom_call.1} parent=99 // pred_check_branch
          %1797 = sbr.rel (%p1795) target = $region140
        $region139: #{tpu_custom_call.1} parent=99 // pred_region
          %v1798 = vld [vmem:[#allocation4] sm:$0x1]
          %v1799 = vld [vmem:[%s18] sm:$0xf]
          %v1801 = vsel %vm1425, %v1798, 0
          %v1804 = vsel %vm1552, %v1799, 0
          %1806 = vmatprep.subr.mxu0 0.0
          %1807 = vmatpush1.msra.mxu0 0.0
          %1808 = vmatprep.subr.mxu0 0.0
          %1809 = vmatpush1.msra.mxu0 0.0
          %1810 = vmatprep.subr.mxu0 0.0
          %1811 = vmatpush1.msra.mxu0 0.0
          %1812 = vmatprep.subr.mxu0 0.0
          %1813 = vmatpush1.msra.mxu0 0.0
          %1814 = vmatprep.subr.mxu0 0.0
          %1815 = vmatpush1.msra.mxu0 0.0
          %1816 = vmatprep.subr.mxu0 0.0
          %1817 = vmatpush1.msra.mxu0 0.0
          %1818 = vmatprep.subr.mxu0 0.0
          %1819 = vmatpush1.msra.mxu0 0.0
          %1820 = vmatprep.subr.mxu0 0.0
          %1821 = vmatpush1.msra.mxu0 0.0
          %1822 = vmatprep.subr.mxu0 0.0
          %1823 = vmatpush1.msra.mxu0 0.0
          %1824 = vmatprep.subr.mxu0 0.0
          %1825 = vmatpush1.msra.mxu0 0.0
          %1826 = vmatprep.subr.mxu0 0.0
          %1827 = vmatpush1.msra.mxu0 0.0
          %1828 = vmatprep.subr.mxu0 0.0
          %1829 = vmatpush1.msra.mxu0 0.0
          %1830 = vmatprep.subr.mxu0 0.0
          %1831 = vmatpush1.msra.mxu0 0.0
          %1832 = vmatprep.subr.mxu0 0.0
          %1833 = vmatpush1.msra.mxu0 0.0
          %1834 = vmatprep.subr.mxu0 0.0
          %1835 = vmatpush1.msra.mxu0 0.0
          %1836 = vmatprep.subr.mxu0 0.0
          %1837 = vmatpush1.msra.mxu0 %v1804
          %1838 = vmatprep.subr.mxu0 0.0
          %1839 = vmatpush2.msra.mxu0 0.0
          %1840 = vmatprep.subr.mxu0 0.0
          %1841 = vmatpush2.msra.mxu0 0.0
          %1842 = vmatprep.subr.mxu0 0.0
          %1843 = vmatpush2.msra.mxu0 0.0
          %1844 = vmatprep.subr.mxu0 0.0
          %1845 = vmatpush2.msra.mxu0 0.0
          %1846 = vmatprep.subr.mxu0 0.0
          %1847 = vmatpush2.msra.mxu0 0.0
          %1848 = vmatprep.subr.mxu0 0.0
          %1849 = vmatpush2.msra.mxu0 0.0
          %1850 = vmatprep.subr.mxu0 0.0
          %1851 = vmatpush2.msra.mxu0 0.0
          %1852 = vmatprep.subr.mxu0 0.0
          %1853 = vmatpush2.msra.mxu0 0.0
          %1854 = vmatprep.subr.mxu0 0.0
          %1855 = vmatpush2.msra.mxu0 0.0
          %1856 = vmatprep.subr.mxu0 0.0
          %1857 = vmatpush2.msra.mxu0 0.0
          %1858 = vmatprep.subr.mxu0 0.0
          %1859 = vmatpush2.msra.mxu0 0.0
          %1860 = vmatprep.subr.mxu0 0.0
          %1861 = vmatpush2.msra.mxu0 0.0
          %1862 = vmatprep.subr.mxu0 0.0
          %1863 = vmatpush2.msra.mxu0 0.0
          %1864 = vmatprep.subr.mxu0 0.0
          %1865 = vmatpush2.msra.mxu0 0.0
          %1866 = vmatprep.subr.mxu0 0.0
          %1867 = vmatpush2.msra.mxu0 0.0
          %1868 = vmatprep.subr.mxu0 0.0
          %1869 = vmatpush2.msra.mxu0 0.0
          %1870 = vmatprep.mubr.f32.mxu0 0.0
          %1871 = vmatmul.mubr.f32.gmra.mxu0 %v1801
          %v1872 = vpop.f32.mrf.mxu0
          %v1873 = vadd.f32 0.0, %v1872
          %v1874 = vpop.f32.mrf.mxu0
          %1875 = vdwg.mxu0
          %v1876 = vld [vmem:[#allocation5] sm:$0x1]
          %v1877 = vrcp.pop %v1873
          %v1878 = vmul.f32 %v1876, %v1877
          %v1879 = vld [vmem:[#allocation18] sm:$0xff]
          %v1880 = vld [vmem:[#allocation18 + $0x8] sm:$0xff]
          %v1881 = vld [vmem:[#allocation18 + $0x10] sm:$0xff]
          %v1882 = vld [vmem:[#allocation18 + $0x18] sm:$0xff]
          %v1883 = vld [vmem:[%s16] sm:$0x1]
          %v1885 = vsel %vm1033, %v1878, 0
          %1887 = vmatprep.subr.mxu0 0.0
          %1888 = vmatpush1.msra.mxu0 0.0
          %1889 = vmatprep.subr.mxu0 0.0
          %1890 = vmatpush1.msra.mxu0 0.0
          %1891 = vmatprep.subr.mxu0 0.0
          %1892 = vmatpush1.msra.mxu0 0.0
          %1893 = vmatprep.subr.mxu0 0.0
          %1894 = vmatpush1.msra.mxu0 0.0
          %1895 = vmatprep.subr.mxu0 0.0
          %1896 = vmatpush1.msra.mxu0 0.0
          %1897 = vmatprep.subr.mxu0 0.0
          %1898 = vmatpush1.msra.mxu0 0.0
          %1899 = vmatprep.subr.mxu0 0.0
          %1900 = vmatpush1.msra.mxu0 0.0
          %1901 = vmatprep.subr.mxu0 0.0
          %1902 = vmatpush1.msra.mxu0 0.0
          %1903 = vmatprep.subr.mxu0 0.0
          %1904 = vmatpush1.msra.mxu0 0.0
          %1905 = vmatprep.subr.mxu0 0.0
          %1906 = vmatpush1.msra.mxu0 0.0
          %1907 = vmatprep.subr.mxu0 0.0
          %1908 = vmatpush1.msra.mxu0 0.0
          %1909 = vmatprep.subr.mxu0 0.0
          %1910 = vmatpush1.msra.mxu0 0.0
          %1911 = vmatprep.subr.mxu0 0.0
          %1912 = vmatpush1.msra.mxu0 %v1882
          %1913 = vmatprep.subr.mxu0 0.0
          %1914 = vmatpush1.msra.mxu0 %v1881
          %1915 = vmatprep.subr.mxu0 0.0
          %1916 = vmatpush1.msra.mxu0 %v1880
          %1917 = vmatprep.subr.mxu0 0.0
          %1918 = vmatpush1.msra.mxu0 %v1879
          %1919 = vmatprep.subr.mxu0 0.0
          %1920 = vmatpush2.msra.mxu0 0.0
          %1921 = vmatprep.subr.mxu0 0.0
          %1922 = vmatpush2.msra.mxu0 0.0
          %1923 = vmatprep.subr.mxu0 0.0
          %1924 = vmatpush2.msra.mxu0 0.0
          %1925 = vmatprep.subr.mxu0 0.0
          %1926 = vmatpush2.msra.mxu0 0.0
          %1927 = vmatprep.subr.mxu0 0.0
          %1928 = vmatpush2.msra.mxu0 0.0
          %1929 = vmatprep.subr.mxu0 0.0
          %1930 = vmatpush2.msra.mxu0 0.0
          %1931 = vmatprep.subr.mxu0 0.0
          %1932 = vmatpush2.msra.mxu0 0.0
          %1933 = vmatprep.subr.mxu0 0.0
          %1934 = vmatpush2.msra.mxu0 0.0
          %1935 = vmatprep.subr.mxu0 0.0
          %1936 = vmatpush2.msra.mxu0 0.0
          %1937 = vmatprep.subr.mxu0 0.0
          %1938 = vmatpush2.msra.mxu0 0.0
          %1939 = vmatprep.subr.mxu0 0.0
          %1940 = vmatpush2.msra.mxu0 0.0
          %1941 = vmatprep.subr.mxu0 0.0
          %1942 = vmatpush2.msra.mxu0 0.0
          %1943 = vmatprep.subr.mxu0 0.0
          %1944 = vmatpush2.msra.mxu0 0.0
          %1945 = vmatprep.subr.mxu0 0.0
          %1946 = vmatpush2.msra.mxu0 0.0
          %1947 = vmatprep.subr.mxu0 0.0
          %1948 = vmatpush2.msra.mxu0 0.0
          %1949 = vmatprep.subr.mxu0 0.0
          %1950 = vmatpush2.msra.mxu0 0.0
          %1951 = vmatprep.mubr.f32.mxu0 0.0
          %1952 = vmatmul.mubr.f32.gmra.mxu0 %v1885
          %v1953 = vpop.f32.mrf.mxu0
          %v1954 = vadd.f32 %v1883, %v1953
          %v1955 = vpop.f32.mrf.mxu0
          %1956 = vdwg.mxu0
          %v1957 = vld [vmem:[%s780] sm:$0x1]
          %v1958 = vadd.f32 %v1957, %v1954
          %1959 = vst.msk [vmem:[%s777] sm:$0x1] %vm1791, %v1958
        $region140: #{tpu_custom_call.1} parent=99 // pred_fallthru
          _
        %s1960 = sand.u32 %s498, 1
        %s1961 = scalar_lea.sflag [#allocation8], %s1960
        %s1962 = sand.u32 %s498, 1
        %s1963 = scalar_lea.vmem [#allocation20], %s1962
        // Predicated region
        $region141: #{tpu_custom_call.1} parent=99 // pred_check
          %p1964 = pneg %p508
        $region142: #{tpu_custom_call.1} parent=99 // pred_check_branch
          %1966 = sbr.rel (%p1964) target = $region144
        $region143: #{tpu_custom_call.1} parent=99 // pred_region
          %s1968 = ssub.s32 16, 16
          %1969 = vsyncadd %s1961, %s1968
          %s1970 = smul.addr %s45, 16
          %s1971 = scalar_lea.hbm %s20, %s1970
          %s1973 = sshll.u32 %s1963, 4
          %s1974 = int_to_ptr.vmem [resolvable:$true] %s1973
          %1976 = dma.vmem_to_hbm [thread:$0]  %s1974, 16, %s1971, %s1961
        $region144: #{tpu_custom_call.1} parent=99 // pred_fallthru
          _
      $region100: #{tpu_custom_call.1} parent=5 // pred_fallthru
        _
      %p1977 = scmp.le.s32.totalorder 2, %s36
      // Predicated region
      $region145: #{tpu_custom_call.1} parent=5 // pred_check
        %p1978 = pneg %p1977
      $region146: #{tpu_custom_call.1} parent=5 // pred_check_branch
        %1980 = sbr.rel (%p1978) target = $region148
      $region147: #{tpu_custom_call.1} parent=5 // pred_region
        %s1981 = ssub.s32 %s36, 2
        // Predicated region
        $region149: #{tpu_custom_call.1} parent=147 // pred_check
          %p1982 = pneg %p514
        $region150: #{tpu_custom_call.1} parent=147 // pred_check_branch
          %1984 = sbr.rel (%p1982) target = $region152
        $region151: #{tpu_custom_call.1} parent=147 // pred_region
          %s1985 = sand.u32 %s499, 1
          %s1986 = scalar_lea.sflag [#allocation8], %s1985
          %s1987 = sand.u32 %s499, 1
          %s1988 = scalar_lea.vmem [#allocation20], %s1987
          %1989 = dma.done %s1986, 16
        $region152: #{tpu_custom_call.1} parent=147 // pred_fallthru
          _
      $region148: #{tpu_custom_call.1} parent=5 // pred_fallthru
        _
    $region6: #{tpu_custom_call.1} parent=1 // loop_footer
      %s40 = sadd.s32 1, %s36
    $region7: #{tpu_custom_call.1} parent=1 // loop_footer_branch
      %35 = sbr.rel target = $region3
    $region8: #{tpu_custom_call.1} parent=1 // loop_exit
      _
    %1990 = vsyncpa [#allocation7], 1
    %s1991 = scalar_lea.sflag [#allocation7], 1
    %1992 = vsyncpa %s1991, 1
    %1993 = vsyncpa [#allocation10], 1
    %1994 = vsyncpa [#allocation13], 1
    %1995 = vsyncpa [#allocation16], 1
    %1996 = vsyncpa [#allocation19], 1
    %1997 = vsyncpa [#allocation8], 1
    %s1998 = scalar_lea.sflag [#allocation8], 1
    %1999 = vsyncpa %s1998, 1

// kernel: tpu_custom_call.1
$region0: #{tpu_custom_call.1}
  #allocation0 [shape = 'u32[]', space=smem, size = 0x4, offset = 0x4, fixed_abs, tag = 'smem constant byte address 0x4 - core index']
  #allocation1 [shape = 'u32[144,128]{1,0:T(1,128)}', space=vmem, size = 0x12000, scoped, tag = 'internal scratch']
  #allocation2 [shape = 'f32[1,32]{1,0:T(1,128)}', space=vmem, size = 0x200, scoped, tag = 'scratch operand']
  #allocation3 [shape = 'f32[1,4]{1,0:T(1,128)}', space=vmem, size = 0x200, scoped, tag = 'scratch operand']
  #allocation4 [shape = 'f32[1,4]{1,0:T(1,128)}', space=vmem, size = 0x200, scoped, tag = 'scratch operand']
  #allocation5 [shape = 'f32[1,32]{1,0:T(1,128)}', space=vmem, size = 0x200, scoped, tag = 'scratch operand']
  %s0 = inlined_call_operand.vmem [shape: f32[2,1,32], index: 0, kind: input, shape index: {}]
  %s1 = inlined_call_operand.hbm [shape: f32[2,4,16,32], index: 1, kind: input, shape index: {}]
  %s2 = inlined_call_operand.vmem [shape: f32[3,32], index: 2, kind: input, shape index: {}]
  %s3 = inlined_call_operand.vmem [shape: f32[1,32], index: 3, kind: input, shape index: {}]
  %s4 = inlined_call_operand.vmem [shape: f32[4,32], index: 4, kind: input, shape index: {}]
  %s5 = inlined_call_operand.vmem [shape: f32[1,32], index: 5, kind: input, shape index: {}]
  %s6 = inlined_call_operand.hbm [shape: f32[1,32], index: 6, kind: input, shape index: {}]
  %s7 = inlined_call_operand.hbm [shape: f32[1,32], index: 7, kind: input, shape index: {}]
  %s8 = inlined_call_operand.hbm [shape: f32[1,32], index: 8, kind: input, shape index: {}]
  %s9 = inlined_call_operand.vmem [shape: f32[32,32], index: 9, kind: input, shape index: {}]
  %s10 = inlined_call_operand.hbm [shape: f32[1,32], index: 10, kind: input, shape index: {}]
  %s11 = inlined_call_operand.hbm [shape: f32[32,32], index: 11, kind: input, shape index: {}]
  %s12 = inlined_call_operand.vmem [shape: f32[1,32], index: 12, kind: input, shape index: {}]
  %s13 = inlined_call_operand.hbm [shape: f32[32,32], index: 13, kind: input, shape index: {}]
  %s14 = inlined_call_operand.vmem [shape: f32[1,32], index: 14, kind: input, shape index: {}]
  %s15 = inlined_call_operand.hbm [shape: f32[32,32], index: 15, kind: input, shape index: {}]
  %s16 = inlined_call_operand.vmem [shape: f32[1,32], index: 16, kind: input, shape index: {}]
  %s17 = inlined_call_operand.vmem [shape: f32[32,4], index: 17, kind: input, shape index: {}]
  %s18 = inlined_call_operand.vmem [shape: f32[4,32], index: 18, kind: input, shape index: {}]
  %s19 = inlined_call_operand.vmem [shape: f32[2,1,32], index: 19, kind: input, shape index: {}]
  %s20 = inlined_call_operand.hbm [shape: f32[2,1,32], index: 20, kind: output, shape index: {}]
  %s21 = sld [smem:[#allocation0]]
  $region153: #{tpu_custom_call.1} parent=0
    _
  %s23 = ssub.s32 1, %s21
  %s24 = scalar_select 0, %s23, %s21
  $region1: #{tpu_custom_call.1} parent=0
    #allocation6 [shape = 'u8[32768]{0}', space=vmem, size = 0x8000, scoped, tag = 'input window, operand 1']
    #allocation7 [shape = 's32[2]{0}', space=sflag, size = 0x8, scoped, tag = 'scoped memory for tpu_custom_call.1']
    #allocation8 [shape = 's32[2]{0}', space=sflag, size = 0x8, scoped, tag = 'scoped memory for tpu_custom_call.1']
    #allocation9 [shape = 'u8[512]{0}', space=vmem, size = 0x400, scoped, tag = 'input window, operand 6, single buffered']
    #allocation10 [shape = 's32[1]{0}', space=sflag, size = 0x4, scoped, tag = 'scoped memory for tpu_custom_call.1']
    #allocation11 [shape = 'u8[512]{0}', space=vmem, size = 0x400, scoped, tag = 'input window, operand 7, single buffered']
    #allocation12 [shape = 'u8[512]{0}', space=vmem, size = 0x400, scoped, tag = 'input window, operand 8, single buffered']
    #allocation13 [shape = 's32[1]{0}', space=sflag, size = 0x4, scoped, tag = 'scoped memory for tpu_custom_call.1']
    #allocation14 [shape = 'u8[512]{0}', space=vmem, size = 0x400, scoped, tag = 'input window, operand 10, single buffered']
    #allocation15 [shape = 'u8[16384]{0}', space=vmem, size = 0x4000, scoped, tag = 'input window, operand 11, single buffered']
    #allocation16 [shape = 's32[1]{0}', space=sflag, size = 0x4, scoped, tag = 'scoped memory for tpu_custom_call.1']
    #allocation17 [shape = 'u8[16384]{0}', space=vmem, size = 0x4000, scoped, tag = 'input window, operand 13, single buffered']
    #allocation18 [shape = 'u8[16384]{0}', space=vmem, size = 0x4000, scoped, tag = 'input window, operand 15, single buffered']
    #allocation19 [shape = 's32[1]{0}', space=sflag, size = 0x4, scoped, tag = 'scoped memory for tpu_custom_call.1']
    #allocation20 [shape = 'u8[1024]{0}', space=vmem, size = 0x400, scoped, tag = 'output window, operand 0']
    %25 = vsyncpa [#allocation7], 0
    %s26 = scalar_lea.sflag [#allocation7], 1
    %27 = vsyncpa %s26, 0
    %28 = vsyncpa [#allocation10], 0
    %29 = vsyncpa [#allocation13], 0
    %30 = vsyncpa [#allocation16], 0
    %31 = vsyncpa [#allocation19], 0
    %32 = vsyncpa [#allocation8], 0
    %s33 = scalar_lea.sflag [#allocation8], 1
    %34 = vsyncpa %s33, 0
    loop: start=0, step=1, limit=6
    $region2: #{tpu_custom_call.1} parent=1 // loop_pre_header
      _
    $region3: #{tpu_custom_call.1} parent=1 // loop_header
      %s36 = sphi 0, %s40
      %p37 = scmp.ge.s32.totalorder %s36, 6
      %s43 = sphi 0, %s55
      %s44 = sphi 0, %s51
      %s45 = sphi 0, %s43
      %s46 = sphi 0, %s44
      %s47 = sphi 0, %s45
      %s48 = sphi 0, %s46
      %s58 = sphi 0, %s60
      %s61 = sphi 0, %s58
      %s62 = sphi 0, %s61
      %s78 = sphi 0, %s62
      %s86 = sphi 0, %s88
      %s89 = sphi 0, %s86
      %s90 = sphi 0, %s89
      %s106 = sphi 0, %s90
      %s110 = sphi 0, %s110
      %s112 = sphi 0, %s110
      %s113 = sphi 0, %s112
      %s127 = sphi 0, %s113
      %s131 = sphi 0, %s131
      %s133 = sphi 0, %s131
      %s134 = sphi 0, %s133
      %s148 = sphi 0, %s134
      %s152 = sphi 0, %s152
      %s154 = sphi 0, %s152
      %s155 = sphi 0, %s154
      %s169 = sphi 0, %s155
      %s173 = sphi 0, %s173
      %s175 = sphi 0, %s173
      %s176 = sphi 0, %s175
      %s190 = sphi 0, %s176
      %s194 = sphi 0, %s194
      %s196 = sphi 0, %s194
      %s197 = sphi 0, %s196
      %s211 = sphi 0, %s197
      %s215 = sphi 0, %s215
      %s217 = sphi 0, %s215
      %s218 = sphi 0, %s217
      %s232 = sphi 0, %s218
      %s236 = sphi 0, %s236
      %s238 = sphi 0, %s236
      %s239 = sphi 0, %s238
      %s253 = sphi 0, %s239
      %s257 = sphi 0, %s257
      %s259 = sphi 0, %s257
      %s260 = sphi 0, %s259
      %s274 = sphi 0, %s260
      %s278 = sphi 0, %s278
      %s280 = sphi 0, %s278
      %s281 = sphi 0, %s280
      %s295 = sphi 0, %s281
      %s299 = sphi 0, %s299
      %s301 = sphi 0, %s299
      %s302 = sphi 0, %s301
      %s316 = sphi 0, %s302
      %s320 = sphi 0, %s320
      %s322 = sphi 0, %s320
      %s323 = sphi 0, %s322
      %s337 = sphi 0, %s323
      %s341 = sphi 0, %s341
      %s343 = sphi 0, %s341
      %s344 = sphi 0, %s343
      %s358 = sphi 0, %s344
      %s362 = sphi 0, %s362
      %s364 = sphi 0, %s362
      %s365 = sphi 0, %s364
      %s379 = sphi 0, %s365
      %s383 = sphi 0, %s383
      %s385 = sphi 0, %s383
      %s386 = sphi 0, %s385
      %s400 = sphi 0, %s386
      %s404 = sphi 0, %s404
      %s406 = sphi 0, %s404
      %s407 = sphi 0, %s406
      %s421 = sphi 0, %s407
      %s425 = sphi 0, %s425
      %s427 = sphi 0, %s425
      %s428 = sphi 0, %s427
      %s442 = sphi 0, %s428
      %s446 = sphi 0, %s446
      %s448 = sphi 0, %s446
      %s449 = sphi 0, %s448
      %s463 = sphi 0, %s449
      %s469 = sphi 0, %s471
      %s472 = sphi 0, %s469
      %s473 = sphi 0, %s472
      %s489 = sphi 0, %s473
      %s495 = sphi 0, %s497
      %s498 = sphi 0, %s495
      %s499 = sphi 0, %s498
      %s515 = sphi 0, %s499
    $region4: #{tpu_custom_call.1} parent=1 // loop_header_branch
      %39 = sbr.rel (%p37) target = $region8
    $region5: #{tpu_custom_call.1} parent=1 // loop_body
      %s41 = ssub.s32 %s36, 1
      %s42 = ssub.s32 %s36, 2
      %s49 = sadd.s32 1, %s44
      %p50 = scmp.ge.s32.totalorder %s49, 2
      %s51 = scalar_select %p50, 0, %s49
      %s52 = sadd.s32 1, %s43
      %s53 = scalar_select %p50, %s52, %s43
      %p54 = scmp.ge.s32.totalorder %s53, 2
      %s55 = scalar_select %p54, 0, %s53
      %s56 = ssub.s32 %s43, %s55
      %p57 = scmp.eq.s32.totalorder %s56, 0
      %s59 = sadd.s32 %s58, 1
      %s60 = scalar_select %p57, %s58, %s59
      %p63 = pneg %p57
      %p64 = scmp.eq.s32.totalorder %s36, 3
      %p65 = por %p63, %p64
      %p66 = scmp.ne.s32.totalorder %s58, %s61
      %p67 = scmp.eq.s32.totalorder %s36, 0
      %p68 = por %p66, %p67
      %p69 = scmp.ne.s32.totalorder %s58, %s61
      %p70 = scmp.eq.s32.totalorder %s41, 3
      %p71 = por %p69, %p70
      %p72 = scmp.ne.s32.totalorder %s61, %s62
      %p73 = scmp.eq.s32.totalorder %s41, 0
      %p74 = por %p72, %p73
      %p75 = scmp.ne.s32.totalorder %s61, %s62
      %p76 = scmp.eq.s32.totalorder %s42, 3
      %p77 = por %p75, %p76
      %p79 = scmp.ne.s32.totalorder %s62, %s78
      %p80 = scmp.eq.s32.totalorder %s42, 0
      %p81 = por %p79, %p80
      %s82 = ssub.s32 %s43, %s55
      %s83 = ssub.s32 %s44, %s51
      %s84 = sor.u32 %s82, %s83
      %p85 = scmp.eq.s32.totalorder %s84, 0
      %s87 = sadd.s32 %s86, 1
      %s88 = scalar_select %p85, %s86, %s87
      %p91 = pneg %p85
      %p92 = scmp.eq.s32.totalorder %s36, 3
      %p93 = por %p91, %p92
      %p94 = scmp.ne.s32.totalorder %s86, %s89
      %p95 = scmp.eq.s32.totalorder %s36, 0
      %p96 = por %p94, %p95
      %p97 = scmp.ne.s32.totalorder %s86, %s89
      %p98 = scmp.eq.s32.totalorder %s41, 3
      %p99 = por %p97, %p98
      %p100 = scmp.ne.s32.totalorder %s89, %s90
      %p101 = scmp.eq.s32.totalorder %s41, 0
      %p102 = por %p100, %p101
      %p103 = scmp.ne.s32.totalorder %s89, %s90
      %p104 = scmp.eq.s32.totalorder %s42, 3
      %p105 = por %p103, %p104
      %p107 = scmp.ne.s32.totalorder %s90, %s106
      %p108 = scmp.eq.s32.totalorder %s42, 0
      %p109 = por %p107, %p108
      %s111 = sadd.s32 %s110, 1
      %p114 = scmp.eq.s32.totalorder %s36, 3
      %p115 = scmp.ne.s32.totalorder %s110, %s112
      %p116 = scmp.eq.s32.totalorder %s36, 0
      %p117 = por %p115, %p116
      %p118 = scmp.ne.s32.totalorder %s110, %s112
      %p119 = scmp.eq.s32.totalorder %s41, 3
      %p120 = por %p118, %p119
      %p121 = scmp.ne.s32.totalorder %s112, %s113
      %p122 = scmp.eq.s32.totalorder %s41, 0
      %p123 = por %p121, %p122
      %p124 = scmp.ne.s32.totalorder %s112, %s113
      %p125 = scmp.eq.s32.totalorder %s42, 3
      %p126 = por %p124, %p125
      %p128 = scmp.ne.s32.totalorder %s113, %s127
      %p129 = scmp.eq.s32.totalorder %s42, 0
      %p130 = por %p128, %p129
      %s132 = sadd.s32 %s131, 1
      %p135 = scmp.eq.s32.totalorder %s36, 3
      %p136 = scmp.ne.s32.totalorder %s131, %s133
      %p137 = scmp.eq.s32.totalorder %s36, 0
      %p138 = por %p136, %p137
      %p139 = scmp.ne.s32.totalorder %s131, %s133
      %p140 = scmp.eq.s32.totalorder %s41, 3
      %p141 = por %p139, %p140
      %p142 = scmp.ne.s32.totalorder %s133, %s134
      %p143 = scmp.eq.s32.totalorder %s41, 0
      %p144 = por %p142, %p143
      %p145 = scmp.ne.s32.totalorder %s133, %s134
      %p146 = scmp.eq.s32.totalorder %s42, 3
      %p147 = por %p145, %p146
      %p149 = scmp.ne.s32.totalorder %s134, %s148
      %p150 = scmp.eq.s32.totalorder %s42, 0
      %p151 = por %p149, %p150
      %s153 = sadd.s32 %s152, 1
      %p156 = scmp.eq.s32.totalorder %s36, 3
      %p157 = scmp.ne.s32.totalorder %s152, %s154
      %p158 = scmp.eq.s32.totalorder %s36, 0
      %p159 = por %p157, %p158
      %p160 = scmp.ne.s32.totalorder %s152, %s154
      %p161 = scmp.eq.s32.totalorder %s41, 3
      %p162 = por %p160, %p161
      %p163 = scmp.ne.s32.totalorder %s154, %s155
      %p164 = scmp.eq.s32.totalorder %s41, 0
      %p165 = por %p163, %p164
      %p166 = scmp.ne.s32.totalorder %s154, %s155
      %p167 = scmp.eq.s32.totalorder %s42, 3
      %p168 = por %p166, %p167
      %p170 = scmp.ne.s32.totalorder %s155, %s169
      %p171 = scmp.eq.s32.totalorder %s42, 0
      %p172 = por %p170, %p171
      %s174 = sadd.s32 %s173, 1
      %p177 = scmp.eq.s32.totalorder %s36, 3
      %p178 = scmp.ne.s32.totalorder %s173, %s175
      %p179 = scmp.eq.s32.totalorder %s36, 0
      %p180 = por %p178, %p179
      %p181 = scmp.ne.s32.totalorder %s173, %s175
      %p182 = scmp.eq.s32.totalorder %s41, 3
      %p183 = por %p181, %p182
      %p184 = scmp.ne.s32.totalorder %s175, %s176
      %p185 = scmp.eq.s32.totalorder %s41, 0
      %p186 = por %p184, %p185
      %p187 = scmp.ne.s32.totalorder %s175, %s176
      %p188 = scmp.eq.s32.totalorder %s42, 3
      %p189 = por %p187, %p188
      %p191 = scmp.ne.s32.totalorder %s176, %s190
      %p192 = scmp.eq.s32.totalorder %s42, 0
      %p193 = por %p191, %p192
      %s195 = sadd.s32 %s194, 1
      %p198 = scmp.eq.s32.totalorder %s36, 3
      %p199 = scmp.ne.s32.totalorder %s194, %s196
      %p200 = scmp.eq.s32.totalorder %s36, 0
      %p201 = por %p199, %p200
      %p202 = scmp.ne.s32.totalorder %s194, %s196
      %p203 = scmp.eq.s32.totalorder %s41, 3
      %p204 = por %p202, %p203
      %p205 = scmp.ne.s32.totalorder %s196, %s197
      %p206 = scmp.eq.s32.totalorder %s41, 0
      %p207 = por %p205, %p206
      %p208 = scmp.ne.s32.totalorder %s196, %s197
      %p209 = scmp.eq.s32.totalorder %s42, 3
      %p210 = por %p208, %p209
      %p212 = scmp.ne.s32.totalorder %s197, %s211
      %p213 = scmp.eq.s32.totalorder %s42, 0
      %p214 = por %p212, %p213
      %s216 = sadd.s32 %s215, 1
      %p219 = scmp.eq.s32.totalorder %s36, 3
      %p220 = scmp.ne.s32.totalorder %s215, %s217
      %p221 = scmp.eq.s32.totalorder %s36, 0
      %p222 = por %p220, %p221
      %p223 = scmp.ne.s32.totalorder %s215, %s217
      %p224 = scmp.eq.s32.totalorder %s41, 3
      %p225 = por %p223, %p224
      %p226 = scmp.ne.s32.totalorder %s217, %s218
      %p227 = scmp.eq.s32.totalorder %s41, 0
      %p228 = por %p226, %p227
      %p229 = scmp.ne.s32.totalorder %s217, %s218
      %p230 = scmp.eq.s32.totalorder %s42, 3
      %p231 = por %p229, %p230
      %p233 = scmp.ne.s32.totalorder %s218, %s232
      %p234 = scmp.eq.s32.totalorder %s42, 0
      %p235 = por %p233, %p234
      %s237 = sadd.s32 %s236, 1
      %p240 = scmp.eq.s32.totalorder %s36, 3
      %p241 = scmp.ne.s32.totalorder %s236, %s238
      %p242 = scmp.eq.s32.totalorder %s36, 0
      %p243 = por %p241, %p242
      %p244 = scmp.ne.s32.totalorder %s236, %s238
      %p245 = scmp.eq.s32.totalorder %s41, 3
      %p246 = por %p244, %p245
      %p247 = scmp.ne.s32.totalorder %s238, %s239
      %p248 = scmp.eq.s32.totalorder %s41, 0
      %p249 = por %p247, %p248
      %p250 = scmp.ne.s32.totalorder %s238, %s239
      %p251 = scmp.eq.s32.totalorder %s42, 3
      %p252 = por %p250, %p251
      %p254 = scmp.ne.s32.totalorder %s239, %s253
      %p255 = scmp.eq.s32.totalorder %s42, 0
      %p256 = por %p254, %p255
      %s258 = sadd.s32 %s257, 1
      %p261 = scmp.eq.s32.totalorder %s36, 3
      %p262 = scmp.ne.s32.totalorder %s257, %s259
      %p263 = scmp.eq.s32.totalorder %s36, 0
      %p264 = por %p262, %p263
      %p265 = scmp.ne.s32.totalorder %s257, %s259
      %p266 = scmp.eq.s32.totalorder %s41, 3
      %p267 = por %p265, %p266
      %p268 = scmp.ne.s32.totalorder %s259, %s260
      %p269 = scmp.eq.s32.totalorder %s41, 0
      %p270 = por %p268, %p269
      %p271 = scmp.ne.s32.totalorder %s259, %s260
      %p272 = scmp.eq.s32.totalorder %s42, 3
      %p273 = por %p271, %p272
      %p275 = scmp.ne.s32.totalorder %s260, %s274
      %p276 = scmp.eq.s32.totalorder %s42, 0
      %p277 = por %p275, %p276
      %s279 = sadd.s32 %s278, 1
      %p282 = scmp.eq.s32.totalorder %s36, 3
      %p283 = scmp.ne.s32.totalorder %s278, %s280
      %p284 = scmp.eq.s32.totalorder %s36, 0
      %p285 = por %p283, %p284
      %p286 = scmp.ne.s32.totalorder %s278, %s280
      %p287 = scmp.eq.s32.totalorder %s41, 3
      %p288 = por %p286, %p287
      %p289 = scmp.ne.s32.totalorder %s280, %s281
      %p290 = scmp.eq.s32.totalorder %s41, 0
      %p291 = por %p289, %p290
      %p292 = scmp.ne.s32.totalorder %s280, %s281
      %p293 = scmp.eq.s32.totalorder %s42, 3
      %p294 = por %p292, %p293
      %p296 = scmp.ne.s32.totalorder %s281, %s295
      %p297 = scmp.eq.s32.totalorder %s42, 0
      %p298 = por %p296, %p297
      %s300 = sadd.s32 %s299, 1
      %p303 = scmp.eq.s32.totalorder %s36, 3
      %p304 = scmp.ne.s32.totalorder %s299, %s301
      %p305 = scmp.eq.s32.totalorder %s36, 0
      %p306 = por %p304, %p305
      %p307 = scmp.ne.s32.totalorder %s299, %s301
      %p308 = scmp.eq.s32.totalorder %s41, 3
      %p309 = por %p307, %p308
      %p310 = scmp.ne.s32.totalorder %s301, %s302
      %p311 = scmp.eq.s32.totalorder %s41, 0
      %p312 = por %p310, %p311
      %p313 = scmp.ne.s32.totalorder %s301, %s302
      %p314 = scmp.eq.s32.totalorder %s42, 3
      %p315 = por %p313, %p314
      %p317 = scmp.ne.s32.totalorder %s302, %s316
      %p318 = scmp.eq.s32.totalorder %s42, 0
      %p319 = por %p317, %p318
      %s321 = sadd.s32 %s320, 1
      %p324 = scmp.eq.s32.totalorder %s36, 3
      %p325 = scmp.ne.s32.totalorder %s320, %s322
      %p326 = scmp.eq.s32.totalorder %s36, 0
      %p327 = por %p325, %p326
      %p328 = scmp.ne.s32.totalorder %s320, %s322
      %p329 = scmp.eq.s32.totalorder %s41, 3
      %p330 = por %p328, %p329
      %p331 = scmp.ne.s32.totalorder %s322, %s323
      %p332 = scmp.eq.s32.totalorder %s41, 0
      %p333 = por %p331, %p332
      %p334 = scmp.ne.s32.totalorder %s322, %s323
      %p335 = scmp.eq.s32.totalorder %s42, 3
      %p336 = por %p334, %p335
      %p338 = scmp.ne.s32.totalorder %s323, %s337
      %p339 = scmp.eq.s32.totalorder %s42, 0
      %p340 = por %p338, %p339
      %s342 = sadd.s32 %s341, 1
      %p345 = scmp.eq.s32.totalorder %s36, 3
      %p346 = scmp.ne.s32.totalorder %s341, %s343
      %p347 = scmp.eq.s32.totalorder %s36, 0
      %p348 = por %p346, %p347
      %p349 = scmp.ne.s32.totalorder %s341, %s343
      %p350 = scmp.eq.s32.totalorder %s41, 3
      %p351 = por %p349, %p350
      %p352 = scmp.ne.s32.totalorder %s343, %s344
      %p353 = scmp.eq.s32.totalorder %s41, 0
      %p354 = por %p352, %p353
      %p355 = scmp.ne.s32.totalorder %s343, %s344
      %p356 = scmp.eq.s32.totalorder %s42, 3
      %p357 = por %p355, %p356
      %p359 = scmp.ne.s32.totalorder %s344, %s358
      %p360 = scmp.eq.s32.totalorder %s42, 0
      %p361 = por %p359, %p360
      %s363 = sadd.s32 %s362, 1
      %p366 = scmp.eq.s32.totalorder %s36, 3
      %p367 = scmp.ne.s32.totalorder %s362, %s364
      %p368 = scmp.eq.s32.totalorder %s36, 0
      %p369 = por %p367, %p368
      %p370 = scmp.ne.s32.totalorder %s362, %s364
      %p371 = scmp.eq.s32.totalorder %s41, 3
      %p372 = por %p370, %p371
      %p373 = scmp.ne.s32.totalorder %s364, %s365
      %p374 = scmp.eq.s32.totalorder %s41, 0
      %p375 = por %p373, %p374
      %p376 = scmp.ne.s32.totalorder %s364, %s365
      %p377 = scmp.eq.s32.totalorder %s42, 3
      %p378 = por %p376, %p377
      %p380 = scmp.ne.s32.totalorder %s365, %s379
      %p381 = scmp.eq.s32.totalorder %s42, 0
      %p382 = por %p380, %p381
      %s384 = sadd.s32 %s383, 1
      %p387 = scmp.eq.s32.totalorder %s36, 3
      %p388 = scmp.ne.s32.totalorder %s383, %s385
      %p389 = scmp.eq.s32.totalorder %s36, 0
      %p390 = por %p388, %p389
      %p391 = scmp.ne.s32.totalorder %s383, %s385
      %p392 = scmp.eq.s32.totalorder %s41, 3
      %p393 = por %p391, %p392
      %p394 = scmp.ne.s32.totalorder %s385, %s386
      %p395 = scmp.eq.s32.totalorder %s41, 0
      %p396 = por %p394, %p395
      %p397 = scmp.ne.s32.totalorder %s385, %s386
      %p398 = scmp.eq.s32.totalorder %s42, 3
      %p399 = por %p397, %p398
      %p401 = scmp.ne.s32.totalorder %s386, %s400
      %p402 = scmp.eq.s32.totalorder %s42, 0
      %p403 = por %p401, %p402
      %s405 = sadd.s32 %s404, 1
      %p408 = scmp.eq.s32.totalorder %s36, 3
      %p409 = scmp.ne.s32.totalorder %s404, %s406
      %p410 = scmp.eq.s32.totalorder %s36, 0
      %p411 = por %p409, %p410
      %p412 = scmp.ne.s32.totalorder %s404, %s406
      %p413 = scmp.eq.s32.totalorder %s41, 3
      %p414 = por %p412, %p413
      %p415 = scmp.ne.s32.totalorder %s406, %s407
      %p416 = scmp.eq.s32.totalorder %s41, 0
      %p417 = por %p415, %p416
      %p418 = scmp.ne.s32.totalorder %s406, %s407
      %p419 = scmp.eq.s32.totalorder %s42, 3
      %p420 = por %p418, %p419
      %p422 = scmp.ne.s32.totalorder %s407, %s421
      %p423 = scmp.eq.s32.totalorder %s42, 0
      %p424 = por %p422, %p423
      %s426 = sadd.s32 %s425, 1
      %p429 = scmp.eq.s32.totalorder %s36, 3
      %p430 = scmp.ne.s32.totalorder %s425, %s427
      %p431 = scmp.eq.s32.totalorder %s36, 0
      %p432 = por %p430, %p431
      %p433 = scmp.ne.s32.totalorder %s425, %s427
      %p434 = scmp.eq.s32.totalorder %s41, 3
      %p435 = por %p433, %p434
      %p436 = scmp.ne.s32.totalorder %s427, %s428
      %p437 = scmp.eq.s32.totalorder %s41, 0
      %p438 = por %p436, %p437
      %p439 = scmp.ne.s32.totalorder %s427, %s428
      %p440 = scmp.eq.s32.totalorder %s42, 3
      %p441 = por %p439, %p440
      %p443 = scmp.ne.s32.totalorder %s428, %s442
      %p444 = scmp.eq.s32.totalorder %s42, 0
      %p445 = por %p443, %p444
      %s447 = sadd.s32 %s446, 1
      %p450 = scmp.eq.s32.totalorder %s36, 3
      %p451 = scmp.ne.s32.totalorder %s446, %s448
      %p452 = scmp.eq.s32.totalorder %s36, 0
      %p453 = por %p451, %p452
      %p454 = scmp.ne.s32.totalorder %s446, %s448
      %p455 = scmp.eq.s32.totalorder %s41, 3
      %p456 = por %p454, %p455
      %p457 = scmp.ne.s32.totalorder %s448, %s449
      %p458 = scmp.eq.s32.totalorder %s41, 0
      %p459 = por %p457, %p458
      %p460 = scmp.ne.s32.totalorder %s448, %s449
      %p461 = scmp.eq.s32.totalorder %s42, 3
      %p462 = por %p460, %p461
      %p464 = scmp.ne.s32.totalorder %s449, %s463
      %p465 = scmp.eq.s32.totalorder %s42, 0
      %p466 = por %p464, %p465
      %s467 = ssub.s32 %s44, %s51
      %p468 = scmp.eq.s32.totalorder %s467, 0
      %s470 = sadd.s32 %s469, 1
      %s471 = scalar_select %p468, %s469, %s470
      %p474 = pneg %p468
      %p475 = scmp.eq.s32.totalorder %s36, 3
      %p476 = por %p474, %p475
      %p477 = scmp.ne.s32.totalorder %s469, %s472
      %p478 = scmp.eq.s32.totalorder %s36, 0
      %p479 = por %p477, %p478
      %p480 = scmp.ne.s32.totalorder %s469, %s472
      %p481 = scmp.eq.s32.totalorder %s41, 3
      %p482 = por %p480, %p481
      %p483 = scmp.ne.s32.totalorder %s472, %s473
      %p484 = scmp.eq.s32.totalorder %s41, 0
      %p485 = por %p483, %p484
      %p486 = scmp.ne.s32.totalorder %s472, %s473
      %p487 = scmp.eq.s32.totalorder %s42, 3
      %p488 = por %p486, %p487
      %p490 = scmp.ne.s32.totalorder %s473, %s489
      %p491 = scmp.eq.s32.totalorder %s42, 0
      %p492 = por %p490, %p491
      %s493 = ssub.s32 %s43, %s55
      %p494 = scmp.eq.s32.totalorder %s493, 0
      %s496 = sadd.s32 %s495, 1
      %s497 = scalar_select %p494, %s495, %s496
      %p500 = pneg %p494
      %p501 = scmp.eq.s32.totalorder %s36, 3
      %p502 = por %p500, %p501
      %p503 = scmp.ne.s32.totalorder %s495, %s498
      %p504 = scmp.eq.s32.totalorder %s36, 0
      %p505 = por %p503, %p504
      %p506 = scmp.ne.s32.totalorder %s495, %s498
      %p507 = scmp.eq.s32.totalorder %s41, 3
      %p508 = por %p506, %p507
      %p509 = scmp.ne.s32.totalorder %s498, %s499
      %p510 = scmp.eq.s32.totalorder %s41, 0
      %p511 = por %p509, %p510
      %p512 = scmp.ne.s32.totalorder %s498, %s499
      %p513 = scmp.eq.s32.totalorder %s42, 3
      %p514 = por %p512, %p513
      %p516 = scmp.ne.s32.totalorder %s499, %s515
      %p517 = scmp.eq.s32.totalorder %s42, 0
      %p518 = por %p516, %p517
      %p519 = scmp.le.s32.totalorder 1, %s36
      %p520 = scmp.lt.s32.totalorder %s36, 5
      %p521 = pnand %p519, %p520
      %p522 = pneg %p521
      // Predicated region
      $region9: #{tpu_custom_call.1} parent=5 // pred_check
        _
      $region10: #{tpu_custom_call.1} parent=5 // pred_check_branch
        %524 = sbr.rel (%p521) target = $region12
      $region11: #{tpu_custom_call.1} parent=5 // pred_region
        %s525 = ssub.s32 %s36, 1
        // Predicated region
        $region13: #{tpu_custom_call.1} parent=11 // pred_check
          %p526 = pneg %p123
        $region14: #{tpu_custom_call.1} parent=11 // pred_check_branch
          %528 = sbr.rel (%p526) target = $region16
        $region15: #{tpu_custom_call.1} parent=11 // pred_region
          _
        $region16: #{tpu_custom_call.1} parent=11 // pred_fallthru
          _
        // Predicated region
        $region17: #{tpu_custom_call.1} parent=11 // pred_check
          %p529 = pneg %p144
        $region18: #{tpu_custom_call.1} parent=11 // pred_check_branch
          %531 = sbr.rel (%p529) target = $region20
        $region19: #{tpu_custom_call.1} parent=11 // pred_region
          _
        $region20: #{tpu_custom_call.1} parent=11 // pred_fallthru
          _
        // Predicated region
        $region21: #{tpu_custom_call.1} parent=11 // pred_check
          %p532 = pneg %p165
        $region22: #{tpu_custom_call.1} parent=11 // pred_check_branch
          %534 = sbr.rel (%p532) target = $region24
        $region23: #{tpu_custom_call.1} parent=11 // pred_region
          _
        $region24: #{tpu_custom_call.1} parent=11 // pred_fallthru
          _
        // Predicated region
        $region25: #{tpu_custom_call.1} parent=11 // pred_check
          %p535 = pneg %p186
        $region26: #{tpu_custom_call.1} parent=11 // pred_check_branch
          %537 = sbr.rel (%p535) target = $region28
        $region27: #{tpu_custom_call.1} parent=11 // pred_region
          _
        $region28: #{tpu_custom_call.1} parent=11 // pred_fallthru
          _
        // Predicated region
        $region29: #{tpu_custom_call.1} parent=11 // pred_check
          %p538 = pneg %p207
        $region30: #{tpu_custom_call.1} parent=11 // pred_check_branch
          %540 = sbr.rel (%p538) target = $region32
        $region31: #{tpu_custom_call.1} parent=11 // pred_region
          %s542 = ssub.s32 16, 16
          %543 = vsyncadd [#allocation10], %s542
          %s545 = sshll.u32 [#allocation9], 4
          %s546 = int_to_ptr.vmem [resolvable:$true] %s545
          %548 = dma.hbm_to_vmem [thread:$0]  %s6, 16, %s546, [#allocation10]
        $region32: #{tpu_custom_call.1} parent=11 // pred_fallthru
          _
        // Predicated region
        $region33: #{tpu_custom_call.1} parent=11 // pred_check
          %p549 = pneg %p228
        $region34: #{tpu_custom_call.1} parent=11 // pred_check_branch
          %551 = sbr.rel (%p549) target = $region36
        $region35: #{tpu_custom_call.1} parent=11 // pred_region
          %s553 = ssub.s32 16, 16
          %554 = vsyncadd [#allocation10], %s553
          %s556 = sshll.u32 [#allocation11], 4
          %s557 = int_to_ptr.vmem [resolvable:$true] %s556
          %559 = dma.hbm_to_vmem [thread:$0]  %s7, 16, %s557, [#allocation10]
        $region36: #{tpu_custom_call.1} parent=11 // pred_fallthru
          _
        // Predicated region
        $region37: #{tpu_custom_call.1} parent=11 // pred_check
          %p560 = pneg %p249
        $region38: #{tpu_custom_call.1} parent=11 // pred_check_branch
          %562 = sbr.rel (%p560) target = $region40
        $region39: #{tpu_custom_call.1} parent=11 // pred_region
          %s564 = ssub.s32 16, 16
          %565 = vsyncadd [#allocation13], %s564
          %s567 = sshll.u32 [#allocation12], 4
          %s568 = int_to_ptr.vmem [resolvable:$true] %s567
          %570 = dma.hbm_to_vmem [thread:$0]  %s8, 16, %s568, [#allocation13]
        $region40: #{tpu_custom_call.1} parent=11 // pred_fallthru
          _
        // Predicated region
        $region41: #{tpu_custom_call.1} parent=11 // pred_check
          %p571 = pneg %p270
        $region42: #{tpu_custom_call.1} parent=11 // pred_check_branch
          %573 = sbr.rel (%p571) target = $region44
        $region43: #{tpu_custom_call.1} parent=11 // pred_region
          _
        $region44: #{tpu_custom_call.1} parent=11 // pred_fallthru
          _
        // Predicated region
        $region45: #{tpu_custom_call.1} parent=11 // pred_check
          %p574 = pneg %p291
        $region46: #{tpu_custom_call.1} parent=11 // pred_check_branch
          %576 = sbr.rel (%p574) target = $region48
        $region47: #{tpu_custom_call.1} parent=11 // pred_region
          %s578 = ssub.s32 16, 16
          %579 = vsyncadd [#allocation13], %s578
          %s581 = sshll.u32 [#allocation14], 4
          %s582 = int_to_ptr.vmem [resolvable:$true] %s581
          %584 = dma.hbm_to_vmem [thread:$0]  %s10, 16, %s582, [#allocation13]
        $region48: #{tpu_custom_call.1} parent=11 // pred_fallthru
          _
        // Predicated region
        $region49: #{tpu_custom_call.1} parent=11 // pred_check
          %p585 = pneg %p312
        $region50: #{tpu_custom_call.1} parent=11 // pred_check_branch
          %587 = sbr.rel (%p585) target = $region52
        $region51: #{tpu_custom_call.1} parent=11 // pred_region
          %s589 = ssub.s32 512, 512
          %590 = vsyncadd [#allocation16], %s589
          %s591 = sshll.u32 [#allocation15], 4
          %s592 = int_to_ptr.vmem [resolvable:$true] %s591
          %597 = dma.hbm_to_vmem [thread:$0]  %s11, 512, %s592, [#allocation16], 128, 128, 8
        $region52: #{tpu_custom_call.1} parent=11 // pred_fallthru
          _
        // Predicated region
        $region53: #{tpu_custom_call.1} parent=11 // pred_check
          %p598 = pneg %p333
        $region54: #{tpu_custom_call.1} parent=11 // pred_check_branch
          %600 = sbr.rel (%p598) target = $region56
        $region55: #{tpu_custom_call.1} parent=11 // pred_region
          _
        $region56: #{tpu_custom_call.1} parent=11 // pred_fallthru
          _
        // Predicated region
        $region57: #{tpu_custom_call.1} parent=11 // pred_check
          %p601 = pneg %p354
        $region58: #{tpu_custom_call.1} parent=11 // pred_check_branch
          %603 = sbr.rel (%p601) target = $region60
        $region59: #{tpu_custom_call.1} parent=11 // pred_region
          %s605 = ssub.s32 512, 512
          %606 = vsyncadd [#allocation16], %s605
          %s607 = sshll.u32 [#allocation17], 4
          %s608 = int_to_ptr.vmem [resolvable:$true] %s607
          %613 = dma.hbm_to_vmem [thread:$0]  %s13, 512, %s608, [#allocation16], 128, 128, 8
        $region60: #{tpu_custom_call.1} parent=11 // pred_fallthru
          _
        // Predicated region
        $region61: #{tpu_custom_call.1} parent=11 // pred_check
          %p614 = pneg %p375
        $region62: #{tpu_custom_call.1} parent=11 // pred_check_branch
          %616 = sbr.rel (%p614) target = $region64
        $region63: #{tpu_custom_call.1} parent=11 // pred_region
          _
        $region64: #{tpu_custom_call.1} parent=11 // pred_fallthru
          _
        // Predicated region
        $region65: #{tpu_custom_call.1} parent=11 // pred_check
          %p617 = pneg %p396
        $region66: #{tpu_custom_call.1} parent=11 // pred_check_branch
          %619 = sbr.rel (%p617) target = $region68
        $region67: #{tpu_custom_call.1} parent=11 // pred_region
          %s621 = ssub.s32 512, 512
          %622 = vsyncadd [#allocation19], %s621
          %s623 = sshll.u32 [#allocation18], 4
          %s624 = int_to_ptr.vmem [resolvable:$true] %s623
          %629 = dma.hbm_to_vmem [thread:$0]  %s15, 512, %s624, [#allocation19], 128, 128, 8
        $region68: #{tpu_custom_call.1} parent=11 // pred_fallthru
          _
        // Predicated region
        $region69: #{tpu_custom_call.1} parent=11 // pred_check
          %p630 = pneg %p417
        $region70: #{tpu_custom_call.1} parent=11 // pred_check_branch
          %632 = sbr.rel (%p630) target = $region72
        $region71: #{tpu_custom_call.1} parent=11 // pred_region
          _
        $region72: #{tpu_custom_call.1} parent=11 // pred_fallthru
          _
        // Predicated region
        $region73: #{tpu_custom_call.1} parent=11 // pred_check
          %p633 = pneg %p438
        $region74: #{tpu_custom_call.1} parent=11 // pred_check_branch
          %635 = sbr.rel (%p633) target = $region76
        $region75: #{tpu_custom_call.1} parent=11 // pred_region
          _
        $region76: #{tpu_custom_call.1} parent=11 // pred_fallthru
          _
        // Predicated region
        $region77: #{tpu_custom_call.1} parent=11 // pred_check
          %p636 = pneg %p459
        $region78: #{tpu_custom_call.1} parent=11 // pred_check_branch
          %638 = sbr.rel (%p636) target = $region80
        $region79: #{tpu_custom_call.1} parent=11 // pred_region
          _
        $region80: #{tpu_custom_call.1} parent=11 // pred_fallthru
          _
      $region12: #{tpu_custom_call.1} parent=5 // pred_fallthru
        _
      %p639 = scmp.lt.s32.totalorder %s36, 4
      // Predicated region
      $region81: #{tpu_custom_call.1} parent=5 // pred_check
        %p640 = pneg %p639
      $region82: #{tpu_custom_call.1} parent=5 // pred_check_branch
        %642 = sbr.rel (%p640) target = $region84
      $region83: #{tpu_custom_call.1} parent=5 // pred_region
        // Predicated region
        $region85: #{tpu_custom_call.1} parent=83 // pred_check
          %p643 = pneg %p68
        $region86: #{tpu_custom_call.1} parent=83 // pred_check_branch
          %645 = sbr.rel (%p643) target = $region88
        $region87: #{tpu_custom_call.1} parent=83 // pred_region
          %p646 = scmp.lt.s32.totalorder %s43, 1
          %s647 = scalar_select %p646, %s43, 1
          %s648 = scalar_lea.vmem %s0, %s647
        $region88: #{tpu_custom_call.1} parent=83 // pred_fallthru
          _
        // Predicated region
        $region89: #{tpu_custom_call.1} parent=83 // pred_check
          %p649 = pneg %p96
        $region90: #{tpu_custom_call.1} parent=83 // pred_check_branch
          %651 = sbr.rel (%p649) target = $region92
        $region91: #{tpu_custom_call.1} parent=83 // pred_region
          %s652 = sand.u32 %s86, 1
          %s653 = scalar_lea.sflag [#allocation7], %s652
          %s654 = sand.u32 %s86, 1
          %s655 = smul.addr %s654, 32
          %s656 = scalar_lea.vmem [#allocation6], %s655
          %s658 = ssub.s32 512, 512
          %659 = vsyncadd %s653, %s658
          %s660 = smul.addr %s43, 8
          %s661 = sadd.s32 %s44, %s660
          %s662 = smul.addr %s661, 128
          %s663 = scalar_lea.hbm %s1, %s662
          %s664 = sshll.u32 %s656, 4
          %s665 = int_to_ptr.vmem [resolvable:$true] %s664
          %670 = dma.hbm_to_vmem [thread:$0]  %s663, 512, %s665, %s653, 256, 128, 8
        $region92: #{tpu_custom_call.1} parent=83 // pred_fallthru
          _
        // Predicated region
        $region93: #{tpu_custom_call.1} parent=83 // pred_check
          %p671 = pneg %p479
        $region94: #{tpu_custom_call.1} parent=83 // pred_check_branch
          %673 = sbr.rel (%p671) target = $region96
        $region95: #{tpu_custom_call.1} parent=83 // pred_region
          %p674 = scmp.lt.s32.totalorder %s44, 1
          %s675 = scalar_select %p674, %s44, 1
          %s676 = scalar_lea.vmem %s19, %s675
        $region96: #{tpu_custom_call.1} parent=83 // pred_fallthru
          _
      $region84: #{tpu_custom_call.1} parent=5 // pred_fallthru
        _
      %p677 = scmp.le.s32.totalorder 1, %s36
      %p678 = scmp.lt.s32.totalorder %s36, 5
      %p679 = pnand %p677, %p678
      %p680 = pneg %p679
      // Predicated region
      $region97: #{tpu_custom_call.1} parent=5 // pred_check
        _
      $region98: #{tpu_custom_call.1} parent=5 // pred_check_branch
        %682 = sbr.rel (%p679) target = $region100
      $region99: #{tpu_custom_call.1} parent=5 // pred_region
        %s683 = ssub.s32 %s36, 1
        %s684 = sand.u32 %s89, 1
        %s685 = scalar_lea.sflag [#allocation7], %s684
        %s686 = sand.u32 %s89, 1
        %s687 = smul.addr %s686, 32
        %s688 = scalar_lea.vmem [#allocation6], %s687
        // Predicated region
        $region101: #{tpu_custom_call.1} parent=99 // pred_check
          %p689 = pneg %p102
        $region102: #{tpu_custom_call.1} parent=99 // pred_check_branch
          %691 = sbr.rel (%p689) target = $region104
        $region103: #{tpu_custom_call.1} parent=99 // pred_region
          %692 = dma.done %s685, 512
        $region104: #{tpu_custom_call.1} parent=99 // pred_fallthru
          _
        // Predicated region
        $region105: #{tpu_custom_call.1} parent=99 // pred_check
          %p693 = pneg %p207
        $region106: #{tpu_custom_call.1} parent=99 // pred_check_branch
          %695 = sbr.rel (%p693) target = $region108
        $region107: #{tpu_custom_call.1} parent=99 // pred_region
          %696 = dma.done [#allocation10], 16
        $region108: #{tpu_custom_call.1} parent=99 // pred_fallthru
          _
        // Predicated region
        $region109: #{tpu_custom_call.1} parent=99 // pred_check
          %p697 = pneg %p228
        $region110: #{tpu_custom_call.1} parent=99 // pred_check_branch
          %699 = sbr.rel (%p697) target = $region112
        $region111: #{tpu_custom_call.1} parent=99 // pred_region
          %700 = dma.done [#allocation10], 16
        $region112: #{tpu_custom_call.1} parent=99 // pred_fallthru
          _
        // Predicated region
        $region113: #{tpu_custom_call.1} parent=99 // pred_check
          %p701 = pneg %p249
        $region114: #{tpu_custom_call.1} parent=99 // pred_check_branch
          %703 = sbr.rel (%p701) target = $region116
        $region115: #{tpu_custom_call.1} parent=99 // pred_region
          %704 = dma.done [#allocation13], 16
        $region116: #{tpu_custom_call.1} parent=99 // pred_fallthru
          _
        // Predicated region
        $region117: #{tpu_custom_call.1} parent=99 // pred_check
          %p705 = pneg %p291
        $region118: #{tpu_custom_call.1} parent=99 // pred_check_branch
          %707 = sbr.rel (%p705) target = $region120
        $region119: #{tpu_custom_call.1} parent=99 // pred_region
          %708 = dma.done [#allocation13], 16
        $region120: #{tpu_custom_call.1} parent=99 // pred_fallthru
          _
        // Predicated region
        $region121: #{tpu_custom_call.1} parent=99 // pred_check
          %p709 = pneg %p312
        $region122: #{tpu_custom_call.1} parent=99 // pred_check_branch
          %711 = sbr.rel (%p709) target = $region124
        $region123: #{tpu_custom_call.1} parent=99 // pred_region
          %712 = dma.done [#allocation16], 512
        $region124: #{tpu_custom_call.1} parent=99 // pred_fallthru
          _
        // Predicated region
        $region125: #{tpu_custom_call.1} parent=99 // pred_check
          %p713 = pneg %p354
        $region126: #{tpu_custom_call.1} parent=99 // pred_check_branch
          %715 = sbr.rel (%p713) target = $region128
        $region127: #{tpu_custom_call.1} parent=99 // pred_region
          %716 = dma.done [#allocation16], 512
        $region128: #{tpu_custom_call.1} parent=99 // pred_fallthru
          _
        // Predicated region
        $region129: #{tpu_custom_call.1} parent=99 // pred_check
          %p717 = pneg %p396
        $region130: #{tpu_custom_call.1} parent=99 // pred_check_branch
          %719 = sbr.rel (%p717) target = $region132
        $region131: #{tpu_custom_call.1} parent=99 // pred_region
          %720 = dma.done [#allocation19], 512
        $region132: #{tpu_custom_call.1} parent=99 // pred_fallthru
          _
        %p721 = scmp.lt.s32.totalorder %s45, 1
        %s722 = scalar_select %p721, %s45, 1
        %s723 = scalar_lea.vmem %s0, %s722
        %p724 = pneg %p74
        %p725 = pneg %p71
        %s726 = sand.u32 %s89, 1
        %s727 = scalar_lea.sflag [#allocation7], %s726
        %s728 = sand.u32 %s89, 1
        %s729 = smul.addr %s728, 32
        %s730 = scalar_lea.vmem [#allocation6], %s729
        %p731 = pneg %p102
        %p732 = pneg %p99
        %p733 = pneg %p123
        %p734 = pneg %p120
        %p735 = pneg %p144
        %p736 = pneg %p141
        %p737 = pneg %p165
        %p738 = pneg %p162
        %p739 = pneg %p186
        %p740 = pneg %p183
        %p741 = pneg %p207
        %p742 = pneg %p204
        %p743 = pneg %p228
        %p744 = pneg %p225
        %p745 = pneg %p249
        %p746 = pneg %p246
        %p747 = pneg %p270
        %p748 = pneg %p267
        %p749 = pneg %p291
        %p750 = pneg %p288
        %p751 = pneg %p312
        %p752 = pneg %p309
        %p753 = pneg %p333
        %p754 = pneg %p330
        %p755 = pneg %p354
        %p756 = pneg %p351
        %p757 = pneg %p375
        %p758 = pneg %p372
        %p759 = pneg %p396
        %p760 = pneg %p393
        %p761 = pneg %p417
        %p762 = pneg %p414
        %p763 = pneg %p438
        %p764 = pneg %p435
        %p765 = pneg %p459
        %p766 = pneg %p456
        %p767 = scmp.lt.s32.totalorder %s46, 1
        %s768 = scalar_select %p767, %s46, 1
        %s769 = scalar_lea.vmem %s19, %s768
        %p770 = pneg %p485
        %p771 = pneg %p482
        %p772 = pneg %p511
        %p773 = pneg %p508
        %s774 = sand.u32 %s498, 1
        %s775 = scalar_lea.sflag [#allocation8], %s774
        %s776 = sand.u32 %s498, 1
        %s777 = scalar_lea.vmem [#allocation20], %s776
        %p778 = scmp.lt.s32.totalorder %s45, 1
        %s779 = scalar_select %p778, %s45, 1
        %s780 = scalar_lea.vmem %s0, %s779
        %p781 = scmp.lt.s32.totalorder %s46, 1
        %s782 = scalar_select %p781, %s46, 1
        %s783 = scalar_lea.vmem %s19, %s782
        %p784 = scmp.eq.s32.totalorder %s46, 0
        // Predicated region
        $region133: #{tpu_custom_call.1} parent=99 // pred_check
          %p785 = pneg %p784
        $region134: #{tpu_custom_call.1} parent=99 // pred_check_branch
          %787 = sbr.rel (%p785) target = $region136
        $region135: #{tpu_custom_call.1} parent=99 // pred_region
          %v788 = vld [vmem:[%s780] sm:$0x1]
          %v789 = vld [vmem:[%s5] sm:$0x1]
          %v790 = vld [vmem:[#allocation9] sm:$0x1]
          %vm791 = vcmask 253952
          %v792 = vsel %vm791, %v788, 0.0
          %793 = vadd.xlane.f32.xlu0 %v792
          %v794 = vpop.xlane.xlu0 %793
          %v795 = vrcp.pop 32.0
          %v796 = vmul.f32 %v794, %v795
          %v797 = vsub.f32 %v788, %v796
          %v798 = vmul.f32 %v797, %v797
          %v799 = vsel %vm791, %v798, 0.0
          %800 = vadd.xlane.f32.xlu0 %v799
          %v801 = vpop.xlane.xlu0 %800
          %v802 = vmul.f32 %v801, %v795
          %v803 = vadd.f32 %v802, 1e-05
          %v804 = vrsqrt.pop %v803
          %v805 = vmul.f32 %v797, %v804
          %v806 = vmul.f32 %v805, %v789
          %v807 = vadd.f32 %v806, %v790
          %v808 = vld [vmem:[%s9] sm:$0xff]
          %v809 = vld [vmem:[%s9 + $0x8] sm:$0xff]
          %v810 = vld [vmem:[%s9 + $0x10] sm:$0xff]
          %v811 = vld [vmem:[%s9 + $0x18] sm:$0xff]
          %v812 = vld [vmem:[#allocation14] sm:$0x1]
          %vm813 = vcmask 261120
          %v815 = vsel %vm813, %v807, 0
          %817 = vmatprep.subr.mxu0 0.0
          %818 = vmatpush1.msra.mxu0 0.0
          %819 = vmatprep.subr.mxu0 0.0
          %820 = vmatpush1.msra.mxu0 0.0
          %821 = vmatprep.subr.mxu0 0.0
          %822 = vmatpush1.msra.mxu0 0.0
          %823 = vmatprep.subr.mxu0 0.0
          %824 = vmatpush1.msra.mxu0 0.0
          %825 = vmatprep.subr.mxu0 0.0
          %826 = vmatpush1.msra.mxu0 0.0
          %827 = vmatprep.subr.mxu0 0.0
          %828 = vmatpush1.msra.mxu0 0.0
          %829 = vmatprep.subr.mxu0 0.0
          %830 = vmatpush1.msra.mxu0 0.0
          %831 = vmatprep.subr.mxu0 0.0
          %832 = vmatpush1.msra.mxu0 0.0
          %833 = vmatprep.subr.mxu0 0.0
          %834 = vmatpush1.msra.mxu0 0.0
          %835 = vmatprep.subr.mxu0 0.0
          %836 = vmatpush1.msra.mxu0 0.0
          %837 = vmatprep.subr.mxu0 0.0
          %838 = vmatpush1.msra.mxu0 0.0
          %839 = vmatprep.subr.mxu0 0.0
          %840 = vmatpush1.msra.mxu0 0.0
          %841 = vmatprep.subr.mxu0 0.0
          %842 = vmatpush1.msra.mxu0 %v811
          %843 = vmatprep.subr.mxu0 0.0
          %844 = vmatpush1.msra.mxu0 %v810
          %845 = vmatprep.subr.mxu0 0.0
          %846 = vmatpush1.msra.mxu0 %v809
          %847 = vmatprep.subr.mxu0 0.0
          %848 = vmatpush1.msra.mxu0 %v808
          %849 = vmatprep.subr.mxu0 0.0
          %850 = vmatpush2.msra.mxu0 0.0
          %851 = vmatprep.subr.mxu0 0.0
          %852 = vmatpush2.msra.mxu0 0.0
          %853 = vmatprep.subr.mxu0 0.0
          %854 = vmatpush2.msra.mxu0 0.0
          %855 = vmatprep.subr.mxu0 0.0
          %856 = vmatpush2.msra.mxu0 0.0
          %857 = vmatprep.subr.mxu0 0.0
          %858 = vmatpush2.msra.mxu0 0.0
          %859 = vmatprep.subr.mxu0 0.0
          %860 = vmatpush2.msra.mxu0 0.0
          %861 = vmatprep.subr.mxu0 0.0
          %862 = vmatpush2.msra.mxu0 0.0
          %863 = vmatprep.subr.mxu0 0.0
          %864 = vmatpush2.msra.mxu0 0.0
          %865 = vmatprep.subr.mxu0 0.0
          %866 = vmatpush2.msra.mxu0 0.0
          %867 = vmatprep.subr.mxu0 0.0
          %868 = vmatpush2.msra.mxu0 0.0
          %869 = vmatprep.subr.mxu0 0.0
          %870 = vmatpush2.msra.mxu0 0.0
          %871 = vmatprep.subr.mxu0 0.0
          %872 = vmatpush2.msra.mxu0 0.0
          %873 = vmatprep.subr.mxu0 0.0
          %874 = vmatpush2.msra.mxu0 0.0
          %875 = vmatprep.subr.mxu0 0.0
          %876 = vmatpush2.msra.mxu0 0.0
          %877 = vmatprep.subr.mxu0 0.0
          %878 = vmatpush2.msra.mxu0 0.0
          %879 = vmatprep.subr.mxu0 0.0
          %880 = vmatpush2.msra.mxu0 0.0
          %881 = vmatprep.mubr.f32.mxu0 0.0
          %882 = vmatmul.mubr.f32.gmra.mxu0 %v815
          %v883 = vpop.f32.mrf.mxu0
          %v884 = vadd.f32 %v812, %v883
          %v885 = vpop.f32.mrf.mxu0
          %886 = vdwg.mxu0
          %887 = vst.msk [vmem:[#allocation2] sm:$0x1] %vm791, %v884
          %vm888 = vcmask 24576
          %889 = vst.msk [vmem:[#allocation3] sm:$0x1] %vm888, -inf
          %890 = vst.msk [vmem:[#allocation4] sm:$0x1] %vm888, 0.0
          %891 = vst.msk [vmem:[#allocation5] sm:$0x1] %vm791, 0.0
        $region136: #{tpu_custom_call.1} parent=99 // pred_fallthru
          _
        %v892 = vld [vmem:[%s688] sm:$0xff]
        %v893 = vld [vmem:[%s688 + $0x8] sm:$0xff]
        %v894 = vld [vmem:[%s688 + $0x10] sm:$0xff]
        %v895 = vld [vmem:[%s688 + $0x18] sm:$0xff]
        %v896 = vld [vmem:[%s2] sm:$0x7]
        %v897 = vlaneseq
        %v898 = vshrl.u32 %v897, 7
        %v899 = vadd.s32 %v898, 8
        %v900 = vadd.s32 %v898, 16
        %v901 = vadd.s32 %v898, 24
        %vm902 = vcmp.ge.s32.totalorder %v898, 8
        %vm903 = vcmp.ge.s32.totalorder %v899, 8
        %vm904 = vcmp.ge.s32.totalorder %v900, 8
        %vm905 = vcmp.ge.s32.totalorder %v901, 8
        %v906 = vsel %vm902, 1, 0
        %v907 = vsel %vm903, 1, 0
        %v908 = vsel %vm904, 1, 0
        %v909 = vsel %vm905, 1, 0
        %vm910 = vcmp.eq.s32.totalorder %v906, 1
        %vm911 = vcmp.eq.s32.totalorder %v907, 1
        %vm912 = vcmp.eq.s32.totalorder %v908, 1
        %vm913 = vcmp.eq.s32.totalorder %v909, 1
        %v914 = vsel %vm910, %v895, 0.0
        %v915 = vsel %vm911, %v892, 0.0
        %v916 = vsel %vm912, %v893, 0.0
        %v917 = vsel %vm913, %v894, 0.0
        %vm918 = vcmp.lt.s32.totalorder %v898, 24
        %vm919 = vcmp.lt.s32.totalorder %v899, 24
        %vm920 = vcmp.lt.s32.totalorder %v900, 24
        %vm921 = vcmp.lt.s32.totalorder %v901, 24
        %v922 = vsel %vm918, 1, 0
        %v923 = vsel %vm919, 1, 0
        %v924 = vsel %vm920, 1, 0
        %v925 = vsel %vm921, 1, 0
        %vm926 = vcmp.eq.s32.totalorder %v922, 1
        %vm927 = vcmp.eq.s32.totalorder %v923, 1
        %vm928 = vcmp.eq.s32.totalorder %v924, 1
        %vm929 = vcmp.eq.s32.totalorder %v925, 1
        %v930 = vsel %vm926, %v893, 0.0
        %v931 = vsel %vm927, %v894, 0.0
        %v932 = vsel %vm928, %v895, 0.0
        %v933 = vsel %vm929, %v892, 0.0
        %v934 = vlaneseq
        %v935 = vshrl.u32 %v934, 7
        %v936 = vsub.s32 0, %v935
        %v937 = vrot.slane %v896, %v936
        %v938 = vmul.f32 %v914, %v937
        %v939 = vmul.f32 %v915, %v937
        %v940 = vmul.f32 %v916, %v937
        %v941 = vmul.f32 %v917, %v937
        %v942 = vlaneseq
        %v943 = vshrl.u32 %v942, 7
        %v944 = vsub.s32 1, %v943
        %v945 = vrot.slane %v896, %v944
        %v946 = vmul.f32 %v892, %v945
        %v947 = vmul.f32 %v893, %v945
        %v948 = vmul.f32 %v894, %v945
        %v949 = vmul.f32 %v895, %v945
        %v950 = vadd.f32 %v938, %v946
        %v951 = vadd.f32 %v939, %v947
        %v952 = vadd.f32 %v940, %v948
        %v953 = vadd.f32 %v941, %v949
        %v954 = vlaneseq
        %v955 = vshrl.u32 %v954, 7
        %v956 = vsub.s32 2, %v955
        %v957 = vrot.slane %v896, %v956
        %v958 = vmul.f32 %v930, %v957
        %v959 = vmul.f32 %v931, %v957
        %v960 = vmul.f32 %v932, %v957
        %v961 = vmul.f32 %v933, %v957
        %v962 = vadd.f32 %v950, %v958
        %v963 = vadd.f32 %v951, %v959
        %v964 = vadd.f32 %v952, %v960
        %v965 = vadd.f32 %v953, %v961
        %v966 = vld [vmem:[%s3] sm:$0x1]
        %v968 = vlaneseq
        %v969 = vshrl.u32 %v968, 7
        %v970 = vsub.s32 0, %v969
        %v971 = vrot.slane %v966, %v970
        %v973 = vadd.f32 %v962, %v971
        %v974 = vadd.f32 %v963, %v971
        %v975 = vadd.f32 %v964, %v971
        %v976 = vadd.f32 %v965, %v971
        %v977 = vld [vmem:[%s4] sm:$0xf]
        %v980 = vunpack.c.l.s4 1966171168
        %v981 = vunpack.c.0.s8 %v980
        %v982 = vlaneseq
        %v983 = vshrl.u32 %v982, 7
        %v984 = vsub.s32 %v981, %v983
        %v985 = vrot.slane %v977, %v984
        %v986 = vcombine.high %v985, %v985
        %v988 = vunpack.c.l.s4 1966171168
        %v989 = vunpack.c.0.s8 %v988
        %v990 = vlaneseq
        %v991 = vshrl.u32 %v990, 7
        %v992 = vsub.s32 %v989, %v991
        %v993 = vrot.slane %v985, %v992
        %v995 = vunpack.c.l.s4 1966171168
        %v996 = vunpack.c.0.s8 %v995
        %v997 = vlaneseq
        %v998 = vshrl.u32 %v997, 7
        %v999 = vsub.s32 %v996, %v998
        %v1000 = vrot.slane %v986, %v999
        %v1001 = vcombine.high %v993, %v993
        %v1002 = vcombine.high %v1000, %v1000
        %v1003 = vlaneseq
        %v1004 = vshrl.u32 %v1003, 7
        %v1005 = vsub.s32 0, %v1004
        %v1006 = vrot.slane %v993, %v1005
        %v1007 = vlaneseq
        %v1008 = vshrl.u32 %v1007, 7
        %v1009 = vsub.s32 0, %v1008
        %v1010 = vrot.slane %v1000, %v1009
        %v1011 = vlaneseq
        %v1012 = vshrl.u32 %v1011, 7
        %v1013 = vsub.s32 0, %v1012
        %v1014 = vrot.slane %v1001, %v1013
        %v1015 = vlaneseq
        %v1016 = vshrl.u32 %v1015, 7
        %v1017 = vsub.s32 0, %v1016
        %v1018 = vrot.slane %v1002, %v1017
        %v1023 = vadd.f32 %v892, %v1006
        %v1024 = vadd.f32 %v893, %v1010
        %v1025 = vadd.f32 %v894, %v1014
        %v1026 = vadd.f32 %v895, %v1018
        %v1027 = vadd.f32 %v1023, %v973
        %v1028 = vadd.f32 %v1024, %v974
        %v1029 = vadd.f32 %v1025, %v975
        %v1030 = vadd.f32 %v1026, %v976
        %v1031 = vld [vmem:[#allocation11] sm:$0x1]
        %v1032 = vld [vmem:[#allocation12] sm:$0x1]
        %vm1033 = vcmask 261120
        %v1034 = vsel %vm1033, %v1027, 0.0
        %1035 = vadd.xlane.f32.xlu0 %v1034
        %v1036 = vpop.xlane.xlu0 %1035
        %v1037 = vsel %vm1033, %v1028, 0.0
        %1038 = vadd.xlane.f32.xlu0 %v1037
        %v1039 = vpop.xlane.xlu0 %1038
        %v1040 = vsel %vm1033, %v1029, 0.0
        %1041 = vadd.xlane.f32.xlu0 %v1040
        %v1042 = vpop.xlane.xlu0 %1041
        %v1043 = vsel %vm1033, %v1030, 0.0
        %1044 = vadd.xlane.f32.xlu0 %v1043
        %v1045 = vpop.xlane.xlu0 %1044
        %v1046 = vrcp.pop 32.0
        %v1047 = vmul.f32 %v1036, %v1046
        %v1048 = vmul.f32 %v1039, %v1046
        %v1049 = vmul.f32 %v1042, %v1046
        %v1050 = vmul.f32 %v1045, %v1046
        %v1051 = vsub.f32 %v1027, %v1047
        %v1052 = vsub.f32 %v1028, %v1048
        %v1053 = vsub.f32 %v1029, %v1049
        %v1054 = vsub.f32 %v1030, %v1050
        %v1055 = vmul.f32 %v1051, %v1051
        %v1056 = vmul.f32 %v1052, %v1052
        %v1057 = vmul.f32 %v1053, %v1053
        %v1058 = vmul.f32 %v1054, %v1054
        %v1059 = vsel %vm1033, %v1055, 0.0
        %1060 = vadd.xlane.f32.xlu0 %v1059
        %v1061 = vpop.xlane.xlu0 %1060
        %v1062 = vsel %vm1033, %v1056, 0.0
        %1063 = vadd.xlane.f32.xlu0 %v1062
        %v1064 = vpop.xlane.xlu0 %1063
        %v1065 = vsel %vm1033, %v1057, 0.0
        %1066 = vadd.xlane.f32.xlu0 %v1065
        %v1067 = vpop.xlane.xlu0 %1066
        %v1068 = vsel %vm1033, %v1058, 0.0
        %1069 = vadd.xlane.f32.xlu0 %v1068
        %v1070 = vpop.xlane.xlu0 %1069
        %v1071 = vmul.f32 %v1061, %v1046
        %v1072 = vmul.f32 %v1064, %v1046
        %v1073 = vmul.f32 %v1067, %v1046
        %v1074 = vmul.f32 %v1070, %v1046
        %v1075 = vadd.f32 %v1071, 1e-05
        %v1076 = vadd.f32 %v1072, 1e-05
        %v1077 = vadd.f32 %v1073, 1e-05
        %v1078 = vadd.f32 %v1074, 1e-05
        %v1079 = vrsqrt.pop %v1075
        %v1080 = vrsqrt.pop %v1076
        %v1081 = vrsqrt.pop %v1077
        %v1082 = vrsqrt.pop %v1078
        %v1083 = vmul.f32 %v1051, %v1079
        %v1084 = vmul.f32 %v1052, %v1080
        %v1085 = vmul.f32 %v1053, %v1081
        %v1086 = vmul.f32 %v1054, %v1082
        %v1088 = vlaneseq
        %v1089 = vshrl.u32 %v1088, 7
        %v1090 = vsub.s32 0, %v1089
        %v1091 = vrot.slane %v1031, %v1090
        %v1093 = vmul.f32 %v1083, %v1091
        %v1094 = vmul.f32 %v1084, %v1091
        %v1095 = vmul.f32 %v1085, %v1091
        %v1096 = vmul.f32 %v1086, %v1091
        %v1098 = vlaneseq
        %v1099 = vshrl.u32 %v1098, 7
        %v1100 = vsub.s32 0, %v1099
        %v1101 = vrot.slane %v1032, %v1100
        %v1103 = vadd.f32 %v1093, %v1101
        %v1104 = vadd.f32 %v1094, %v1101
        %v1105 = vadd.f32 %v1095, %v1101
        %v1106 = vadd.f32 %v1096, %v1101
        %v1107 = vld [vmem:[#allocation15] sm:$0xff]
        %v1108 = vld [vmem:[#allocation15 + $0x8] sm:$0xff]
        %v1109 = vld [vmem:[#allocation15 + $0x10] sm:$0xff]
        %v1110 = vld [vmem:[#allocation15 + $0x18] sm:$0xff]
        %v1111 = vld [vmem:[%s12] sm:$0x1]
        %v1113 = vlaneseq
        %v1114 = vshrl.u32 %v1113, 7
        %v1115 = vsub.s32 0, %v1114
        %v1116 = vrot.slane %v1111, %v1115
        %v1119 = vsel %vm1033, %v1103, 0
        %v1122 = vsel %vm1033, %v1104, 0
        %v1125 = vsel %vm1033, %v1105, 0
        %v1128 = vsel %vm1033, %v1106, 0
        %1130 = vmatprep.subr.mxu0 0.0
        %1131 = vmatpush1.msra.mxu0 0.0
        %1132 = vmatprep.subr.mxu0 0.0
        %1133 = vmatpush1.msra.mxu0 0.0
        %1134 = vmatprep.subr.mxu0 0.0
        %1135 = vmatpush1.msra.mxu0 0.0
        %1136 = vmatprep.subr.mxu0 0.0
        %1137 = vmatpush1.msra.mxu0 0.0
        %1138 = vmatprep.subr.mxu0 0.0
        %1139 = vmatpush1.msra.mxu0 0.0
        %1140 = vmatprep.subr.mxu0 0.0
        %1141 = vmatpush1.msra.mxu0 0.0
        %1142 = vmatprep.subr.mxu0 0.0
        %1143 = vmatpush1.msra.mxu0 0.0
        %1144 = vmatprep.subr.mxu0 0.0
        %1145 = vmatpush1.msra.mxu0 0.0
        %1146 = vmatprep.subr.mxu0 0.0
        %1147 = vmatpush1.msra.mxu0 0.0
        %1148 = vmatprep.subr.mxu0 0.0
        %1149 = vmatpush1.msra.mxu0 0.0
        %1150 = vmatprep.subr.mxu0 0.0
        %1151 = vmatpush1.msra.mxu0 0.0
        %1152 = vmatprep.subr.mxu0 0.0
        %1153 = vmatpush1.msra.mxu0 0.0
        %1154 = vmatprep.subr.mxu0 0.0
        %1155 = vmatpush1.msra.mxu0 %v1110
        %1156 = vmatprep.subr.mxu0 0.0
        %1157 = vmatpush1.msra.mxu0 %v1109
        %1158 = vmatprep.subr.mxu0 0.0
        %1159 = vmatpush1.msra.mxu0 %v1108
        %1160 = vmatprep.subr.mxu0 0.0
        %1161 = vmatpush1.msra.mxu0 %v1107
        %1162 = vmatprep.subr.mxu0 0.0
        %1163 = vmatpush2.msra.mxu0 0.0
        %1164 = vmatprep.subr.mxu0 0.0
        %1165 = vmatpush2.msra.mxu0 0.0
        %1166 = vmatprep.subr.mxu0 0.0
        %1167 = vmatpush2.msra.mxu0 0.0
        %1168 = vmatprep.subr.mxu0 0.0
        %1169 = vmatpush2.msra.mxu0 0.0
        %1170 = vmatprep.subr.mxu0 0.0
        %1171 = vmatpush2.msra.mxu0 0.0
        %1172 = vmatprep.subr.mxu0 0.0
        %1173 = vmatpush2.msra.mxu0 0.0
        %1174 = vmatprep.subr.mxu0 0.0
        %1175 = vmatpush2.msra.mxu0 0.0
        %1176 = vmatprep.subr.mxu0 0.0
        %1177 = vmatpush2.msra.mxu0 0.0
        %1178 = vmatprep.subr.mxu0 0.0
        %1179 = vmatpush2.msra.mxu0 0.0
        %1180 = vmatprep.subr.mxu0 0.0
        %1181 = vmatpush2.msra.mxu0 0.0
        %1182 = vmatprep.subr.mxu0 0.0
        %1183 = vmatpush2.msra.mxu0 0.0
        %1184 = vmatprep.subr.mxu0 0.0
        %1185 = vmatpush2.msra.mxu0 0.0
        %1186 = vmatprep.subr.mxu0 0.0
        %1187 = vmatpush2.msra.mxu0 0.0
        %1188 = vmatprep.subr.mxu0 0.0
        %1189 = vmatpush2.msra.mxu0 0.0
        %1190 = vmatprep.subr.mxu0 0.0
        %1191 = vmatpush2.msra.mxu0 0.0
        %1192 = vmatprep.subr.mxu0 0.0
        %1193 = vmatpush2.msra.mxu0 0.0
        %1194 = vmatprep.mubr.f32.mxu0 0.0
        %1195 = vmatmul.mubr.f32.gmra.mxu0 %v1119
        %v1196 = vpop.f32.mrf.mxu0
        %v1197 = vadd.f32 %v1116, %v1196
        %v1198 = vpop.f32.mrf.mxu0
        %1199 = vmatprep.mubr.f32.mxu0 0.0
        %1200 = vmatmul.mubr.f32.gmra.mxu0 %v1122
        %v1201 = vpop.f32.mrf.mxu0
        %v1202 = vadd.f32 %v1116, %v1201
        %v1203 = vpop.f32.mrf.mxu0
        %1204 = vmatprep.mubr.f32.mxu0 0.0
        %1205 = vmatmul.mubr.f32.gmra.mxu0 %v1125
        %v1206 = vpop.f32.mrf.mxu0
        %v1207 = vadd.f32 %v1116, %v1206
        %v1208 = vpop.f32.mrf.mxu0
        %1209 = vmatprep.mubr.f32.mxu0 0.0
        %1210 = vmatmul.mubr.f32.gmra.mxu0 %v1128
        %v1211 = vpop.f32.mrf.mxu0
        %v1212 = vadd.f32 %v1116, %v1211
        %v1213 = vpop.f32.mrf.mxu0
        %1214 = vdwg.mxu0
        %v1215 = vld [vmem:[#allocation17] sm:$0xff]
        %v1216 = vld [vmem:[#allocation17 + $0x8] sm:$0xff]
        %v1217 = vld [vmem:[#allocation17 + $0x10] sm:$0xff]
        %v1218 = vld [vmem:[#allocation17 + $0x18] sm:$0xff]
        %v1219 = vld [vmem:[%s14] sm:$0x1]
        %v1221 = vlaneseq
        %v1222 = vshrl.u32 %v1221, 7
        %v1223 = vsub.s32 0, %v1222
        %v1224 = vrot.slane %v1219, %v1223
        %1226 = vmatprep.subr.mxu0 0.0
        %1227 = vmatpush1.msra.mxu0 0.0
        %1228 = vmatprep.subr.mxu0 0.0
        %1229 = vmatpush1.msra.mxu0 0.0
        %1230 = vmatprep.subr.mxu0 0.0
        %1231 = vmatpush1.msra.mxu0 0.0
        %1232 = vmatprep.subr.mxu0 0.0
        %1233 = vmatpush1.msra.mxu0 0.0
        %1234 = vmatprep.subr.mxu0 0.0
        %1235 = vmatpush1.msra.mxu0 0.0
        %1236 = vmatprep.subr.mxu0 0.0
        %1237 = vmatpush1.msra.mxu0 0.0
        %1238 = vmatprep.subr.mxu0 0.0
        %1239 = vmatpush1.msra.mxu0 0.0
        %1240 = vmatprep.subr.mxu0 0.0
        %1241 = vmatpush1.msra.mxu0 0.0
        %1242 = vmatprep.subr.mxu0 0.0
        %1243 = vmatpush1.msra.mxu0 0.0
        %1244 = vmatprep.subr.mxu0 0.0
        %1245 = vmatpush1.msra.mxu0 0.0
        %1246 = vmatprep.subr.mxu0 0.0
        %1247 = vmatpush1.msra.mxu0 0.0
        %1248 = vmatprep.subr.mxu0 0.0
        %1249 = vmatpush1.msra.mxu0 0.0
        %1250 = vmatprep.subr.mxu0 0.0
        %1251 = vmatpush1.msra.mxu0 %v1218
        %1252 = vmatprep.subr.mxu0 0.0
        %1253 = vmatpush1.msra.mxu0 %v1217
        %1254 = vmatprep.subr.mxu0 0.0
        %1255 = vmatpush1.msra.mxu0 %v1216
        %1256 = vmatprep.subr.mxu0 0.0
        %1257 = vmatpush1.msra.mxu0 %v1215
        %1258 = vmatprep.subr.mxu0 0.0
        %1259 = vmatpush2.msra.mxu0 0.0
        %1260 = vmatprep.subr.mxu0 0.0
        %1261 = vmatpush2.msra.mxu0 0.0
        %1262 = vmatprep.subr.mxu0 0.0
        %1263 = vmatpush2.msra.mxu0 0.0
        %1264 = vmatprep.subr.mxu0 0.0
        %1265 = vmatpush2.msra.mxu0 0.0
        %1266 = vmatprep.subr.mxu0 0.0
        %1267 = vmatpush2.msra.mxu0 0.0
        %1268 = vmatprep.subr.mxu0 0.0
        %1269 = vmatpush2.msra.mxu0 0.0
        %1270 = vmatprep.subr.mxu0 0.0
        %1271 = vmatpush2.msra.mxu0 0.0
        %1272 = vmatprep.subr.mxu0 0.0
        %1273 = vmatpush2.msra.mxu0 0.0
        %1274 = vmatprep.subr.mxu0 0.0
        %1275 = vmatpush2.msra.mxu0 0.0
        %1276 = vmatprep.subr.mxu0 0.0
        %1277 = vmatpush2.msra.mxu0 0.0
        %1278 = vmatprep.subr.mxu0 0.0
        %1279 = vmatpush2.msra.mxu0 0.0
        %1280 = vmatprep.subr.mxu0 0.0
        %1281 = vmatpush2.msra.mxu0 0.0
        %1282 = vmatprep.subr.mxu0 0.0
        %1283 = vmatpush2.msra.mxu0 0.0
        %1284 = vmatprep.subr.mxu0 0.0
        %1285 = vmatpush2.msra.mxu0 0.0
        %1286 = vmatprep.subr.mxu0 0.0
        %1287 = vmatpush2.msra.mxu0 0.0
        %1288 = vmatprep.subr.mxu0 0.0
        %1289 = vmatpush2.msra.mxu0 0.0
        %1290 = vmatprep.mubr.f32.mxu0 0.0
        %1291 = vmatmul.mubr.f32.gmra.mxu0 %v1119
        %v1292 = vpop.f32.mrf.mxu0
        %v1293 = vadd.f32 %v1224, %v1292
        %v1294 = vpop.f32.mrf.mxu0
        %1295 = vmatprep.mubr.f32.mxu0 0.0
        %1296 = vmatmul.mubr.f32.gmra.mxu0 %v1122
        %v1297 = vpop.f32.mrf.mxu0
        %v1298 = vadd.f32 %v1224, %v1297
        %v1299 = vpop.f32.mrf.mxu0
        %1300 = vmatprep.mubr.f32.mxu0 0.0
        %1301 = vmatmul.mubr.f32.gmra.mxu0 %v1125
        %v1302 = vpop.f32.mrf.mxu0
        %v1303 = vadd.f32 %v1224, %v1302
        %v1304 = vpop.f32.mrf.mxu0
        %1305 = vmatprep.mubr.f32.mxu0 0.0
        %1306 = vmatmul.mubr.f32.gmra.mxu0 %v1128
        %v1307 = vpop.f32.mrf.mxu0
        %v1308 = vadd.f32 %v1224, %v1307
        %v1309 = vpop.f32.mrf.mxu0
        %1310 = vdwg.mxu0
        %v1311 = vld [vmem:[#allocation2] sm:$0x1]
        %v1313 = vlaneseq
        %v1314 = vshrl.u32 %v1313, 7
        %v1315 = vsub.s32 0, %v1314
        %v1316 = vrot.slane %v1311, %v1315
        %v1318 = vmul.f32 %v1197, %v1316
        %v1319 = vmul.f32 %v1202, %v1316
        %v1320 = vmul.f32 %v1207, %v1316
        %v1321 = vmul.f32 %v1212, %v1316
        %v1322 = vld [vmem:[%s17] sm:$0xff]
        %v1323 = vld [vmem:[%s17 + $0x8] sm:$0xff]
        %v1324 = vld [vmem:[%s17 + $0x10] sm:$0xff]
        %v1325 = vld [vmem:[%s17 + $0x18] sm:$0xff]
        %v1327 = vsel %vm1033, %v1318, 0
        %v1330 = vsel %vm1033, %v1319, 0
        %v1333 = vsel %vm1033, %v1320, 0
        %v1336 = vsel %vm1033, %v1321, 0
        %1338 = vmatprep.subr.mxu0 0.0
        %1339 = vmatpush1.msra.mxu0 0.0
        %1340 = vmatprep.subr.mxu0 0.0
        %1341 = vmatpush1.msra.mxu0 0.0
        %1342 = vmatprep.subr.mxu0 0.0
        %1343 = vmatpush1.msra.mxu0 0.0
        %1344 = vmatprep.subr.mxu0 0.0
        %1345 = vmatpush1.msra.mxu0 0.0
        %1346 = vmatprep.subr.mxu0 0.0
        %1347 = vmatpush1.msra.mxu0 0.0
        %1348 = vmatprep.subr.mxu0 0.0
        %1349 = vmatpush1.msra.mxu0 0.0
        %1350 = vmatprep.subr.mxu0 0.0
        %1351 = vmatpush1.msra.mxu0 0.0
        %1352 = vmatprep.subr.mxu0 0.0
        %1353 = vmatpush1.msra.mxu0 0.0
        %1354 = vmatprep.subr.mxu0 0.0
        %1355 = vmatpush1.msra.mxu0 0.0
        %1356 = vmatprep.subr.mxu0 0.0
        %1357 = vmatpush1.msra.mxu0 0.0
        %1358 = vmatprep.subr.mxu0 0.0
        %1359 = vmatpush1.msra.mxu0 0.0
        %1360 = vmatprep.subr.mxu0 0.0
        %1361 = vmatpush1.msra.mxu0 0.0
        %1362 = vmatprep.subr.mxu0 0.0
        %1363 = vmatpush1.msra.mxu0 %v1325
        %1364 = vmatprep.subr.mxu0 0.0
        %1365 = vmatpush1.msra.mxu0 %v1324
        %1366 = vmatprep.subr.mxu0 0.0
        %1367 = vmatpush1.msra.mxu0 %v1323
        %1368 = vmatprep.subr.mxu0 0.0
        %1369 = vmatpush1.msra.mxu0 %v1322
        %1370 = vmatprep.subr.mxu0 0.0
        %1371 = vmatpush2.msra.mxu0 0.0
        %1372 = vmatprep.subr.mxu0 0.0
        %1373 = vmatpush2.msra.mxu0 0.0
        %1374 = vmatprep.subr.mxu0 0.0
        %1375 = vmatpush2.msra.mxu0 0.0
        %1376 = vmatprep.subr.mxu0 0.0
        %1377 = vmatpush2.msra.mxu0 0.0
        %1378 = vmatprep.subr.mxu0 0.0
        %1379 = vmatpush2.msra.mxu0 0.0
        %1380 = vmatprep.subr.mxu0 0.0
        %1381 = vmatpush2.msra.mxu0 0.0
        %1382 = vmatprep.subr.mxu0 0.0
        %1383 = vmatpush2.msra.mxu0 0.0
        %1384 = vmatprep.subr.mxu0 0.0
        %1385 = vmatpush2.msra.mxu0 0.0
        %1386 = vmatprep.subr.mxu0 0.0
        %1387 = vmatpush2.msra.mxu0 0.0
        %1388 = vmatprep.subr.mxu0 0.0
        %1389 = vmatpush2.msra.mxu0 0.0
        %1390 = vmatprep.subr.mxu0 0.0
        %1391 = vmatpush2.msra.mxu0 0.0
        %1392 = vmatprep.subr.mxu0 0.0
        %1393 = vmatpush2.msra.mxu0 0.0
        %1394 = vmatprep.subr.mxu0 0.0
        %1395 = vmatpush2.msra.mxu0 0.0
        %1396 = vmatprep.subr.mxu0 0.0
        %1397 = vmatpush2.msra.mxu0 0.0
        %1398 = vmatprep.subr.mxu0 0.0
        %1399 = vmatpush2.msra.mxu0 0.0
        %1400 = vmatprep.subr.mxu0 0.0
        %1401 = vmatpush2.msra.mxu0 0.0
        %1402 = vmatprep.mubr.f32.mxu0 0.0
        %1403 = vmatmul.mubr.f32.gmra.mxu0 %v1327
        %v1404 = vpop.f32.mrf.mxu0
        %v1405 = vadd.f32 0.0, %v1404
        %v1406 = vpop.f32.mrf.mxu0
        %1407 = vmatprep.mubr.f32.mxu0 0.0
        %1408 = vmatmul.mubr.f32.gmra.mxu0 %v1330
        %v1409 = vpop.f32.mrf.mxu0
        %v1410 = vadd.f32 0.0, %v1409
        %v1411 = vpop.f32.mrf.mxu0
        %1412 = vmatprep.mubr.f32.mxu0 0.0
        %1413 = vmatmul.mubr.f32.gmra.mxu0 %v1333
        %v1414 = vpop.f32.mrf.mxu0
        %v1415 = vadd.f32 0.0, %v1414
        %v1416 = vpop.f32.mrf.mxu0
        %1417 = vmatprep.mubr.f32.mxu0 0.0
        %1418 = vmatmul.mubr.f32.gmra.mxu0 %v1336
        %v1419 = vpop.f32.mrf.mxu0
        %v1420 = vadd.f32 0.0, %v1419
        %v1421 = vpop.f32.mrf.mxu0
        %1422 = vdwg.mxu0
        %v1423 = vld [vmem:[%s783] sm:$0x1]
        %v1424 = vld [vmem:[#allocation3] sm:$0x1]
        %vm1425 = vcmask 31744
        %v1426 = vsel %vm1425, %v1405, -inf
        %v1427 = vsel %vm1425, %v1410, -inf
        %v1428 = vsel %vm1425, %v1415, -inf
        %v1429 = vsel %vm1425, %v1420, -inf
        %v1430 = vmax.f32 %v1426, %v1427
        %v1431 = vmax.f32 %v1428, %v1429
        %v1432 = vmax.f32 %v1430, %v1431
        %v1433 = vrot.slane %v1432, 4
        %v1434 = vmax.f32 %v1432, %v1433
        %v1435 = vrot.slane %v1434, 2
        %v1436 = vmax.f32 %v1434, %v1435
        %v1437 = vrot.slane %v1436, 1
        %v1438 = vmax.f32 %v1436, %v1437
        %v1439 = vmax.f32 %v1424, %v1438
        %v1440 = vsub.f32 %v1424, %v1439
        %v1441 = vmul.f32 %v1440, 1.442695
        %v1442 = vpow.pop %v1441
        %v1444 = vlaneseq
        %v1445 = vshrl.u32 %v1444, 7
        %v1446 = vsub.s32 0, %v1445
        %v1447 = vrot.slane %v1439, %v1446
        %v1449 = vsub.f32 %v1405, %v1447
        %v1450 = vsub.f32 %v1410, %v1447
        %v1451 = vsub.f32 %v1415, %v1447
        %v1452 = vsub.f32 %v1420, %v1447
        %v1453 = vmul.f32 %v1449, 1.442695
        %v1454 = vpow.pop %v1453
        %v1455 = vmul.f32 %v1450, 1.442695
        %v1456 = vpow.pop %v1455
        %v1457 = vmul.f32 %v1451, 1.442695
        %v1458 = vpow.pop %v1457
        %v1459 = vmul.f32 %v1452, 1.442695
        %v1460 = vpow.pop %v1459
        %v1461 = vld [vmem:[#allocation4] sm:$0x1]
        %v1462 = vmul.f32 %v1442, %v1461
        %v1464 = vsel %vm1033, %v1423, 0
        %1466 = vmatprep.subr.mxu0 0.0
        %1467 = vmatpush1.msra.mxu0 0.0
        %1468 = vmatprep.subr.mxu0 0.0
        %1469 = vmatpush1.msra.mxu0 0.0
        %1470 = vmatprep.subr.mxu0 0.0
        %1471 = vmatpush1.msra.mxu0 0.0
        %1472 = vmatprep.subr.mxu0 0.0
        %1473 = vmatpush1.msra.mxu0 0.0
        %1474 = vmatprep.subr.mxu0 0.0
        %1475 = vmatpush1.msra.mxu0 0.0
        %1476 = vmatprep.subr.mxu0 0.0
        %1477 = vmatpush1.msra.mxu0 0.0
        %1478 = vmatprep.subr.mxu0 0.0
        %1479 = vmatpush1.msra.mxu0 0.0
        %1480 = vmatprep.subr.mxu0 0.0
        %1481 = vmatpush1.msra.mxu0 0.0
        %1482 = vmatprep.subr.mxu0 0.0
        %1483 = vmatpush1.msra.mxu0 0.0
        %1484 = vmatprep.subr.mxu0 0.0
        %1485 = vmatpush1.msra.mxu0 0.0
        %1486 = vmatprep.subr.mxu0 0.0
        %1487 = vmatpush1.msra.mxu0 0.0
        %1488 = vmatprep.subr.mxu0 0.0
        %1489 = vmatpush1.msra.mxu0 0.0
        %1490 = vmatprep.subr.mxu0 0.0
        %1491 = vmatpush1.msra.mxu0 %v1460
        %1492 = vmatprep.subr.mxu0 0.0
        %1493 = vmatpush1.msra.mxu0 %v1458
        %1494 = vmatprep.subr.mxu0 0.0
        %1495 = vmatpush1.msra.mxu0 %v1456
        %1496 = vmatprep.subr.mxu0 0.0
        %1497 = vmatpush1.msra.mxu0 %v1454
        %1498 = vmatprep.subr.mxu0 0.0
        %1499 = vmatpush2.msra.mxu0 0.0
        %1500 = vmatprep.subr.mxu0 0.0
        %1501 = vmatpush2.msra.mxu0 0.0
        %1502 = vmatprep.subr.mxu0 0.0
        %1503 = vmatpush2.msra.mxu0 0.0
        %1504 = vmatprep.subr.mxu0 0.0
        %1505 = vmatpush2.msra.mxu0 0.0
        %1506 = vmatprep.subr.mxu0 0.0
        %1507 = vmatpush2.msra.mxu0 0.0
        %1508 = vmatprep.subr.mxu0 0.0
        %1509 = vmatpush2.msra.mxu0 0.0
        %1510 = vmatprep.subr.mxu0 0.0
        %1511 = vmatpush2.msra.mxu0 0.0
        %1512 = vmatprep.subr.mxu0 0.0
        %1513 = vmatpush2.msra.mxu0 0.0
        %1514 = vmatprep.subr.mxu0 0.0
        %1515 = vmatpush2.msra.mxu0 0.0
        %1516 = vmatprep.subr.mxu0 0.0
        %1517 = vmatpush2.msra.mxu0 0.0
        %1518 = vmatprep.subr.mxu0 0.0
        %1519 = vmatpush2.msra.mxu0 0.0
        %1520 = vmatprep.subr.mxu0 0.0
        %1521 = vmatpush2.msra.mxu0 0.0
        %1522 = vmatprep.subr.mxu0 0.0
        %1523 = vmatpush2.msra.mxu0 0.0
        %1524 = vmatprep.subr.mxu0 0.0
        %1525 = vmatpush2.msra.mxu0 0.0
        %1526 = vmatprep.subr.mxu0 0.0
        %1527 = vmatpush2.msra.mxu0 0.0
        %1528 = vmatprep.subr.mxu0 0.0
        %1529 = vmatpush2.msra.mxu0 0.0
        %1530 = vmatprep.mubr.f32.mxu0 0.0
        %1531 = vmatmul.mubr.f32.gmra.mxu0 %v1464
        %v1532 = vpop.f32.mrf.mxu0
        %v1533 = vadd.f32 0.0, %v1532
        %v1534 = vpop.f32.mrf.mxu0
        %1535 = vdwg.mxu0
        %v1536 = vadd.f32 %v1462, %v1533
        %vm1537 = vcmask 24576
        %1538 = vst.msk [vmem:[#allocation4] sm:$0x1] %vm1537, %v1536
        %v1539 = vld [vmem:[%s18] sm:$0xf]
        %v1541 = vsel %vm1425, %v1454, 0
        %v1544 = vsel %vm1425, %v1456, 0
        %v1547 = vsel %vm1425, %v1458, 0
        %v1550 = vsel %vm1425, %v1460, 0
        %vm1552 = vcmask 1043456
        %v1554 = vsel %vm1552, %v1539, 0
        %1556 = vmatprep.subr.mxu0 0.0
        %1557 = vmatpush1.msra.mxu0 0.0
        %1558 = vmatprep.subr.mxu0 0.0
        %1559 = vmatpush1.msra.mxu0 0.0
        %1560 = vmatprep.subr.mxu0 0.0
        %1561 = vmatpush1.msra.mxu0 0.0
        %1562 = vmatprep.subr.mxu0 0.0
        %1563 = vmatpush1.msra.mxu0 0.0
        %1564 = vmatprep.subr.mxu0 0.0
        %1565 = vmatpush1.msra.mxu0 0.0
        %1566 = vmatprep.subr.mxu0 0.0
        %1567 = vmatpush1.msra.mxu0 0.0
        %1568 = vmatprep.subr.mxu0 0.0
        %1569 = vmatpush1.msra.mxu0 0.0
        %1570 = vmatprep.subr.mxu0 0.0
        %1571 = vmatpush1.msra.mxu0 0.0
        %1572 = vmatprep.subr.mxu0 0.0
        %1573 = vmatpush1.msra.mxu0 0.0
        %1574 = vmatprep.subr.mxu0 0.0
        %1575 = vmatpush1.msra.mxu0 0.0
        %1576 = vmatprep.subr.mxu0 0.0
        %1577 = vmatpush1.msra.mxu0 0.0
        %1578 = vmatprep.subr.mxu0 0.0
        %1579 = vmatpush1.msra.mxu0 0.0
        %1580 = vmatprep.subr.mxu0 0.0
        %1581 = vmatpush1.msra.mxu0 0.0
        %1582 = vmatprep.subr.mxu0 0.0
        %1583 = vmatpush1.msra.mxu0 0.0
        %1584 = vmatprep.subr.mxu0 0.0
        %1585 = vmatpush1.msra.mxu0 0.0
        %1586 = vmatprep.subr.mxu0 0.0
        %1587 = vmatpush1.msra.mxu0 %v1554
        %1588 = vmatprep.subr.mxu0 0.0
        %1589 = vmatpush2.msra.mxu0 0.0
        %1590 = vmatprep.subr.mxu0 0.0
        %1591 = vmatpush2.msra.mxu0 0.0
        %1592 = vmatprep.subr.mxu0 0.0
        %1593 = vmatpush2.msra.mxu0 0.0
        %1594 = vmatprep.subr.mxu0 0.0
        %1595 = vmatpush2.msra.mxu0 0.0
        %1596 = vmatprep.subr.mxu0 0.0
        %1597 = vmatpush2.msra.mxu0 0.0
        %1598 = vmatprep.subr.mxu0 0.0
        %1599 = vmatpush2.msra.mxu0 0.0
        %1600 = vmatprep.subr.mxu0 0.0
        %1601 = vmatpush2.msra.mxu0 0.0
        %1602 = vmatprep.subr.mxu0 0.0
        %1603 = vmatpush2.msra.mxu0 0.0
        %1604 = vmatprep.subr.mxu0 0.0
        %1605 = vmatpush2.msra.mxu0 0.0
        %1606 = vmatprep.subr.mxu0 0.0
        %1607 = vmatpush2.msra.mxu0 0.0
        %1608 = vmatprep.subr.mxu0 0.0
        %1609 = vmatpush2.msra.mxu0 0.0
        %1610 = vmatprep.subr.mxu0 0.0
        %1611 = vmatpush2.msra.mxu0 0.0
        %1612 = vmatprep.subr.mxu0 0.0
        %1613 = vmatpush2.msra.mxu0 0.0
        %1614 = vmatprep.subr.mxu0 0.0
        %1615 = vmatpush2.msra.mxu0 0.0
        %1616 = vmatprep.subr.mxu0 0.0
        %1617 = vmatpush2.msra.mxu0 0.0
        %1618 = vmatprep.subr.mxu0 0.0
        %1619 = vmatpush2.msra.mxu0 0.0
        %1620 = vmatprep.mubr.f32.mxu0 0.0
        %1621 = vmatmul.mubr.f32.gmra.mxu0 %v1541
        %v1622 = vpop.f32.mrf.mxu0
        %v1623 = vadd.f32 0.0, %v1622
        %v1624 = vpop.f32.mrf.mxu0
        %1625 = vmatprep.mubr.f32.mxu0 0.0
        %1626 = vmatmul.mubr.f32.gmra.mxu0 %v1544
        %v1627 = vpop.f32.mrf.mxu0
        %v1628 = vadd.f32 0.0, %v1627
        %v1629 = vpop.f32.mrf.mxu0
        %1630 = vmatprep.mubr.f32.mxu0 0.0
        %1631 = vmatmul.mubr.f32.gmra.mxu0 %v1547
        %v1632 = vpop.f32.mrf.mxu0
        %v1633 = vadd.f32 0.0, %v1632
        %v1634 = vpop.f32.mrf.mxu0
        %1635 = vmatprep.mubr.f32.mxu0 0.0
        %1636 = vmatmul.mubr.f32.gmra.mxu0 %v1550
        %v1637 = vpop.f32.mrf.mxu0
        %v1638 = vadd.f32 0.0, %v1637
        %v1639 = vpop.f32.mrf.mxu0
        %1640 = vdwg.mxu0
        %v1642 = vsel %vm1425, %v1442, 0
        %1644 = vmatprep.subr.mxu0 0.0
        %1645 = vmatpush1.msra.mxu0 0.0
        %1646 = vmatprep.subr.mxu0 0.0
        %1647 = vmatpush1.msra.mxu0 0.0
        %1648 = vmatprep.subr.mxu0 0.0
        %1649 = vmatpush1.msra.mxu0 0.0
        %1650 = vmatprep.subr.mxu0 0.0
        %1651 = vmatpush1.msra.mxu0 0.0
        %1652 = vmatprep.subr.mxu0 0.0
        %1653 = vmatpush1.msra.mxu0 0.0
        %1654 = vmatprep.subr.mxu0 0.0
        %1655 = vmatpush1.msra.mxu0 0.0
        %1656 = vmatprep.subr.mxu0 0.0
        %1657 = vmatpush1.msra.mxu0 0.0
        %1658 = vmatprep.subr.mxu0 0.0
        %1659 = vmatpush1.msra.mxu0 0.0
        %1660 = vmatprep.subr.mxu0 0.0
        %1661 = vmatpush1.msra.mxu0 0.0
        %1662 = vmatprep.subr.mxu0 0.0
        %1663 = vmatpush1.msra.mxu0 0.0
        %1664 = vmatprep.subr.mxu0 0.0
        %1665 = vmatpush1.msra.mxu0 0.0
        %1666 = vmatprep.subr.mxu0 0.0
        %1667 = vmatpush1.msra.mxu0 0.0
        %1668 = vmatprep.subr.mxu0 0.0
        %1669 = vmatpush1.msra.mxu0 0.0
        %1670 = vmatprep.subr.mxu0 0.0
        %1671 = vmatpush1.msra.mxu0 0.0
        %1672 = vmatprep.subr.mxu0 0.0
        %1673 = vmatpush1.msra.mxu0 0.0
        %1674 = vmatprep.subr.mxu0 0.0
        %1675 = vmatpush1.msra.mxu0 %v1554
        %1676 = vmatprep.subr.mxu0 0.0
        %1677 = vmatpush2.msra.mxu0 0.0
        %1678 = vmatprep.subr.mxu0 0.0
        %1679 = vmatpush2.msra.mxu0 0.0
        %1680 = vmatprep.subr.mxu0 0.0
        %1681 = vmatpush2.msra.mxu0 0.0
        %1682 = vmatprep.subr.mxu0 0.0
        %1683 = vmatpush2.msra.mxu0 0.0
        %1684 = vmatprep.subr.mxu0 0.0
        %1685 = vmatpush2.msra.mxu0 0.0
        %1686 = vmatprep.subr.mxu0 0.0
        %1687 = vmatpush2.msra.mxu0 0.0
        %1688 = vmatprep.subr.mxu0 0.0
        %1689 = vmatpush2.msra.mxu0 0.0
        %1690 = vmatprep.subr.mxu0 0.0
        %1691 = vmatpush2.msra.mxu0 0.0
        %1692 = vmatprep.subr.mxu0 0.0
        %1693 = vmatpush2.msra.mxu0 0.0
        %1694 = vmatprep.subr.mxu0 0.0
        %1695 = vmatpush2.msra.mxu0 0.0
        %1696 = vmatprep.subr.mxu0 0.0
        %1697 = vmatpush2.msra.mxu0 0.0
        %1698 = vmatprep.subr.mxu0 0.0
        %1699 = vmatpush2.msra.mxu0 0.0
        %1700 = vmatprep.subr.mxu0 0.0
        %1701 = vmatpush2.msra.mxu0 0.0
        %1702 = vmatprep.subr.mxu0 0.0
        %1703 = vmatpush2.msra.mxu0 0.0
        %1704 = vmatprep.subr.mxu0 0.0
        %1705 = vmatpush2.msra.mxu0 0.0
        %1706 = vmatprep.subr.mxu0 0.0
        %1707 = vmatpush2.msra.mxu0 0.0
        %1708 = vmatprep.mubr.f32.mxu0 0.0
        %1709 = vmatmul.mubr.f32.gmra.mxu0 %v1642
        %v1710 = vpop.f32.mrf.mxu0
        %v1711 = vadd.f32 0.0, %v1710
        %v1712 = vpop.f32.mrf.mxu0
        %1713 = vdwg.mxu0
        %v1714 = vld [vmem:[#allocation5] sm:$0x1]
        %v1715 = vmul.f32 %v1711, %v1714
        %v1716 = vmul.f32 %v1623, %v1293
        %v1717 = vmul.f32 %v1628, %v1298
        %v1718 = vmul.f32 %v1633, %v1303
        %v1719 = vmul.f32 %v1638, %v1308
        %1720 = vmatprep.subr.mxu0 0.0
        %1721 = vmatpush1.msra.mxu0 0.0
        %1722 = vmatprep.subr.mxu0 0.0
        %1723 = vmatpush1.msra.mxu0 0.0
        %1724 = vmatprep.subr.mxu0 0.0
        %1725 = vmatpush1.msra.mxu0 0.0
        %1726 = vmatprep.subr.mxu0 0.0
        %1727 = vmatpush1.msra.mxu0 0.0
        %1728 = vmatprep.subr.mxu0 0.0
        %1729 = vmatpush1.msra.mxu0 0.0
        %1730 = vmatprep.subr.mxu0 0.0
        %1731 = vmatpush1.msra.mxu0 0.0
        %1732 = vmatprep.subr.mxu0 0.0
        %1733 = vmatpush1.msra.mxu0 0.0
        %1734 = vmatprep.subr.mxu0 0.0
        %1735 = vmatpush1.msra.mxu0 0.0
        %1736 = vmatprep.subr.mxu0 0.0
        %1737 = vmatpush1.msra.mxu0 0.0
        %1738 = vmatprep.subr.mxu0 0.0
        %1739 = vmatpush1.msra.mxu0 0.0
        %1740 = vmatprep.subr.mxu0 0.0
        %1741 = vmatpush1.msra.mxu0 0.0
        %1742 = vmatprep.subr.mxu0 0.0
        %1743 = vmatpush1.msra.mxu0 0.0
        %1744 = vmatprep.subr.mxu0 0.0
        %1745 = vmatpush1.msra.mxu0 %v1719
        %1746 = vmatprep.subr.mxu0 0.0
        %1747 = vmatpush1.msra.mxu0 %v1718
        %1748 = vmatprep.subr.mxu0 0.0
        %1749 = vmatpush1.msra.mxu0 %v1717
        %1750 = vmatprep.subr.mxu0 0.0
        %1751 = vmatpush1.msra.mxu0 %v1716
        %1752 = vmatprep.subr.mxu0 0.0
        %1753 = vmatpush2.msra.mxu0 0.0
        %1754 = vmatprep.subr.mxu0 0.0
        %1755 = vmatpush2.msra.mxu0 0.0
        %1756 = vmatprep.subr.mxu0 0.0
        %1757 = vmatpush2.msra.mxu0 0.0
        %1758 = vmatprep.subr.mxu0 0.0
        %1759 = vmatpush2.msra.mxu0 0.0
        %1760 = vmatprep.subr.mxu0 0.0
        %1761 = vmatpush2.msra.mxu0 0.0
        %1762 = vmatprep.subr.mxu0 0.0
        %1763 = vmatpush2.msra.mxu0 0.0
        %1764 = vmatprep.subr.mxu0 0.0
        %1765 = vmatpush2.msra.mxu0 0.0
        %1766 = vmatprep.subr.mxu0 0.0
        %1767 = vmatpush2.msra.mxu0 0.0
        %1768 = vmatprep.subr.mxu0 0.0
        %1769 = vmatpush2.msra.mxu0 0.0
        %1770 = vmatprep.subr.mxu0 0.0
        %1771 = vmatpush2.msra.mxu0 0.0
        %1772 = vmatprep.subr.mxu0 0.0
        %1773 = vmatpush2.msra.mxu0 0.0
        %1774 = vmatprep.subr.mxu0 0.0
        %1775 = vmatpush2.msra.mxu0 0.0
        %1776 = vmatprep.subr.mxu0 0.0
        %1777 = vmatpush2.msra.mxu0 0.0
        %1778 = vmatprep.subr.mxu0 0.0
        %1779 = vmatpush2.msra.mxu0 0.0
        %1780 = vmatprep.subr.mxu0 0.0
        %1781 = vmatpush2.msra.mxu0 0.0
        %1782 = vmatprep.subr.mxu0 0.0
        %1783 = vmatpush2.msra.mxu0 0.0
        %1784 = vmatprep.mubr.f32.mxu0 0.0
        %1785 = vmatmul.mubr.f32.gmra.mxu0 %v1464
        %v1786 = vpop.f32.mrf.mxu0
        %v1787 = vadd.f32 0.0, %v1786
        %v1788 = vpop.f32.mrf.mxu0
        %1789 = vdwg.mxu0
        %v1790 = vadd.f32 %v1715, %v1787
        %vm1791 = vcmask 253952
        %1792 = vst.msk [vmem:[#allocation5] sm:$0x1] %vm1791, %v1790
        %1793 = vst.msk [vmem:[#allocation3] sm:$0x1] %vm1537, %v1439
        %p1794 = scmp.eq.s32.totalorder %s46, 1
        // Predicated region
        $region137: #{tpu_custom_call.1} parent=99 // pred_check
          %p1795 = pneg %p1794
        $region138: #{tpu_custom_call.1} parent=99 // pred_check_branch
          %1797 = sbr.rel (%p1795) target = $region140
        $region139: #{tpu_custom_call.1} parent=99 // pred_region
          %v1798 = vld [vmem:[#allocation4] sm:$0x1]
          %v1799 = vld [vmem:[%s18] sm:$0xf]
          %v1801 = vsel %vm1425, %v1798, 0
          %v1804 = vsel %vm1552, %v1799, 0
          %1806 = vmatprep.subr.mxu0 0.0
          %1807 = vmatpush1.msra.mxu0 0.0
          %1808 = vmatprep.subr.mxu0 0.0
          %1809 = vmatpush1.msra.mxu0 0.0
          %1810 = vmatprep.subr.mxu0 0.0
          %1811 = vmatpush1.msra.mxu0 0.0
          %1812 = vmatprep.subr.mxu0 0.0
          %1813 = vmatpush1.msra.mxu0 0.0
          %1814 = vmatprep.subr.mxu0 0.0
          %1815 = vmatpush1.msra.mxu0 0.0
          %1816 = vmatprep.subr.mxu0 0.0
          %1817 = vmatpush1.msra.mxu0 0.0
          %1818 = vmatprep.subr.mxu0 0.0
          %1819 = vmatpush1.msra.mxu0 0.0
          %1820 = vmatprep.subr.mxu0 0.0
          %1821 = vmatpush1.msra.mxu0 0.0
          %1822 = vmatprep.subr.mxu0 0.0
          %1823 = vmatpush1.msra.mxu0 0.0
          %1824 = vmatprep.subr.mxu0 0.0
          %1825 = vmatpush1.msra.mxu0 0.0
          %1826 = vmatprep.subr.mxu0 0.0
          %1827 = vmatpush1.msra.mxu0 0.0
          %1828 = vmatprep.subr.mxu0 0.0
          %1829 = vmatpush1.msra.mxu0 0.0
          %1830 = vmatprep.subr.mxu0 0.0
          %1831 = vmatpush1.msra.mxu0 0.0
          %1832 = vmatprep.subr.mxu0 0.0
          %1833 = vmatpush1.msra.mxu0 0.0
          %1834 = vmatprep.subr.mxu0 0.0
          %1835 = vmatpush1.msra.mxu0 0.0
          %1836 = vmatprep.subr.mxu0 0.0
          %1837 = vmatpush1.msra.mxu0 %v1804
          %1838 = vmatprep.subr.mxu0 0.0
          %1839 = vmatpush2.msra.mxu0 0.0
          %1840 = vmatprep.subr.mxu0 0.0
          %1841 = vmatpush2.msra.mxu0 0.0
          %1842 = vmatprep.subr.mxu0 0.0
          %1843 = vmatpush2.msra.mxu0 0.0
          %1844 = vmatprep.subr.mxu0 0.0
          %1845 = vmatpush2.msra.mxu0 0.0
          %1846 = vmatprep.subr.mxu0 0.0
          %1847 = vmatpush2.msra.mxu0 0.0
          %1848 = vmatprep.subr.mxu0 0.0
          %1849 = vmatpush2.msra.mxu0 0.0
          %1850 = vmatprep.subr.mxu0 0.0
          %1851 = vmatpush2.msra.mxu0 0.0
          %1852 = vmatprep.subr.mxu0 0.0
          %1853 = vmatpush2.msra.mxu0 0.0
          %1854 = vmatprep.subr.mxu0 0.0
          %1855 = vmatpush2.msra.mxu0 0.0
          %1856 = vmatprep.subr.mxu0 0.0
          %1857 = vmatpush2.msra.mxu0 0.0
          %1858 = vmatprep.subr.mxu0 0.0
          %1859 = vmatpush2.msra.mxu0 0.0
          %1860 = vmatprep.subr.mxu0 0.0
          %1861 = vmatpush2.msra.mxu0 0.0
          %1862 = vmatprep.subr.mxu0 0.0
          %1863 = vmatpush2.msra.mxu0 0.0
          %1864 = vmatprep.subr.mxu0 0.0
          %1865 = vmatpush2.msra.mxu0 0.0
          %1866 = vmatprep.subr.mxu0 0.0
          %1867 = vmatpush2.msra.mxu0 0.0
          %1868 = vmatprep.subr.mxu0 0.0
          %1869 = vmatpush2.msra.mxu0 0.0
          %1870 = vmatprep.mubr.f32.mxu0 0.0
          %1871 = vmatmul.mubr.f32.gmra.mxu0 %v1801
          %v1872 = vpop.f32.mrf.mxu0
          %v1873 = vadd.f32 0.0, %v1872
          %v1874 = vpop.f32.mrf.mxu0
          %1875 = vdwg.mxu0
          %v1876 = vld [vmem:[#allocation5] sm:$0x1]
          %v1877 = vrcp.pop %v1873
          %v1878 = vmul.f32 %v1876, %v1877
          %v1879 = vld [vmem:[#allocation18] sm:$0xff]
          %v1880 = vld [vmem:[#allocation18 + $0x8] sm:$0xff]
          %v1881 = vld [vmem:[#allocation18 + $0x10] sm:$0xff]
          %v1882 = vld [vmem:[#allocation18 + $0x18] sm:$0xff]
          %v1883 = vld [vmem:[%s16] sm:$0x1]
          %v1885 = vsel %vm1033, %v1878, 0
          %1887 = vmatprep.subr.mxu0 0.0
          %1888 = vmatpush1.msra.mxu0 0.0
          %1889 = vmatprep.subr.mxu0 0.0
          %1890 = vmatpush1.msra.mxu0 0.0
          %1891 = vmatprep.subr.mxu0 0.0
          %1892 = vmatpush1.msra.mxu0 0.0
          %1893 = vmatprep.subr.mxu0 0.0
          %1894 = vmatpush1.msra.mxu0 0.0
          %1895 = vmatprep.subr.mxu0 0.0
          %1896 = vmatpush1.msra.mxu0 0.0
          %1897 = vmatprep.subr.mxu0 0.0
          %1898 = vmatpush1.msra.mxu0 0.0
          %1899 = vmatprep.subr.mxu0 0.0
          %1900 = vmatpush1.msra.mxu0 0.0
          %1901 = vmatprep.subr.mxu0 0.0
          %1902 = vmatpush1.msra.mxu0 0.0
          %1903 = vmatprep.subr.mxu0 0.0
          %1904 = vmatpush1.msra.mxu0 0.0
          %1905 = vmatprep.subr.mxu0 0.0
          %1906 = vmatpush1.msra.mxu0 0.0
          %1907 = vmatprep.subr.mxu0 0.0
          %1908 = vmatpush1.msra.mxu0 0.0
          %1909 = vmatprep.subr.mxu0 0.0
          %1910 = vmatpush1.msra.mxu0 0.0
          %1911 = vmatprep.subr.mxu0 0.0
          %1912 = vmatpush1.msra.mxu0 %v1882
          %1913 = vmatprep.subr.mxu0 0.0
          %1914 = vmatpush1.msra.mxu0 %v1881
          %1915 = vmatprep.subr.mxu0 0.0
          %1916 = vmatpush1.msra.mxu0 %v1880
          %1917 = vmatprep.subr.mxu0 0.0
          %1918 = vmatpush1.msra.mxu0 %v1879
          %1919 = vmatprep.subr.mxu0 0.0
          %1920 = vmatpush2.msra.mxu0 0.0
          %1921 = vmatprep.subr.mxu0 0.0
          %1922 = vmatpush2.msra.mxu0 0.0
          %1923 = vmatprep.subr.mxu0 0.0
          %1924 = vmatpush2.msra.mxu0 0.0
          %1925 = vmatprep.subr.mxu0 0.0
          %1926 = vmatpush2.msra.mxu0 0.0
          %1927 = vmatprep.subr.mxu0 0.0
          %1928 = vmatpush2.msra.mxu0 0.0
          %1929 = vmatprep.subr.mxu0 0.0
          %1930 = vmatpush2.msra.mxu0 0.0
          %1931 = vmatprep.subr.mxu0 0.0
          %1932 = vmatpush2.msra.mxu0 0.0
          %1933 = vmatprep.subr.mxu0 0.0
          %1934 = vmatpush2.msra.mxu0 0.0
          %1935 = vmatprep.subr.mxu0 0.0
          %1936 = vmatpush2.msra.mxu0 0.0
          %1937 = vmatprep.subr.mxu0 0.0
          %1938 = vmatpush2.msra.mxu0 0.0
          %1939 = vmatprep.subr.mxu0 0.0
          %1940 = vmatpush2.msra.mxu0 0.0
          %1941 = vmatprep.subr.mxu0 0.0
          %1942 = vmatpush2.msra.mxu0 0.0
          %1943 = vmatprep.subr.mxu0 0.0
          %1944 = vmatpush2.msra.mxu0 0.0
          %1945 = vmatprep.subr.mxu0 0.0
          %1946 = vmatpush2.msra.mxu0 0.0
          %1947 = vmatprep.subr.mxu0 0.0
          %1948 = vmatpush2.msra.mxu0 0.0
          %1949 = vmatprep.subr.mxu0 0.0
          %1950 = vmatpush2.msra.mxu0 0.0
          %1951 = vmatprep.mubr.f32.mxu0 0.0
          %1952 = vmatmul.mubr.f32.gmra.mxu0 %v1885
          %v1953 = vpop.f32.mrf.mxu0
          %v1954 = vadd.f32 %v1883, %v1953
          %v1955 = vpop.f32.mrf.mxu0
          %1956 = vdwg.mxu0
          %v1957 = vld [vmem:[%s780] sm:$0x1]
          %v1958 = vadd.f32 %v1957, %v1954
          %1959 = vst.msk [vmem:[%s777] sm:$0x1] %vm1791, %v1958
        $region140: #{tpu_custom_call.1} parent=99 // pred_fallthru
          _
        %s1960 = sand.u32 %s498, 1
        %s1961 = scalar_lea.sflag [#allocation8], %s1960
        %s1962 = sand.u32 %s498, 1
        %s1963 = scalar_lea.vmem [#allocation20], %s1962
        // Predicated region
        $region141: #{tpu_custom_call.1} parent=99 // pred_check
          %p1964 = pneg %p508
        $region142: #{tpu_custom_call.1} parent=99 // pred_check_branch
          %1966 = sbr.rel (%p1964) target = $region144
        $region143: #{tpu_custom_call.1} parent=99 // pred_region
          %s1968 = ssub.s32 16, 16
          %1969 = vsyncadd %s1961, %s1968
          %s1970 = smul.addr %s45, 16
          %s1971 = scalar_lea.hbm %s20, %s1970
          %s1973 = sshll.u32 %s1963, 4
          %s1974 = int_to_ptr.vmem [resolvable:$true] %s1973
          %1976 = dma.vmem_to_hbm [thread:$0]  %s1974, 16, %s1971, %s1961
        $region144: #{tpu_custom_call.1} parent=99 // pred_fallthru
          _
      $region100: #{tpu_custom_call.1} parent=5 // pred_fallthru
        _
      %p1977 = scmp.le.s32.totalorder 2, %s36
      // Predicated region
      $region145: #{tpu_custom_call.1} parent=5 // pred_check
        %p1978 = pneg %p1977
      $region146: #{tpu_custom_call.1} parent=5 // pred_check_branch
        %1980 = sbr.rel (%p1978) target = $region148
      $region147: #{tpu_custom_call.1} parent=5 // pred_region
        %s1981 = ssub.s32 %s36, 2
        // Predicated region
        $region149: #{tpu_custom_call.1} parent=147 // pred_check
          %p1982 = pneg %p514
        $region150: #{tpu_custom_call.1} parent=147 // pred_check_branch
          %1984 = sbr.rel (%p1982) target = $region152
        $region151: #{tpu_custom_call.1} parent=147 // pred_region
          %s1985 = sand.u32 %s499, 1
          %s1986 = scalar_lea.sflag [#allocation8], %s1985
          %s1987 = sand.u32 %s499, 1
          %s1988 = scalar_lea.vmem [#allocation20], %s1987
          %1989 = dma.done %s1986, 16
        $region152: #{tpu_custom_call.1} parent=147 // pred_fallthru
          _
      $region148: #{tpu_custom_call.1} parent=5 // pred_fallthru
        _
    $region6: #{tpu_custom_call.1} parent=1 // loop_footer
      %s40 = sadd.s32 1, %s36
    $region7: #{tpu_custom_call.1} parent=1 // loop_footer_branch
      %35 = sbr.rel target = $region3
    $region8: #{tpu_custom_call.1} parent=1 // loop_exit
      _
    %1990 = vsyncpa [#allocation7], 1
    %s1991 = scalar_lea.sflag [#allocation7], 1
    %1992 = vsyncpa %s1991, 1
    %1993 = vsyncpa [#allocation10], 1
    %1994 = vsyncpa [#allocation13], 1
    %1995 = vsyncpa [#allocation16], 1
    %1996 = vsyncpa [#allocation19], 1
    %1997 = vsyncpa [#allocation8], 1
    %s1998 = scalar_lea.sflag [#allocation8], 1
    %1999 = vsyncpa %s1998, 1

</llo_original>
